<compile_context>
chip_gen: v6e
topology: v6e:2x2x1
jax: 0.10.0
libtpu: 0.0.40
codegen_flags: <defaults>
</compile_context>

<pallas_src>
import functools
import math

import jax
import jax.numpy as jnp
from jax import lax
from jax.experimental import pallas as pl
from jax.experimental.pallas import tpu as pltpu


def _round_up(x, m):
    return ((x + m - 1) // m) * m


def _vmem_limit_bytes():
    # ~75% of physical VMEM: 48 MiB on v7x (64 MiB/TC), 96 MiB on v5e/v6e (128 MiB).
    cap = 64 * 1024 * 1024
    try:
        info = pltpu.get_tpu_info()
        cap = int(getattr(info, "vmem_capacity_bytes", cap)) or cap
    except Exception:
        pass
    return min(cap * 3 // 4, 100 * 1024 * 1024)


# ----------------------------------------------------------------------------
# Fused Bottleneck kernel (one image per grid step)
# ----------------------------------------------------------------------------
def _bottleneck_kernel(x_ref, res_ref, w1_ref, b1_ref, w2_ref, b2_ref, w3t_ref,
                       b3_ref, o_ref, xpad_ref, patch_ref, a2_ref,
                       *, H, W, Wp, base, mh):
    # x_ref:    (1, H*W, Cin)  bf16, pixel-major (for the conv1 GEMM)
    # res_ref:  (1, Cin, H*W)  f32,  channel-major (exact identity for the skip)
    # w1:(Cin,Cw) w2:(9*Cw,Cw) w3t:(Cout,Cw) bf16 (BN scale folded); biases f32
    # o_ref:    (1, Cout, H*W) f32  — NCHW, lane-dense store
    # scratch:  xpad (pad_len, Cw) bf16 / patch (mh, 9*Cw) bf16 / a2 (H*W, Cw) bf16
    cw = w1_ref.shape[1]

    # ---- conv1 (1x1) + bn1 + relu: (H*W, Cin) @ (Cin, Cw), f32 accumulate ----
    a1 = jnp.dot(x_ref[0], w1_ref[...], preferred_element_type=jnp.float32)
    a1 = jnp.maximum(a1 + b1_ref[...], 0.0).astype(jnp.bfloat16)

    # ---- in-kernel zero padding (pad=1); interior row starts are 8-aligned ----
    xpad_ref[...] = jnp.zeros_like(xpad_ref)
    for r in range(H):
        dst = base + (r + 1) * Wp + 1          # = (r+1)*Wp + 8  (multiple of 8)
        xpad_ref[dst:dst + W, :] = a1[r * W:(r + 1) * W, :]

    # ---- conv2 (3x3, stride 1): in-VMEM im2col, single K = 9*Cw MXU matmul ----
    # Output-with-halo row m = r*Wp + j; tap (di,dj) input sits at m + base + di*Wp + dj,
    # so every tap is one contiguous (mh, Cw) slice of the padded buffer.
    for tap in range(9):
        di, dj = tap // 3, tap % 3
        src = base + di * Wp + dj
        patch_ref[:, tap * cw:(tap + 1) * cw] = xpad_ref[src:src + mh, :]
    a2h = jnp.dot(patch_ref[...], w2_ref[...], preferred_element_type=jnp.float32)
    a2h = jnp.maximum(a2h + b2_ref[...], 0.0).astype(jnp.bfloat16)   # (mh, Cw), haloed

    # ---- drop the (Wp - W)-column halo with aligned row-block copies ----
    for r in range(H):
        a2_ref[r * W:(r + 1) * W, :] = a2h[r * Wp:r * Wp + W, :]

    # ---- conv3 (1x1) + bn3 + exact-f32 identity + relu ----
    # Contract on Cw of both operands so the result is channel-major (Cout, H*W):
    # lane-dense output store, and the wrapper never runs an NHWC->NCHW transpose.
    a3 = lax.dot_general(w3t_ref[...], a2_ref[...], (((1,), (1,)), ((), ())),
                         preferred_element_type=jnp.float32)          # (Cout, H*W)
    y = jnp.maximum(a3 + b3_ref[...] + res_ref[0], 0.0)
    o_ref[0] = y.astype(o_ref.dtype)


# ----------------------------------------------------------------------------
# Wrapper
# ----------------------------------------------------------------------------
def bottleneck_forward(params, x_nchw):
    n, cin, h, w = x_nchw.shape
    m = h * w
    cw = params["w1"].shape[1]
    cout = params["w3t"].shape[0]
    assert cin == cout, "identity skip requires inplanes == planes*expansion"
    # TODO(synk): stride>1 / groups>1 / dilation>1 and the downsample submodule are
    # not instantiated in this config (downsample=None, stride=1).
    # TODO(synk): at real ResNet H*W, add a "parallel" row-block grid axis for conv2
    # instead of whole-image scratch buffers.

    x_res = x_nchw.reshape(n, cin, m)                                # NCHW, free view
    x_pix = jnp.transpose(x_res, (0, 2, 1)).astype(jnp.bfloat16)     # (N, H*W, Cin)

    wp = w + 8               # padded row pitch; 8 slack cols keep interior writes 8-aligned
    base = 7                 # origin offset so interior row r starts at (r+1)*wp + 8
    mh = (h - 1) * wp + w    # conv2 rows including the (wp-w)-column halo
    pad_len = _round_up(base + (h + 2) * wp, 8)

    kernel = functools.partial(_bottleneck_kernel, H=h, W=w, Wp=wp, base=base, mh=mh)

    flops = 2 * n * m * (cin * cw + 9 * cw * cw + cw * cout)
    bytes_accessed = int(n * m * cin * 2 + n * cin * m * 4 + n * cout * m * 4
                         + (cin * cw + 9 * cw * cw + cout * cw) * 2
                         + (2 * cw + cout) * 4)

    out = pl.pallas_call(
        kernel,
        out_shape=jax.ShapeDtypeStruct((n, cout, m), jnp.float32),
        grid_spec=pltpu.PrefetchScalarGridSpec(
            num_scalar_prefetch=0,
            grid=(n,),
            in_specs=[
                pl.BlockSpec((1, m, cin), lambda b: (b, 0, 0)),      # activations (bf16)
                pl.BlockSpec((1, cin, m), lambda b: (b, 0, 0)),      # f32 identity (NCHW)
                pl.BlockSpec((cin, cw), lambda b: (0, 0)),           # w1
                pl.BlockSpec((1, cw), lambda b: (0, 0)),             # b1
                pl.BlockSpec((9 * cw, cw), lambda b: (0, 0)),        # w2 (tap-major)
                pl.BlockSpec((1, cw), lambda b: (0, 0)),             # b2
                pl.BlockSpec((cout, cw), lambda b: (0, 0)),          # w3^T
                pl.BlockSpec((cout, 1), lambda b: (0, 0)),           # b3 (column)
            ],
            out_specs=pl.BlockSpec((1, cout, m), lambda b: (b, 0, 0)),
            scratch_shapes=[
                pltpu.VMEM((pad_len, cw), jnp.bfloat16),             # zero-padded conv2 input
                pltpu.VMEM((mh, 9 * cw), jnp.bfloat16),              # im2col patches (K=9*Cw)
                pltpu.VMEM((m, cw), jnp.bfloat16),                   # conv2 out, halo dropped
            ],
        ),
        compiler_params=pltpu.CompilerParams(
            dimension_semantics=("parallel",),      # one image per program; v7x: 2 TCs busy
            vmem_limit_bytes=_vmem_limit_bytes(),
        ),
        cost_estimate=pl.CostEstimate(flops=flops, transcendentals=0,
                                      bytes_accessed=bytes_accessed),
    )(x_pix, x_res, params["w1"], params["b1"], params["w2"], params["b2"],
      params["w3t"], params["b3"])
    return out.reshape(n, cout, h, w)


# ----------------------------------------------------------------------------
# Parameters (PyTorch-default conv init; eval-mode BN folded in)
# ----------------------------------------------------------------------------
def make_raw_weights(key, inplanes, planes, groups=1, base_width=64):
    expansion = 4
    width = int(planes * (base_width / 64.0)) * groups
    out_c = planes * expansion

    def conv_w(k, cin, cout, kh, kw):
        fan_in = cin * kh * kw
        bound = 1.0 / math.sqrt(fan_in)        # kaiming_uniform(a=sqrt(5)) bound
        return jax.random.uniform(k, (kh, kw, cin, cout), jnp.float32, -bound, bound)

    k1, k2, k3 = jax.random.split(key, 3)
    return {"w1": conv_w(k1, inplanes, width, 1, 1),       # HWIO
            "w2": conv_w(k2, width, width, 3, 3),
            "w3": conv_w(k3, width, out_c, 1, 1)}


def fold_params(raw):
    bn_scale = 1.0 / math.sqrt(1.0 + 1e-5)     # eval BN: mean=0, var=1, gamma=1, beta=0
    w1 = raw["w1"][0, 0] * bn_scale                                   # (Cin, Cw)
    w2 = (raw["w2"] * bn_scale).reshape(-1, raw["w2"].shape[-1])      # (9*Cw, Cw), tap-major
    w3 = raw["w3"][0, 0] * bn_scale                                   # (Cw, Cout)
    cw, cout = w3.shape[0], w3.shape[1]
    return {"w1": w1.astype(jnp.bfloat16), "b1": jnp.zeros((1, cw), jnp.float32),
            "w2": w2.astype(jnp.bfloat16), "b2": jnp.zeros((1, cw), jnp.float32),
            "w3t": jnp.transpose(w3).astype(jnp.bfloat16),
            "b3": jnp.zeros((cout, 1), jnp.float32)}


# Pure-JAX reference (module semantics in f32) for a correctness check.
def reference_forward(raw, x):
    s = 1.0 / math.sqrt(1.0 + 1e-5)

    def conv(v, wgt, pad):
        return lax.conv_general_dilated(v, wgt, window_strides=(1, 1), padding=pad,
                                        dimension_numbers=("NCHW", "HWIO", "NCHW"))

    out = jax.nn.relu(conv(x, raw["w1"], "VALID") * s)
    out = jax.nn.relu(conv(out, raw["w2"], [(1, 1), (1, 1)]) * s)
    out = conv(out, raw["w3"], "VALID") * s
    return jax.nn.relu(out + x)


if __name__ == "__main__":
    batch, inplanes, planes, spatial = 2, 64, 16, 16   # planes*4 == inplanes -> identity skip
    pkey, xkey = jax.random.split(jax.random.PRNGKey(0))
    raw = make_raw_weights(pkey, inplanes, planes)
    params = fold_params(raw)
    x = jax.random.normal(xkey, (batch, inplanes, spatial, spatial), jnp.float32)

    fwd = jax.jit(bottleneck_forward)
    out = fwd(params, x)
    jax.block_until_ready(out)
    assert out.shape == (batch, planes * 4, spatial, spatial), out.shape
    assert bool(jnp.all(jnp.isfinite(out)))

    ref = jax.jit(reference_forward)(raw, x)
    err = float(jnp.max(jnp.abs(out - ref)))
    assert err < 5e-2, f"max abs err vs reference: {err}"
    print("KERNEL_OK")
</pallas_src>

<mosaic_0001>
module attributes {stable_mosaic.version = 11 : i64} {
  func.func @_bottleneck_kernel(%arg0: i32, %arg1: memref<1x256x64xbf16, #tpu.memory_space<vmem>>, %arg2: memref<1x64x256xf32, #tpu.memory_space<vmem>>, %arg3: memref<64x16xbf16, #tpu.memory_space<vmem>>, %arg4: memref<1x16xf32, #tpu.memory_space<vmem>>, %arg5: memref<144x16xbf16, #tpu.memory_space<vmem>>, %arg6: memref<1x16xf32, #tpu.memory_space<vmem>>, %arg7: memref<64x16xbf16, #tpu.memory_space<vmem>>, %arg8: memref<64x1xf32, #tpu.memory_space<vmem>>, %arg9: memref<1x64x256xf32, #tpu.memory_space<vmem>>, %arg10: memref<440x16xbf16, #tpu.memory_space<vmem>>, %arg11: memref<376x144xbf16, #tpu.memory_space<vmem>>, %arg12: memref<256x16xbf16, #tpu.memory_space<vmem>>) attributes {dimension_semantics = [#tpu.dimension_semantics<parallel>], iteration_bounds = array<i64: 2>, scalar_prefetch = 0 : i64, scratch_operands = 3 : i64, tpu.core_type = #tpu.core_type<tc>, window_params = [{transform_indices = @transform_0, window_bounds = array<i64: 1, 256, 64>}, {transform_indices = @transform_1, window_bounds = array<i64: 1, 64, 256>}, {pipeline_mode = #tpu.pipeline_mode<synchronous>, transform_indices = @transform_2, window_bounds = array<i64: 64, 16>}, {pipeline_mode = #tpu.pipeline_mode<synchronous>, transform_indices = @transform_3, window_bounds = array<i64: 1, 16>}, {pipeline_mode = #tpu.pipeline_mode<synchronous>, transform_indices = @transform_4, window_bounds = array<i64: 144, 16>}, {pipeline_mode = #tpu.pipeline_mode<synchronous>, transform_indices = @transform_5, window_bounds = array<i64: 1, 16>}, {pipeline_mode = #tpu.pipeline_mode<synchronous>, transform_indices = @transform_6, window_bounds = array<i64: 64, 16>}, {pipeline_mode = #tpu.pipeline_mode<synchronous>, transform_indices = @transform_7, window_bounds = array<i64: 64, 1>}, {transform_indices = @transform_8, window_bounds = array<i64: 1, 64, 256>}]} {
    %c0 = arith.constant 0 : index
    %c0_0 = arith.constant 0 : index
    %c0_1 = arith.constant 0 : index
    %0 = vector.load %arg1[%c0, %c0_0, %c0_1] : memref<1x256x64xbf16, #tpu.memory_space<vmem>>, vector<1x256x64xbf16>
    %1 = vector.shape_cast %0 : vector<1x256x64xbf16> to vector<256x64xbf16>
    %c0_2 = arith.constant 0 : index
    %c0_3 = arith.constant 0 : index
    %2 = vector.load %arg3[%c0_2, %c0_3] : memref<64x16xbf16, #tpu.memory_space<vmem>>, vector<64x16xbf16>
    %cst = arith.constant dense<0.000000e+00> : vector<256x16xf32>
    %3 = tpu.matmul %1, %2, %cst {dimension_numbers = #tpu.dot_dimension_numbers<[1], [0], [0], [1], [0, 0, 1, 1], [], []>} : vector<256x64xbf16>, vector<64x16xbf16>, vector<256x16xf32> -> vector<256x16xf32>
    %c0_4 = arith.constant 0 : index
    %c0_5 = arith.constant 0 : index
    %4 = vector.load %arg4[%c0_4, %c0_5] : memref<1x16xf32, #tpu.memory_space<vmem>>, vector<1x16xf32>
    %5 = vector.broadcast %4 : vector<1x16xf32> to vector<256x16xf32>
    %6 = arith.addf %3, %5 : vector<256x16xf32>
    %cst_6 = arith.constant 0.000000e+00 : f32
    %7 = vector.broadcast %cst_6 : f32 to vector<256x16xf32>
    %8 = arith.maximumf %6, %7 : vector<256x16xf32>
    %9 = arith.truncf %8 : vector<256x16xf32> to vector<256x16xbf16>
    %cst_7 = arith.constant 0.000000e+00 : bf16
    %10 = vector.broadcast %cst_7 : bf16 to vector<440x16xbf16>
    %c0_8 = arith.constant 0 : index
    %c0_9 = arith.constant 0 : index
    %11 = vector.load %arg10[%c0_8, %c0_9] : memref<440x16xbf16, #tpu.memory_space<vmem>>, vector<440x16xbf16>
    tpu.vector_store %arg10[%c0_8, %c0_9], %10 {strides = array<i32>} : memref<440x16xbf16, #tpu.memory_space<vmem>>, vector<440x16xbf16>,
    %12 = vector.extract_strided_slice %9 {offsets = [0, 0], sizes = [16, 16], strides = [1, 1]} : vector<256x16xbf16> to vector<16x16xbf16>
    %c32 = arith.constant 32 : index
    %c0_10 = arith.constant 0 : index
    %13 = vector.load %arg10[%c32, %c0_10] : memref<440x16xbf16, #tpu.memory_space<vmem>>, vector<16x16xbf16>
    tpu.vector_store %arg10[%c32, %c0_10], %12 {strides = array<i32>} : memref<440x16xbf16, #tpu.memory_space<vmem>>, vector<16x16xbf16>,
    %14 = vector.extract_strided_slice %9 {offsets = [16, 0], sizes = [16, 16], strides = [1, 1]} : vector<256x16xbf16> to vector<16x16xbf16>
    %c56 = arith.constant 56 : index
    %c0_11 = arith.constant 0 : index
    %15 = vector.load %arg10[%c56, %c0_11] : memref<440x16xbf16, #tpu.memory_space<vmem>>, vector<16x16xbf16>
    tpu.vector_store %arg10[%c56, %c0_11], %14 {strides = array<i32>} : memref<440x16xbf16, #tpu.memory_space<vmem>>, vector<16x16xbf16>,
    %16 = vector.extract_strided_slice %9 {offsets = [32, 0], sizes = [16, 16], strides = [1, 1]} : vector<256x16xbf16> to vector<16x16xbf16>
    %c80 = arith.constant 80 : index
    %c0_12 = arith.constant 0 : index
    %17 = vector.load %arg10[%c80, %c0_12] : memref<440x16xbf16, #tpu.memory_space<vmem>>, vector<16x16xbf16>
    tpu.vector_store %arg10[%c80, %c0_12], %16 {strides = array<i32>} : memref<440x16xbf16, #tpu.memory_space<vmem>>, vector<16x16xbf16>,
    %18 = vector.extract_strided_slice %9 {offsets = [48, 0], sizes = [16, 16], strides = [1, 1]} : vector<256x16xbf16> to vector<16x16xbf16>
    %c104 = arith.constant 104 : index
    %c0_13 = arith.constant 0 : index
    %19 = vector.load %arg10[%c104, %c0_13] : memref<440x16xbf16, #tpu.memory_space<vmem>>, vector<16x16xbf16>
    tpu.vector_store %arg10[%c104, %c0_13], %18 {strides = array<i32>} : memref<440x16xbf16, #tpu.memory_space<vmem>>, vector<16x16xbf16>,
    %20 = vector.extract_strided_slice %9 {offsets = [64, 0], sizes = [16, 16], strides = [1, 1]} : vector<256x16xbf16> to vector<16x16xbf16>
    %c128 = arith.constant 128 : index
    %c0_14 = arith.constant 0 : index
    %21 = vector.load %arg10[%c128, %c0_14] : memref<440x16xbf16, #tpu.memory_space<vmem>>, vector<16x16xbf16>
    tpu.vector_store %arg10[%c128, %c0_14], %20 {strides = array<i32>} : memref<440x16xbf16, #tpu.memory_space<vmem>>, vector<16x16xbf16>,
    %22 = vector.extract_strided_slice %9 {offsets = [80, 0], sizes = [16, 16], strides = [1, 1]} : vector<256x16xbf16> to vector<16x16xbf16>
    %c152 = arith.constant 152 : index
    %c0_15 = arith.constant 0 : index
    %23 = vector.load %arg10[%c152, %c0_15] : memref<440x16xbf16, #tpu.memory_space<vmem>>, vector<16x16xbf16>
    tpu.vector_store %arg10[%c152, %c0_15], %22 {strides = array<i32>} : memref<440x16xbf16, #tpu.memory_space<vmem>>, vector<16x16xbf16>,
    %24 = vector.extract_strided_slice %9 {offsets = [96, 0], sizes = [16, 16], strides = [1, 1]} : vector<256x16xbf16> to vector<16x16xbf16>
    %c176 = arith.constant 176 : index
    %c0_16 = arith.constant 0 : index
    %25 = vector.load %arg10[%c176, %c0_16] : memref<440x16xbf16, #tpu.memory_space<vmem>>, vector<16x16xbf16>
    tpu.vector_store %arg10[%c176, %c0_16], %24 {strides = array<i32>} : memref<440x16xbf16, #tpu.memory_space<vmem>>, vector<16x16xbf16>,
    %26 = vector.extract_strided_slice %9 {offsets = [112, 0], sizes = [16, 16], strides = [1, 1]} : vector<256x16xbf16> to vector<16x16xbf16>
    %c200 = arith.constant 200 : index
    %c0_17 = arith.constant 0 : index
    %27 = vector.load %arg10[%c200, %c0_17] : memref<440x16xbf16, #tpu.memory_space<vmem>>, vector<16x16xbf16>
    tpu.vector_store %arg10[%c200, %c0_17], %26 {strides = array<i32>} : memref<440x16xbf16, #tpu.memory_space<vmem>>, vector<16x16xbf16>,
    %28 = vector.extract_strided_slice %9 {offsets = [128, 0], sizes = [16, 16], strides = [1, 1]} : vector<256x16xbf16> to vector<16x16xbf16>
    %c224 = arith.constant 224 : index
    %c0_18 = arith.constant 0 : index
    %29 = vector.load %arg10[%c224, %c0_18] : memref<440x16xbf16, #tpu.memory_space<vmem>>, vector<16x16xbf16>
    tpu.vector_store %arg10[%c224, %c0_18], %28 {strides = array<i32>} : memref<440x16xbf16, #tpu.memory_space<vmem>>, vector<16x16xbf16>,
    %30 = vector.extract_strided_slice %9 {offsets = [144, 0], sizes = [16, 16], strides = [1, 1]} : vector<256x16xbf16> to vector<16x16xbf16>
    %c248 = arith.constant 248 : index
    %c0_19 = arith.constant 0 : index
    %31 = vector.load %arg10[%c248, %c0_19] : memref<440x16xbf16, #tpu.memory_space<vmem>>, vector<16x16xbf16>
    tpu.vector_store %arg10[%c248, %c0_19], %30 {strides = array<i32>} : memref<440x16xbf16, #tpu.memory_space<vmem>>, vector<16x16xbf16>,
    %32 = vector.extract_strided_slice %9 {offsets = [160, 0], sizes = [16, 16], strides = [1, 1]} : vector<256x16xbf16> to vector<16x16xbf16>
    %c272 = arith.constant 272 : index
    %c0_20 = arith.constant 0 : index
    %33 = vector.load %arg10[%c272, %c0_20] : memref<440x16xbf16, #tpu.memory_space<vmem>>, vector<16x16xbf16>
    tpu.vector_store %arg10[%c272, %c0_20], %32 {strides = array<i32>} : memref<440x16xbf16, #tpu.memory_space<vmem>>, vector<16x16xbf16>,
    %34 = vector.extract_strided_slice %9 {offsets = [176, 0], sizes = [16, 16], strides = [1, 1]} : vector<256x16xbf16> to vector<16x16xbf16>
    %c296 = arith.constant 296 : index
    %c0_21 = arith.constant 0 : index
    %35 = vector.load %arg10[%c296, %c0_21] : memref<440x16xbf16, #tpu.memory_space<vmem>>, vector<16x16xbf16>
    tpu.vector_store %arg10[%c296, %c0_21], %34 {strides = array<i32>} : memref<440x16xbf16, #tpu.memory_space<vmem>>, vector<16x16xbf16>,
    %36 = vector.extract_strided_slice %9 {offsets = [192, 0], sizes = [16, 16], strides = [1, 1]} : vector<256x16xbf16> to vector<16x16xbf16>
    %c320 = arith.constant 320 : index
    %c0_22 = arith.constant 0 : index
    %37 = vector.load %arg10[%c320, %c0_22] : memref<440x16xbf16, #tpu.memory_space<vmem>>, vector<16x16xbf16>
    tpu.vector_store %arg10[%c320, %c0_22], %36 {strides = array<i32>} : memref<440x16xbf16, #tpu.memory_space<vmem>>, vector<16x16xbf16>,
    %38 = vector.extract_strided_slice %9 {offsets = [208, 0], sizes = [16, 16], strides = [1, 1]} : vector<256x16xbf16> to vector<16x16xbf16>
    %c344 = arith.constant 344 : index
    %c0_23 = arith.constant 0 : index
    %39 = vector.load %arg10[%c344, %c0_23] : memref<440x16xbf16, #tpu.memory_space<vmem>>, vector<16x16xbf16>
    tpu.vector_store %arg10[%c344, %c0_23], %38 {strides = array<i32>} : memref<440x16xbf16, #tpu.memory_space<vmem>>, vector<16x16xbf16>,
    %40 = vector.extract_strided_slice %9 {offsets = [224, 0], sizes = [16, 16], strides = [1, 1]} : vector<256x16xbf16> to vector<16x16xbf16>
    %c368 = arith.constant 368 : index
    %c0_24 = arith.constant 0 : index
    %41 = vector.load %arg10[%c368, %c0_24] : memref<440x16xbf16, #tpu.memory_space<vmem>>, vector<16x16xbf16>
    tpu.vector_store %arg10[%c368, %c0_24], %40 {strides = array<i32>} : memref<440x16xbf16, #tpu.memory_space<vmem>>, vector<16x16xbf16>,
    %42 = vector.extract_strided_slice %9 {offsets = [240, 0], sizes = [16, 16], strides = [1, 1]} : vector<256x16xbf16> to vector<16x16xbf16>
    %c392 = arith.constant 392 : index
    %c0_25 = arith.constant 0 : index
    %43 = vector.load %arg10[%c392, %c0_25] : memref<440x16xbf16, #tpu.memory_space<vmem>>, vector<16x16xbf16>
    tpu.vector_store %arg10[%c392, %c0_25], %42 {strides = array<i32>} : memref<440x16xbf16, #tpu.memory_space<vmem>>, vector<16x16xbf16>,
    %c7 = arith.constant 7 : index
    %c0_26 = arith.constant 0 : index
    %44 = vector.load %arg10[%c7, %c0_26] : memref<440x16xbf16, #tpu.memory_space<vmem>>, vector<376x16xbf16>
    %c0_27 = arith.constant 0 : index
    %c0_28 = arith.constant 0 : index
    %45 = vector.load %arg11[%c0_27, %c0_28] : memref<376x144xbf16, #tpu.memory_space<vmem>>, vector<376x16xbf16>
    tpu.vector_store %arg11[%c0_27, %c0_28], %44 {strides = array<i32>} : memref<376x144xbf16, #tpu.memory_space<vmem>>, vector<376x16xbf16>,
    %c8 = arith.constant 8 : index
    %c0_29 = arith.constant 0 : index
    %46 = vector.load %arg10[%c8, %c0_29] : memref<440x16xbf16, #tpu.memory_space<vmem>>, vector<376x16xbf16>
    %c0_30 = arith.constant 0 : index
    %c16 = arith.constant 16 : index
    %47 = vector.load %arg11[%c0_30, %c16] : memref<376x144xbf16, #tpu.memory_space<vmem>>, vector<376x16xbf16>
    tpu.vector_store %arg11[%c0_30, %c16], %46 {strides = array<i32>} : memref<376x144xbf16, #tpu.memory_space<vmem>>, vector<376x16xbf16>,
    %c9 = arith.constant 9 : index
    %c0_31 = arith.constant 0 : index
    %48 = vector.load %arg10[%c9, %c0_31] : memref<440x16xbf16, #tpu.memory_space<vmem>>, vector<376x16xbf16>
    %c0_32 = arith.constant 0 : index
    %c32_33 = arith.constant 32 : index
    %49 = vector.load %arg11[%c0_32, %c32_33] : memref<376x144xbf16, #tpu.memory_space<vmem>>, vector<376x16xbf16>
    tpu.vector_store %arg11[%c0_32, %c32_33], %48 {strides = array<i32>} : memref<376x144xbf16, #tpu.memory_space<vmem>>, vector<376x16xbf16>,
    %c31 = arith.constant 31 : index
    %c0_34 = arith.constant 0 : index
    %50 = vector.load %arg10[%c31, %c0_34] : memref<440x16xbf16, #tpu.memory_space<vmem>>, vector<376x16xbf16>
    %c0_35 = arith.constant 0 : index
    %c48 = arith.constant 48 : index
    %51 = vector.load %arg11[%c0_35, %c48] : memref<376x144xbf16, #tpu.memory_space<vmem>>, vector<376x16xbf16>
    tpu.vector_store %arg11[%c0_35, %c48], %50 {strides = array<i32>} : memref<376x144xbf16, #tpu.memory_space<vmem>>, vector<376x16xbf16>,
    %c32_36 = arith.constant 32 : index
    %c0_37 = arith.constant 0 : index
    %52 = vector.load %arg10[%c32_36, %c0_37] : memref<440x16xbf16, #tpu.memory_space<vmem>>, vector<376x16xbf16>
    %c0_38 = arith.constant 0 : index
    %c64 = arith.constant 64 : index
    %53 = vector.load %arg11[%c0_38, %c64] : memref<376x144xbf16, #tpu.memory_space<vmem>>, vector<376x16xbf16>
    tpu.vector_store %arg11[%c0_38, %c64], %52 {strides = array<i32>} : memref<376x144xbf16, #tpu.memory_space<vmem>>, vector<376x16xbf16>,
    %c33 = arith.constant 33 : index
    %c0_39 = arith.constant 0 : index
    %54 = vector.load %arg10[%c33, %c0_39] : memref<440x16xbf16, #tpu.memory_space<vmem>>, vector<376x16xbf16>
    %c0_40 = arith.constant 0 : index
    %c80_41 = arith.constant 80 : index
    %55 = vector.load %arg11[%c0_40, %c80_41] : memref<376x144xbf16, #tpu.memory_space<vmem>>, vector<376x16xbf16>
    tpu.vector_store %arg11[%c0_40, %c80_41], %54 {strides = array<i32>} : memref<376x144xbf16, #tpu.memory_space<vmem>>, vector<376x16xbf16>,
    %c55 = arith.constant 55 : index
    %c0_42 = arith.constant 0 : index
    %56 = vector.load %arg10[%c55, %c0_42] : memref<440x16xbf16, #tpu.memory_space<vmem>>, vector<376x16xbf16>
    %c0_43 = arith.constant 0 : index
    %c96 = arith.constant 96 : index
    %57 = vector.load %arg11[%c0_43, %c96] : memref<376x144xbf16, #tpu.memory_space<vmem>>, vector<376x16xbf16>
    tpu.vector_store %arg11[%c0_43, %c96], %56 {strides = array<i32>} : memref<376x144xbf16, #tpu.memory_space<vmem>>, vector<376x16xbf16>,
    %c56_44 = arith.constant 56 : index
    %c0_45 = arith.constant 0 : index
    %58 = vector.load %arg10[%c56_44, %c0_45] : memref<440x16xbf16, #tpu.memory_space<vmem>>, vector<376x16xbf16>
    %c0_46 = arith.constant 0 : index
    %c112 = arith.constant 112 : index
    %59 = vector.load %arg11[%c0_46, %c112] : memref<376x144xbf16, #tpu.memory_space<vmem>>, vector<376x16xbf16>
    tpu.vector_store %arg11[%c0_46, %c112], %58 {strides = array<i32>} : memref<376x144xbf16, #tpu.memory_space<vmem>>, vector<376x16xbf16>,
    %c57 = arith.constant 57 : index
    %c0_47 = arith.constant 0 : index
    %60 = vector.load %arg10[%c57, %c0_47] : memref<440x16xbf16, #tpu.memory_space<vmem>>, vector<376x16xbf16>
    %c0_48 = arith.constant 0 : index
    %c128_49 = arith.constant 128 : index
    %61 = vector.load %arg11[%c0_48, %c128_49] : memref<376x144xbf16, #tpu.memory_space<vmem>>, vector<376x16xbf16>
    tpu.vector_store %arg11[%c0_48, %c128_49], %60 {strides = array<i32>} : memref<376x144xbf16, #tpu.memory_space<vmem>>, vector<376x16xbf16>,
    %c0_50 = arith.constant 0 : index
    %c0_51 = arith.constant 0 : index
    %62 = vector.load %arg11[%c0_50, %c0_51] : memref<376x144xbf16, #tpu.memory_space<vmem>>, vector<376x144xbf16>
    %c0_52 = arith.constant 0 : index
    %c0_53 = arith.constant 0 : index
    %63 = vector.load %arg5[%c0_52, %c0_53] : memref<144x16xbf16, #tpu.memory_space<vmem>>, vector<144x16xbf16>
    %cst_54 = arith.constant dense<0.000000e+00> : vector<376x16xf32>
    %64 = tpu.matmul %62, %63, %cst_54 {dimension_numbers = #tpu.dot_dimension_numbers<[1], [0], [0], [1], [0, 0, 1, 1], [], []>} : vector<376x144xbf16>, vector<144x16xbf16>, vector<376x16xf32> -> vector<376x16xf32>
    %c0_55 = arith.constant 0 : index
    %c0_56 = arith.constant 0 : index
    %65 = vector.load %arg6[%c0_55, %c0_56] : memref<1x16xf32, #tpu.memory_space<vmem>>, vector<1x16xf32>
    %66 = vector.broadcast %65 : vector<1x16xf32> to vector<376x16xf32>
    %67 = arith.addf %64, %66 : vector<376x16xf32>
    %cst_57 = arith.constant 0.000000e+00 : f32
    %68 = vector.broadcast %cst_57 : f32 to vector<376x16xf32>
    %69 = arith.maximumf %67, %68 : vector<376x16xf32>
    %70 = arith.truncf %69 : vector<376x16xf32> to vector<376x16xbf16>
    %71 = vector.extract_strided_slice %70 {offsets = [0, 0], sizes = [16, 16], strides = [1, 1]} : vector<376x16xbf16> to vector<16x16xbf16>
    %c0_58 = arith.constant 0 : index
    %c0_59 = arith.constant 0 : index
    %72 = vector.load %arg12[%c0_58, %c0_59] : memref<256x16xbf16, #tpu.memory_space<vmem>>, vector<16x16xbf16>
    tpu.vector_store %arg12[%c0_58, %c0_59], %71 {strides = array<i32>} : memref<256x16xbf16, #tpu.memory_space<vmem>>, vector<16x16xbf16>,
    %73 = vector.extract_strided_slice %70 {offsets = [24, 0], sizes = [16, 16], strides = [1, 1]} : vector<376x16xbf16> to vector<16x16xbf16>
    %c16_60 = arith.constant 16 : index
    %c0_61 = arith.constant 0 : index
    %74 = vector.load %arg12[%c16_60, %c0_61] : memref<256x16xbf16, #tpu.memory_space<vmem>>, vector<16x16xbf16>
    tpu.vector_store %arg12[%c16_60, %c0_61], %73 {strides = array<i32>} : memref<256x16xbf16, #tpu.memory_space<vmem>>, vector<16x16xbf16>,
    %75 = vector.extract_strided_slice %70 {offsets = [48, 0], sizes = [16, 16], strides = [1, 1]} : vector<376x16xbf16> to vector<16x16xbf16>
    %c32_62 = arith.constant 32 : index
    %c0_63 = arith.constant 0 : index
    %76 = vector.load %arg12[%c32_62, %c0_63] : memref<256x16xbf16, #tpu.memory_space<vmem>>, vector<16x16xbf16>
    tpu.vector_store %arg12[%c32_62, %c0_63], %75 {strides = array<i32>} : memref<256x16xbf16, #tpu.memory_space<vmem>>, vector<16x16xbf16>,
    %77 = vector.extract_strided_slice %70 {offsets = [72, 0], sizes = [16, 16], strides = [1, 1]} : vector<376x16xbf16> to vector<16x16xbf16>
    %c48_64 = arith.constant 48 : index
    %c0_65 = arith.constant 0 : index
    %78 = vector.load %arg12[%c48_64, %c0_65] : memref<256x16xbf16, #tpu.memory_space<vmem>>, vector<16x16xbf16>
    tpu.vector_store %arg12[%c48_64, %c0_65], %77 {strides = array<i32>} : memref<256x16xbf16, #tpu.memory_space<vmem>>, vector<16x16xbf16>,
    %79 = vector.extract_strided_slice %70 {offsets = [96, 0], sizes = [16, 16], strides = [1, 1]} : vector<376x16xbf16> to vector<16x16xbf16>
    %c64_66 = arith.constant 64 : index
    %c0_67 = arith.constant 0 : index
    %80 = vector.load %arg12[%c64_66, %c0_67] : memref<256x16xbf16, #tpu.memory_space<vmem>>, vector<16x16xbf16>
    tpu.vector_store %arg12[%c64_66, %c0_67], %79 {strides = array<i32>} : memref<256x16xbf16, #tpu.memory_space<vmem>>, vector<16x16xbf16>,
    %81 = vector.extract_strided_slice %70 {offsets = [120, 0], sizes = [16, 16], strides = [1, 1]} : vector<376x16xbf16> to vector<16x16xbf16>
    %c80_68 = arith.constant 80 : index
    %c0_69 = arith.constant 0 : index
    %82 = vector.load %arg12[%c80_68, %c0_69] : memref<256x16xbf16, #tpu.memory_space<vmem>>, vector<16x16xbf16>
    tpu.vector_store %arg12[%c80_68, %c0_69], %81 {strides = array<i32>} : memref<256x16xbf16, #tpu.memory_space<vmem>>, vector<16x16xbf16>,
    %83 = vector.extract_strided_slice %70 {offsets = [144, 0], sizes = [16, 16], strides = [1, 1]} : vector<376x16xbf16> to vector<16x16xbf16>
    %c96_70 = arith.constant 96 : index
    %c0_71 = arith.constant 0 : index
    %84 = vector.load %arg12[%c96_70, %c0_71] : memref<256x16xbf16, #tpu.memory_space<vmem>>, vector<16x16xbf16>
    tpu.vector_store %arg12[%c96_70, %c0_71], %83 {strides = array<i32>} : memref<256x16xbf16, #tpu.memory_space<vmem>>, vector<16x16xbf16>,
    %85 = vector.extract_strided_slice %70 {offsets = [168, 0], sizes = [16, 16], strides = [1, 1]} : vector<376x16xbf16> to vector<16x16xbf16>
    %c112_72 = arith.constant 112 : index
    %c0_73 = arith.constant 0 : index
    %86 = vector.load %arg12[%c112_72, %c0_73] : memref<256x16xbf16, #tpu.memory_space<vmem>>, vector<16x16xbf16>
    tpu.vector_store %arg12[%c112_72, %c0_73], %85 {strides = array<i32>} : memref<256x16xbf16, #tpu.memory_space<vmem>>, vector<16x16xbf16>,
    %87 = vector.extract_strided_slice %70 {offsets = [192, 0], sizes = [16, 16], strides = [1, 1]} : vector<376x16xbf16> to vector<16x16xbf16>
    %c128_74 = arith.constant 128 : index
    %c0_75 = arith.constant 0 : index
    %88 = vector.load %arg12[%c128_74, %c0_75] : memref<256x16xbf16, #tpu.memory_space<vmem>>, vector<16x16xbf16>
    tpu.vector_store %arg12[%c128_74, %c0_75], %87 {strides = array<i32>} : memref<256x16xbf16, #tpu.memory_space<vmem>>, vector<16x16xbf16>,
    %89 = vector.extract_strided_slice %70 {offsets = [216, 0], sizes = [16, 16], strides = [1, 1]} : vector<376x16xbf16> to vector<16x16xbf16>
    %c144 = arith.constant 144 : index
    %c0_76 = arith.constant 0 : index
    %90 = vector.load %arg12[%c144, %c0_76] : memref<256x16xbf16, #tpu.memory_space<vmem>>, vector<16x16xbf16>
    tpu.vector_store %arg12[%c144, %c0_76], %89 {strides = array<i32>} : memref<256x16xbf16, #tpu.memory_space<vmem>>, vector<16x16xbf16>,
    %91 = vector.extract_strided_slice %70 {offsets = [240, 0], sizes = [16, 16], strides = [1, 1]} : vector<376x16xbf16> to vector<16x16xbf16>
    %c160 = arith.constant 160 : index
    %c0_77 = arith.constant 0 : index
    %92 = vector.load %arg12[%c160, %c0_77] : memref<256x16xbf16, #tpu.memory_space<vmem>>, vector<16x16xbf16>
    tpu.vector_store %arg12[%c160, %c0_77], %91 {strides = array<i32>} : memref<256x16xbf16, #tpu.memory_space<vmem>>, vector<16x16xbf16>,
    %93 = vector.extract_strided_slice %70 {offsets = [264, 0], sizes = [16, 16], strides = [1, 1]} : vector<376x16xbf16> to vector<16x16xbf16>
    %c176_78 = arith.constant 176 : index
    %c0_79 = arith.constant 0 : index
    %94 = vector.load %arg12[%c176_78, %c0_79] : memref<256x16xbf16, #tpu.memory_space<vmem>>, vector<16x16xbf16>
    tpu.vector_store %arg12[%c176_78, %c0_79], %93 {strides = array<i32>} : memref<256x16xbf16, #tpu.memory_space<vmem>>, vector<16x16xbf16>,
    %95 = vector.extract_strided_slice %70 {offsets = [288, 0], sizes = [16, 16], strides = [1, 1]} : vector<376x16xbf16> to vector<16x16xbf16>
    %c192 = arith.constant 192 : index
    %c0_80 = arith.constant 0 : index
    %96 = vector.load %arg12[%c192, %c0_80] : memref<256x16xbf16, #tpu.memory_space<vmem>>, vector<16x16xbf16>
    tpu.vector_store %arg12[%c192, %c0_80], %95 {strides = array<i32>} : memref<256x16xbf16, #tpu.memory_space<vmem>>, vector<16x16xbf16>,
    %97 = vector.extract_strided_slice %70 {offsets = [312, 0], sizes = [16, 16], strides = [1, 1]} : vector<376x16xbf16> to vector<16x16xbf16>
    %c208 = arith.constant 208 : index
    %c0_81 = arith.constant 0 : index
    %98 = vector.load %arg12[%c208, %c0_81] : memref<256x16xbf16, #tpu.memory_space<vmem>>, vector<16x16xbf16>
    tpu.vector_store %arg12[%c208, %c0_81], %97 {strides = array<i32>} : memref<256x16xbf16, #tpu.memory_space<vmem>>, vector<16x16xbf16>,
    %99 = vector.extract_strided_slice %70 {offsets = [336, 0], sizes = [16, 16], strides = [1, 1]} : vector<376x16xbf16> to vector<16x16xbf16>
    %c224_82 = arith.constant 224 : index
    %c0_83 = arith.constant 0 : index
    %100 = vector.load %arg12[%c224_82, %c0_83] : memref<256x16xbf16, #tpu.memory_space<vmem>>, vector<16x16xbf16>
    tpu.vector_store %arg12[%c224_82, %c0_83], %99 {strides = array<i32>} : memref<256x16xbf16, #tpu.memory_space<vmem>>, vector<16x16xbf16>,
    %101 = vector.extract_strided_slice %70 {offsets = [360, 0], sizes = [16, 16], strides = [1, 1]} : vector<376x16xbf16> to vector<16x16xbf16>
    %c240 = arith.constant 240 : index
    %c0_84 = arith.constant 0 : index
    %102 = vector.load %arg12[%c240, %c0_84] : memref<256x16xbf16, #tpu.memory_space<vmem>>, vector<16x16xbf16>
    tpu.vector_store %arg12[%c240, %c0_84], %101 {strides = array<i32>} : memref<256x16xbf16, #tpu.memory_space<vmem>>, vector<16x16xbf16>,
    %c0_85 = arith.constant 0 : index
    %c0_86 = arith.constant 0 : index
    %103 = vector.load %arg7[%c0_85, %c0_86] : memref<64x16xbf16, #tpu.memory_space<vmem>>, vector<64x16xbf16>
    %c0_87 = arith.constant 0 : index
    %c0_88 = arith.constant 0 : index
    %104 = vector.load %arg12[%c0_87, %c0_88] : memref<256x16xbf16, #tpu.memory_space<vmem>>, vector<256x16xbf16>
    %cst_89 = arith.constant dense<0.000000e+00> : vector<64x256xf32>
    %105 = tpu.matmul %103, %104, %cst_89 {dimension_numbers = #tpu.dot_dimension_numbers<[1], [1], [0], [0], [0, 0, 1, 0], [], []>} : vector<64x16xbf16>, vector<256x16xbf16>, vector<64x256xf32> -> vector<64x256xf32>
    %c0_90 = arith.constant 0 : index
    %c0_91 = arith.constant 0 : index
    %106 = vector.load %arg8[%c0_90, %c0_91] : memref<64x1xf32, #tpu.memory_space<vmem>>, vector<64x1xf32>
    %107 = vector.broadcast %106 : vector<64x1xf32> to vector<64x256xf32>
    %108 = arith.addf %105, %107 : vector<64x256xf32>
    %c0_92 = arith.constant 0 : index
    %c0_93 = arith.constant 0 : index
    %c0_94 = arith.constant 0 : index
    %109 = vector.load %arg2[%c0_92, %c0_93, %c0_94] : memref<1x64x256xf32, #tpu.memory_space<vmem>>, vector<1x64x256xf32>
    %110 = vector.shape_cast %109 : vector<1x64x256xf32> to vector<64x256xf32>
    %111 = arith.addf %108, %110 : vector<64x256xf32>
    %cst_95 = arith.constant 0.000000e+00 : f32
    %112 = vector.broadcast %cst_95 : f32 to vector<64x256xf32>
    %113 = arith.maximumf %111, %112 : vector<64x256xf32>
    %c0_96 = arith.constant 0 : index
    %c0_97 = arith.constant 0 : index
    %c0_98 = arith.constant 0 : index
    %114 = vector.load %arg9[%c0_96, %c0_97, %c0_98] : memref<1x64x256xf32, #tpu.memory_space<vmem>>, vector<1x64x256xf32>
    %115 = vector.shape_cast %114 : vector<1x64x256xf32> to vector<64x256xf32>
    %116 = vector.shape_cast %113 : vector<64x256xf32> to vector<1x64x256xf32>
    tpu.vector_store %arg9[%c0_96, %c0_97, %c0_98], %116 {strides = array<i32>} : memref<1x64x256xf32, #tpu.memory_space<vmem>>, vector<1x64x256xf32>,
    return
  }
  func.func @transform_0(%arg0: i32) -> (i32, i32, i32) {
    %c0_i32 = arith.constant 0 : i32
    %c0_i32_0 = arith.constant 0 : i32
    %c0_i32_1 = arith.constant 0 : i32
    return %arg0, %c0_i32, %c0_i32_0 : i32, i32, i32
  }
  func.func @transform_1(%arg0: i32) -> (i32, i32, i32) {
    %c0_i32 = arith.constant 0 : i32
    %c0_i32_0 = arith.constant 0 : i32
    %c0_i32_1 = arith.constant 0 : i32
    return %arg0, %c0_i32, %c0_i32_0 : i32, i32, i32
  }
  func.func @transform_2(%arg0: i32) -> (i32, i32) {
    %c0_i32 = arith.constant 0 : i32
    %c0_i32_0 = arith.constant 0 : i32
    %c0_i32_1 = arith.constant 0 : i32
    return %c0_i32, %c0_i32_0 : i32, i32
  }
  func.func @transform_3(%arg0: i32) -> (i32, i32) {
    %c0_i32 = arith.constant 0 : i32
    %c0_i32_0 = arith.constant 0 : i32
    %c0_i32_1 = arith.constant 0 : i32
    return %c0_i32, %c0_i32_0 : i32, i32
  }
  func.func @transform_4(%arg0: i32) -> (i32, i32) {
    %c0_i32 = arith.constant 0 : i32
    %c0_i32_0 = arith.constant 0 : i32
    %c0_i32_1 = arith.constant 0 : i32
    return %c0_i32, %c0_i32_0 : i32, i32
  }
  func.func @transform_5(%arg0: i32) -> (i32, i32) {
    %c0_i32 = arith.constant 0 : i32
    %c0_i32_0 = arith.constant 0 : i32
    %c0_i32_1 = arith.constant 0 : i32
    return %c0_i32, %c0_i32_0 : i32, i32
  }
  func.func @transform_6(%arg0: i32) -> (i32, i32) {
    %c0_i32 = arith.constant 0 : i32
    %c0_i32_0 = arith.constant 0 : i32
    %c0_i32_1 = arith.constant 0 : i32
    return %c0_i32, %c0_i32_0 : i32, i32
  }
  func.func @transform_7(%arg0: i32) -> (i32, i32) {
    %c0_i32 = arith.constant 0 : i32
    %c0_i32_0 = arith.constant 0 : i32
    %c0_i32_1 = arith.constant 0 : i32
    return %c0_i32, %c0_i32_0 : i32, i32
  }
  func.func @transform_8(%arg0: i32) -> (i32, i32, i32) {
    %c0_i32 = arith.constant 0 : i32
    %c0_i32_0 = arith.constant 0 : i32
    %c0_i32_1 = arith.constant 0 : i32
    return %arg0, %c0_i32, %c0_i32_0 : i32, i32, i32
  }
}

</mosaic_0001>

<llo_original>
// kernel: bottleneck_forward.1
$region0: #{bottleneck_forward.1}
  #allocation0 [shape = 'u32[]', space=smem, size = 0x4, offset = 0x4, fixed_abs, tag = 'smem constant byte address 0x4 - core index']
  #allocation1 [shape = 'u32[144,128]{1,0:T(1,128)}', space=vmem, size = 0x12000, scoped, tag = 'internal scratch']
  #allocation2 [shape = 'bf16[440,16]{1,0:T(8,128)(2,1)}', space=vmem, size = 0x1b800, scoped, tag = 'scratch operand']
  #allocation3 [shape = 'bf16[376,144]{1,0:T(8,128)(2,1)}', space=vmem, size = 0x2f000, scoped, tag = 'scratch operand']
  #allocation4 [shape = 'bf16[256,16]{1,0:T(8,128)(2,1)}', space=vmem, size = 0x10000, scoped, tag = 'scratch operand']
  %s0 = inlined_call_operand.vmem [shape: bf16[2,256,64], index: 0, kind: input, shape index: {}]
  %s1 = inlined_call_operand.vmem [shape: f32[2,64,256], index: 1, kind: input, shape index: {}]
  %s2 = inlined_call_operand.vmem [shape: bf16[64,16], index: 2, kind: input, shape index: {}]
  %s3 = inlined_call_operand.vmem [shape: f32[1,16], index: 3, kind: input, shape index: {}]
  %s4 = inlined_call_operand.vmem [shape: bf16[144,16], index: 4, kind: input, shape index: {}]
  %s5 = inlined_call_operand.vmem [shape: f32[1,16], index: 5, kind: input, shape index: {}]
  %s6 = inlined_call_operand.vmem [shape: bf16[64,16], index: 6, kind: input, shape index: {}]
  %s7 = inlined_call_operand.vmem [shape: f32[64,1], index: 7, kind: input, shape index: {}]
  %s8 = inlined_call_operand.vmem [shape: f32[2,64,256], index: 8, kind: output, shape index: {}]
  %s9 = sld [smem:[#allocation0]]
  $region65: #{bottleneck_forward.1} parent=0
    _
  %s11 = ssub.s32 1, %s9
  %s12 = scalar_select 0, %s11, %s9
  loop: start=0, step=1, limit=4
  $region2: #{bottleneck_forward.1} parent=0 // loop_pre_header
    _
  $region3: #{bottleneck_forward.1} parent=0 // loop_header
    %s14 = sphi 0, %s18
    %p15 = scmp.ge.s32.totalorder %s14, 4
    %s24 = sphi 0, %s26
    %s27 = sphi 0, %s24
    %s28 = sphi 0, %s27
    %s44 = sphi 0, %s28
    %s50 = sphi 0, %s52
    %s53 = sphi 0, %s50
    %s54 = sphi 0, %s53
    %s70 = sphi 0, %s54
    %s74 = sphi 0, %s74
    %s76 = sphi 0, %s74
    %s77 = sphi 0, %s76
    %s91 = sphi 0, %s77
    %s95 = sphi 0, %s95
    %s97 = sphi 0, %s95
    %s98 = sphi 0, %s97
    %s112 = sphi 0, %s98
    %s116 = sphi 0, %s116
    %s118 = sphi 0, %s116
    %s119 = sphi 0, %s118
    %s133 = sphi 0, %s119
    %s137 = sphi 0, %s137
    %s139 = sphi 0, %s137
    %s140 = sphi 0, %s139
    %s154 = sphi 0, %s140
    %s158 = sphi 0, %s158
    %s160 = sphi 0, %s158
    %s161 = sphi 0, %s160
    %s175 = sphi 0, %s161
    %s179 = sphi 0, %s179
    %s181 = sphi 0, %s179
    %s182 = sphi 0, %s181
    %s196 = sphi 0, %s182
    %s202 = sphi 0, %s204
    %s205 = sphi 0, %s202
    %s206 = sphi 0, %s205
    %s222 = sphi 0, %s206
  $region4: #{bottleneck_forward.1} parent=0 // loop_header_branch
    %17 = sbr.rel (%p15) target = $region8
  $region5: #{bottleneck_forward.1} parent=0 // loop_body
    %s19 = ssub.s32 %s14, 1
    %s20 = ssub.s32 %s14, 2
    %s21 = sadd.s32 %s14, 1
    %s22 = ssub.s32 %s14, %s21
    %p23 = scmp.eq.s32.totalorder %s22, 0
    %s25 = sadd.s32 %s24, 1
    %s26 = scalar_select %p23, %s24, %s25
    %p29 = pneg %p23
    %p30 = scmp.eq.s32.totalorder %s14, 1
    %p31 = por %p29, %p30
    %p32 = scmp.ne.s32.totalorder %s24, %s27
    %p33 = scmp.eq.s32.totalorder %s14, 0
    %p34 = por %p32, %p33
    %p35 = scmp.ne.s32.totalorder %s24, %s27
    %p36 = scmp.eq.s32.totalorder %s19, 1
    %p37 = por %p35, %p36
    %p38 = scmp.ne.s32.totalorder %s27, %s28
    %p39 = scmp.eq.s32.totalorder %s19, 0
    %p40 = por %p38, %p39
    %p41 = scmp.ne.s32.totalorder %s27, %s28
    %p42 = scmp.eq.s32.totalorder %s20, 1
    %p43 = por %p41, %p42
    %p45 = scmp.ne.s32.totalorder %s28, %s44
    %p46 = scmp.eq.s32.totalorder %s20, 0
    %p47 = por %p45, %p46
    %s48 = ssub.s32 %s14, %s21
    %p49 = scmp.eq.s32.totalorder %s48, 0
    %s51 = sadd.s32 %s50, 1
    %s52 = scalar_select %p49, %s50, %s51
    %p55 = pneg %p49
    %p56 = scmp.eq.s32.totalorder %s14, 1
    %p57 = por %p55, %p56
    %p58 = scmp.ne.s32.totalorder %s50, %s53
    %p59 = scmp.eq.s32.totalorder %s14, 0
    %p60 = por %p58, %p59
    %p61 = scmp.ne.s32.totalorder %s50, %s53
    %p62 = scmp.eq.s32.totalorder %s19, 1
    %p63 = por %p61, %p62
    %p64 = scmp.ne.s32.totalorder %s53, %s54
    %p65 = scmp.eq.s32.totalorder %s19, 0
    %p66 = por %p64, %p65
    %p67 = scmp.ne.s32.totalorder %s53, %s54
    %p68 = scmp.eq.s32.totalorder %s20, 1
    %p69 = por %p67, %p68
    %p71 = scmp.ne.s32.totalorder %s54, %s70
    %p72 = scmp.eq.s32.totalorder %s20, 0
    %p73 = por %p71, %p72
    %s75 = sadd.s32 %s74, 1
    %p78 = scmp.eq.s32.totalorder %s14, 1
    %p79 = scmp.ne.s32.totalorder %s74, %s76
    %p80 = scmp.eq.s32.totalorder %s14, 0
    %p81 = por %p79, %p80
    %p82 = scmp.ne.s32.totalorder %s74, %s76
    %p83 = scmp.eq.s32.totalorder %s19, 1
    %p84 = por %p82, %p83
    %p85 = scmp.ne.s32.totalorder %s76, %s77
    %p86 = scmp.eq.s32.totalorder %s19, 0
    %p87 = por %p85, %p86
    %p88 = scmp.ne.s32.totalorder %s76, %s77
    %p89 = scmp.eq.s32.totalorder %s20, 1
    %p90 = por %p88, %p89
    %p92 = scmp.ne.s32.totalorder %s77, %s91
    %p93 = scmp.eq.s32.totalorder %s20, 0
    %p94 = por %p92, %p93
    %s96 = sadd.s32 %s95, 1
    %p99 = scmp.eq.s32.totalorder %s14, 1
    %p100 = scmp.ne.s32.totalorder %s95, %s97
    %p101 = scmp.eq.s32.totalorder %s14, 0
    %p102 = por %p100, %p101
    %p103 = scmp.ne.s32.totalorder %s95, %s97
    %p104 = scmp.eq.s32.totalorder %s19, 1
    %p105 = por %p103, %p104
    %p106 = scmp.ne.s32.totalorder %s97, %s98
    %p107 = scmp.eq.s32.totalorder %s19, 0
    %p108 = por %p106, %p107
    %p109 = scmp.ne.s32.totalorder %s97, %s98
    %p110 = scmp.eq.s32.totalorder %s20, 1
    %p111 = por %p109, %p110
    %p113 = scmp.ne.s32.totalorder %s98, %s112
    %p114 = scmp.eq.s32.totalorder %s20, 0
    %p115 = por %p113, %p114
    %s117 = sadd.s32 %s116, 1
    %p120 = scmp.eq.s32.totalorder %s14, 1
    %p121 = scmp.ne.s32.totalorder %s116, %s118
    %p122 = scmp.eq.s32.totalorder %s14, 0
    %p123 = por %p121, %p122
    %p124 = scmp.ne.s32.totalorder %s116, %s118
    %p125 = scmp.eq.s32.totalorder %s19, 1
    %p126 = por %p124, %p125
    %p127 = scmp.ne.s32.totalorder %s118, %s119
    %p128 = scmp.eq.s32.totalorder %s19, 0
    %p129 = por %p127, %p128
    %p130 = scmp.ne.s32.totalorder %s118, %s119
    %p131 = scmp.eq.s32.totalorder %s20, 1
    %p132 = por %p130, %p131
    %p134 = scmp.ne.s32.totalorder %s119, %s133
    %p135 = scmp.eq.s32.totalorder %s20, 0
    %p136 = por %p134, %p135
    %s138 = sadd.s32 %s137, 1
    %p141 = scmp.eq.s32.totalorder %s14, 1
    %p142 = scmp.ne.s32.totalorder %s137, %s139
    %p143 = scmp.eq.s32.totalorder %s14, 0
    %p144 = por %p142, %p143
    %p145 = scmp.ne.s32.totalorder %s137, %s139
    %p146 = scmp.eq.s32.totalorder %s19, 1
    %p147 = por %p145, %p146
    %p148 = scmp.ne.s32.totalorder %s139, %s140
    %p149 = scmp.eq.s32.totalorder %s19, 0
    %p150 = por %p148, %p149
    %p151 = scmp.ne.s32.totalorder %s139, %s140
    %p152 = scmp.eq.s32.totalorder %s20, 1
    %p153 = por %p151, %p152
    %p155 = scmp.ne.s32.totalorder %s140, %s154
    %p156 = scmp.eq.s32.totalorder %s20, 0
    %p157 = por %p155, %p156
    %s159 = sadd.s32 %s158, 1
    %p162 = scmp.eq.s32.totalorder %s14, 1
    %p163 = scmp.ne.s32.totalorder %s158, %s160
    %p164 = scmp.eq.s32.totalorder %s14, 0
    %p165 = por %p163, %p164
    %p166 = scmp.ne.s32.totalorder %s158, %s160
    %p167 = scmp.eq.s32.totalorder %s19, 1
    %p168 = por %p166, %p167
    %p169 = scmp.ne.s32.totalorder %s160, %s161
    %p170 = scmp.eq.s32.totalorder %s19, 0
    %p171 = por %p169, %p170
    %p172 = scmp.ne.s32.totalorder %s160, %s161
    %p173 = scmp.eq.s32.totalorder %s20, 1
    %p174 = por %p172, %p173
    %p176 = scmp.ne.s32.totalorder %s161, %s175
    %p177 = scmp.eq.s32.totalorder %s20, 0
    %p178 = por %p176, %p177
    %s180 = sadd.s32 %s179, 1
    %p183 = scmp.eq.s32.totalorder %s14, 1
    %p184 = scmp.ne.s32.totalorder %s179, %s181
    %p185 = scmp.eq.s32.totalorder %s14, 0
    %p186 = por %p184, %p185
    %p187 = scmp.ne.s32.totalorder %s179, %s181
    %p188 = scmp.eq.s32.totalorder %s19, 1
    %p189 = por %p187, %p188
    %p190 = scmp.ne.s32.totalorder %s181, %s182
    %p191 = scmp.eq.s32.totalorder %s19, 0
    %p192 = por %p190, %p191
    %p193 = scmp.ne.s32.totalorder %s181, %s182
    %p194 = scmp.eq.s32.totalorder %s20, 1
    %p195 = por %p193, %p194
    %p197 = scmp.ne.s32.totalorder %s182, %s196
    %p198 = scmp.eq.s32.totalorder %s20, 0
    %p199 = por %p197, %p198
    %s200 = ssub.s32 %s14, %s21
    %p201 = scmp.eq.s32.totalorder %s200, 0
    %s203 = sadd.s32 %s202, 1
    %s204 = scalar_select %p201, %s202, %s203
    %p207 = pneg %p201
    %p208 = scmp.eq.s32.totalorder %s14, 1
    %p209 = por %p207, %p208
    %p210 = scmp.ne.s32.totalorder %s202, %s205
    %p211 = scmp.eq.s32.totalorder %s14, 0
    %p212 = por %p210, %p211
    %p213 = scmp.ne.s32.totalorder %s202, %s205
    %p214 = scmp.eq.s32.totalorder %s19, 1
    %p215 = por %p213, %p214
    %p216 = scmp.ne.s32.totalorder %s205, %s206
    %p217 = scmp.eq.s32.totalorder %s19, 0
    %p218 = por %p216, %p217
    %p219 = scmp.ne.s32.totalorder %s205, %s206
    %p220 = scmp.eq.s32.totalorder %s20, 1
    %p221 = por %p219, %p220
    %p223 = scmp.ne.s32.totalorder %s206, %s222
    %p224 = scmp.eq.s32.totalorder %s20, 0
    %p225 = por %p223, %p224
    %p226 = scmp.le.s32.totalorder 1, %s14
    %p227 = scmp.lt.s32.totalorder %s14, 3
    %p228 = pnand %p226, %p227
    %p229 = pneg %p228
    // Predicated region
    $region9: #{bottleneck_forward.1} parent=5 // pred_check
      _
    $region10: #{bottleneck_forward.1} parent=5 // pred_check_branch
      %231 = sbr.rel (%p228) target = $region12
    $region11: #{bottleneck_forward.1} parent=5 // pred_region
      %s232 = ssub.s32 %s14, 1
      // Predicated region
      $region13: #{bottleneck_forward.1} parent=11 // pred_check
        %p233 = pneg %p87
      $region14: #{bottleneck_forward.1} parent=11 // pred_check_branch
        %235 = sbr.rel (%p233) target = $region16
      $region15: #{bottleneck_forward.1} parent=11 // pred_region
        _
      $region16: #{bottleneck_forward.1} parent=11 // pred_fallthru
        _
      // Predicated region
      $region17: #{bottleneck_forward.1} parent=11 // pred_check
        %p236 = pneg %p108
      $region18: #{bottleneck_forward.1} parent=11 // pred_check_branch
        %238 = sbr.rel (%p236) target = $region20
      $region19: #{bottleneck_forward.1} parent=11 // pred_region
        _
      $region20: #{bottleneck_forward.1} parent=11 // pred_fallthru
        _
      // Predicated region
      $region21: #{bottleneck_forward.1} parent=11 // pred_check
        %p239 = pneg %p129
      $region22: #{bottleneck_forward.1} parent=11 // pred_check_branch
        %241 = sbr.rel (%p239) target = $region24
      $region23: #{bottleneck_forward.1} parent=11 // pred_region
        _
      $region24: #{bottleneck_forward.1} parent=11 // pred_fallthru
        _
      // Predicated region
      $region25: #{bottleneck_forward.1} parent=11 // pred_check
        %p242 = pneg %p150
      $region26: #{bottleneck_forward.1} parent=11 // pred_check_branch
        %244 = sbr.rel (%p242) target = $region28
      $region27: #{bottleneck_forward.1} parent=11 // pred_region
        _
      $region28: #{bottleneck_forward.1} parent=11 // pred_fallthru
        _
      // Predicated region
      $region29: #{bottleneck_forward.1} parent=11 // pred_check
        %p245 = pneg %p171
      $region30: #{bottleneck_forward.1} parent=11 // pred_check_branch
        %247 = sbr.rel (%p245) target = $region32
      $region31: #{bottleneck_forward.1} parent=11 // pred_region
        _
      $region32: #{bottleneck_forward.1} parent=11 // pred_fallthru
        _
      // Predicated region
      $region33: #{bottleneck_forward.1} parent=11 // pred_check
        %p248 = pneg %p192
      $region34: #{bottleneck_forward.1} parent=11 // pred_check_branch
        %250 = sbr.rel (%p248) target = $region36
      $region35: #{bottleneck_forward.1} parent=11 // pred_region
        _
      $region36: #{bottleneck_forward.1} parent=11 // pred_fallthru
        _
    $region12: #{bottleneck_forward.1} parent=5 // pred_fallthru
      _
    %p251 = scmp.lt.s32.totalorder %s14, 2
    // Predicated region
    $region37: #{bottleneck_forward.1} parent=5 // pred_check
      %p252 = pneg %p251
    $region38: #{bottleneck_forward.1} parent=5 // pred_check_branch
      %254 = sbr.rel (%p252) target = $region40
    $region39: #{bottleneck_forward.1} parent=5 // pred_region
      // Predicated region
      $region41: #{bottleneck_forward.1} parent=39 // pred_check
        %p255 = pneg %p34
      $region42: #{bottleneck_forward.1} parent=39 // pred_check_branch
        %257 = sbr.rel (%p255) target = $region44
      $region43: #{bottleneck_forward.1} parent=39 // pred_region
        %p258 = scmp.lt.s32.totalorder %s14, 1
        %s259 = scalar_select %p258, %s14, 1
        %s260 = smul.addr %s259, 32
        %s261 = smul.addr %s260, 4
        %s262 = scalar_lea.vmem %s0, %s261
      $region44: #{bottleneck_forward.1} parent=39 // pred_fallthru
        _
      // Predicated region
      $region45: #{bottleneck_forward.1} parent=39 // pred_check
        %p263 = pneg %p60
      $region46: #{bottleneck_forward.1} parent=39 // pred_check_branch
        %265 = sbr.rel (%p263) target = $region48
      $region47: #{bottleneck_forward.1} parent=39 // pred_region
        %p266 = scmp.lt.s32.totalorder %s14, 1
        %s267 = scalar_select %p266, %s14, 1
        %s268 = smul.addr %s267, 16
        %s269 = smul.addr %s268, 8
        %s270 = scalar_lea.vmem %s1, %s269
      $region48: #{bottleneck_forward.1} parent=39 // pred_fallthru
        _
    $region40: #{bottleneck_forward.1} parent=5 // pred_fallthru
      _
    %p271 = scmp.le.s32.totalorder 1, %s14
    %p272 = scmp.lt.s32.totalorder %s14, 3
    %p273 = pnand %p271, %p272
    %p274 = pneg %p273
    // Predicated region
    $region49: #{bottleneck_forward.1} parent=5 // pred_check
      _
    $region50: #{bottleneck_forward.1} parent=5 // pred_check_branch
      %276 = sbr.rel (%p273) target = $region52
    $region51: #{bottleneck_forward.1} parent=5 // pred_region
      %s277 = ssub.s32 %s14, 1
      %p278 = scmp.lt.s32.totalorder %s19, 1
      %s279 = scalar_select %p278, %s19, 1
      %s280 = smul.addr %s279, 32
      %s281 = smul.addr %s280, 4
      %s282 = scalar_lea.vmem %s0, %s281
      %p283 = pneg %p40
      %p284 = pneg %p37
      %p285 = scmp.lt.s32.totalorder %s19, 1
      %s286 = scalar_select %p285, %s19, 1
      %s287 = smul.addr %s286, 16
      %s288 = smul.addr %s287, 8
      %s289 = scalar_lea.vmem %s1, %s288
      %p290 = pneg %p66
      %p291 = pneg %p63
      %p292 = pneg %p87
      %p293 = pneg %p84
      %p294 = pneg %p108
      %p295 = pneg %p105
      %p296 = pneg %p129
      %p297 = pneg %p126
      %p298 = pneg %p150
      %p299 = pneg %p147
      %p300 = pneg %p171
      %p301 = pneg %p168
      %p302 = pneg %p192
      %p303 = pneg %p189
      %p304 = pneg %p218
      %p305 = pneg %p215
      %p306 = scmp.lt.s32.totalorder %s19, 1
      %s307 = scalar_select %p306, %s19, 1
      %s308 = smul.addr %s307, 16
      %s309 = smul.addr %s308, 8
      %s310 = scalar_lea.vmem %s8, %s309
      %p311 = scmp.lt.s32.totalorder %s19, 1
      %s312 = scalar_select %p311, %s19, 1
      %s313 = smul.addr %s312, 32
      %s314 = smul.addr %s313, 4
      %s315 = scalar_lea.vmem %s0, %s314
      %p316 = scmp.lt.s32.totalorder %s19, 1
      %s317 = scalar_select %p316, %s19, 1
      %s318 = smul.addr %s317, 16
      %s319 = smul.addr %s318, 8
      %s320 = scalar_lea.vmem %s1, %s319
      %p321 = scmp.lt.s32.totalorder %s19, 1
      %s322 = scalar_select %p321, %s19, 1
      %s323 = smul.addr %s322, 16
      %s324 = smul.addr %s323, 8
      %s325 = scalar_lea.vmem %s8, %s324
      %v327 = vld [vmem:[%s315] sm:$0xf]
      %v328 = vld [vmem:[%s315 + $0x4] sm:$0xf]
      %v329 = vld [vmem:[%s315 + $0x8] sm:$0xf]
      %v330 = vld [vmem:[%s315 + $0xc] sm:$0xf]
      %v331 = vld [vmem:[%s315 + $0x10] sm:$0xf]
      %v332 = vld [vmem:[%s315 + $0x14] sm:$0xf]
      %v333 = vld [vmem:[%s315 + $0x18] sm:$0xf]
      %v334 = vld [vmem:[%s315 + $0x1c] sm:$0xf]
      %v335 = vld [vmem:[%s315 + $0x20] sm:$0xf]
      %v336 = vld [vmem:[%s315 + $0x24] sm:$0xf]
      %v337 = vld [vmem:[%s315 + $0x28] sm:$0xf]
      %v338 = vld [vmem:[%s315 + $0x2c] sm:$0xf]
      %v339 = vld [vmem:[%s315 + $0x30] sm:$0xf]
      %v340 = vld [vmem:[%s315 + $0x34] sm:$0xf]
      %v341 = vld [vmem:[%s315 + $0x38] sm:$0xf]
      %v342 = vld [vmem:[%s315 + $0x3c] sm:$0xf]
      %v343 = vld [vmem:[%s315 + $0x40] sm:$0xf]
      %v344 = vld [vmem:[%s315 + $0x44] sm:$0xf]
      %v345 = vld [vmem:[%s315 + $0x48] sm:$0xf]
      %v346 = vld [vmem:[%s315 + $0x4c] sm:$0xf]
      %v347 = vld [vmem:[%s315 + $0x50] sm:$0xf]
      %v348 = vld [vmem:[%s315 + $0x54] sm:$0xf]
      %v349 = vld [vmem:[%s315 + $0x58] sm:$0xf]
      %v350 = vld [vmem:[%s315 + $0x5c] sm:$0xf]
      %v351 = vld [vmem:[%s315 + $0x60] sm:$0xf]
      %v352 = vld [vmem:[%s315 + $0x64] sm:$0xf]
      %v353 = vld [vmem:[%s315 + $0x68] sm:$0xf]
      %v354 = vld [vmem:[%s315 + $0x6c] sm:$0xf]
      %v355 = vld [vmem:[%s315 + $0x70] sm:$0xf]
      %v356 = vld [vmem:[%s315 + $0x74] sm:$0xf]
      %v357 = vld [vmem:[%s315 + $0x78] sm:$0xf]
      %v358 = vld [vmem:[%s315 + $0x7c] sm:$0xf]
      %v359 = vld [vmem:[%s2] sm:$0xf]
      %v360 = vld [vmem:[%s2 + $0x4] sm:$0xf]
      %v361 = vld [vmem:[%s2 + $0x8] sm:$0xf]
      %v362 = vld [vmem:[%s2 + $0xc] sm:$0xf]
      %v363 = vld [vmem:[%s2 + $0x10] sm:$0xf]
      %v364 = vld [vmem:[%s2 + $0x14] sm:$0xf]
      %v365 = vld [vmem:[%s2 + $0x18] sm:$0xf]
      %v366 = vld [vmem:[%s2 + $0x1c] sm:$0xf]
      %v367 = vld [vmem:[%s3] sm:$0x1]
      %v369 = vlaneseq
      %v370 = vshrl.u32 %v369, 7
      %v371 = vsub.s32 0, %v370
      %v372 = vrot.slane %v367, %v371
      %v406 = vunpack.c.l.b16 %v327
      %v407 = vunpack.c.l.b16 %v328
      %v408 = vunpack.c.l.b16 %v329
      %v409 = vunpack.c.l.b16 %v330
      %v410 = vunpack.c.l.b16 %v331
      %v411 = vunpack.c.l.b16 %v332
      %v412 = vunpack.c.l.b16 %v333
      %v413 = vunpack.c.l.b16 %v334
      %v414 = vunpack.c.l.b16 %v335
      %v415 = vunpack.c.l.b16 %v336
      %v416 = vunpack.c.l.b16 %v337
      %v417 = vunpack.c.l.b16 %v338
      %v418 = vunpack.c.l.b16 %v339
      %v419 = vunpack.c.l.b16 %v340
      %v420 = vunpack.c.l.b16 %v341
      %v421 = vunpack.c.l.b16 %v342
      %v422 = vunpack.c.l.b16 %v343
      %v423 = vunpack.c.l.b16 %v344
      %v424 = vunpack.c.l.b16 %v345
      %v425 = vunpack.c.l.b16 %v346
      %v426 = vunpack.c.l.b16 %v347
      %v427 = vunpack.c.l.b16 %v348
      %v428 = vunpack.c.l.b16 %v349
      %v429 = vunpack.c.l.b16 %v350
      %v430 = vunpack.c.l.b16 %v351
      %v431 = vunpack.c.l.b16 %v352
      %v432 = vunpack.c.l.b16 %v353
      %v433 = vunpack.c.l.b16 %v354
      %v434 = vunpack.c.l.b16 %v355
      %v435 = vunpack.c.l.b16 %v356
      %v436 = vunpack.c.l.b16 %v357
      %v437 = vunpack.c.l.b16 %v358
      %v438 = vpack.c.b16 %v407, %v406
      %v439 = vpack.c.b16 %v409, %v408
      %v440 = vpack.c.b16 %v411, %v410
      %v441 = vpack.c.b16 %v413, %v412
      %v442 = vpack.c.b16 %v415, %v414
      %v443 = vpack.c.b16 %v417, %v416
      %v444 = vpack.c.b16 %v419, %v418
      %v445 = vpack.c.b16 %v421, %v420
      %v446 = vpack.c.b16 %v423, %v422
      %v447 = vpack.c.b16 %v425, %v424
      %v448 = vpack.c.b16 %v427, %v426
      %v449 = vpack.c.b16 %v429, %v428
      %v450 = vpack.c.b16 %v431, %v430
      %v451 = vpack.c.b16 %v433, %v432
      %v452 = vpack.c.b16 %v435, %v434
      %v453 = vpack.c.b16 %v437, %v436
      %v462 = vunpack.c.l.b16 %v359
      %v463 = vunpack.c.l.b16 %v360
      %v464 = vunpack.c.l.b16 %v361
      %v465 = vunpack.c.l.b16 %v362
      %v466 = vunpack.c.l.b16 %v363
      %v467 = vunpack.c.l.b16 %v364
      %v468 = vunpack.c.l.b16 %v365
      %v469 = vunpack.c.l.b16 %v366
      %v470 = vpack.c.b16 %v463, %v462
      %v471 = vpack.c.b16 %v465, %v464
      %v472 = vpack.c.b16 %v467, %v466
      %v473 = vpack.c.b16 %v469, %v468
      %vm478 = vcmask 523264
      %v480 = vsel %vm478, %v438, 0
      %v483 = vsel %vm478, %v439, 0
      %v486 = vsel %vm478, %v440, 0
      %v489 = vsel %vm478, %v441, 0
      %v492 = vsel %vm478, %v442, 0
      %v495 = vsel %vm478, %v443, 0
      %v498 = vsel %vm478, %v444, 0
      %v501 = vsel %vm478, %v445, 0
      %v504 = vsel %vm478, %v446, 0
      %v507 = vsel %vm478, %v447, 0
      %v510 = vsel %vm478, %v448, 0
      %v513 = vsel %vm478, %v449, 0
      %v516 = vsel %vm478, %v450, 0
      %v519 = vsel %vm478, %v451, 0
      %v522 = vsel %vm478, %v452, 0
      %v525 = vsel %vm478, %v453, 0
      %527 = vmatprep.subr.bf16.mxu0 0
      %528 = vmatpush1.bf16.msra.mxu0 0
      %529 = vmatprep.subr.bf16.mxu0 0
      %530 = vmatpush1.bf16.msra.mxu0 0
      %531 = vmatprep.subr.bf16.mxu0 0
      %532 = vmatpush1.bf16.msra.mxu0 0
      %533 = vmatprep.subr.bf16.mxu0 0
      %534 = vmatpush1.bf16.msra.mxu0 0
      %535 = vmatprep.subr.bf16.mxu0 0
      %536 = vmatpush1.bf16.msra.mxu0 %v473
      %537 = vmatprep.subr.bf16.mxu0 0
      %538 = vmatpush1.bf16.msra.mxu0 %v472
      %539 = vmatprep.subr.bf16.mxu0 0
      %540 = vmatpush1.bf16.msra.mxu0 %v471
      %541 = vmatprep.subr.bf16.mxu0 0
      %542 = vmatpush1.bf16.msra.mxu0 %v470
      %543 = vmatprep.subr.bf16.mxu0 0
      %544 = vmatpush2.bf16.msra.mxu0 0
      %545 = vmatprep.subr.bf16.mxu0 0
      %546 = vmatpush2.bf16.msra.mxu0 0
      %547 = vmatprep.subr.bf16.mxu0 0
      %548 = vmatpush2.bf16.msra.mxu0 0
      %549 = vmatprep.subr.bf16.mxu0 0
      %550 = vmatpush2.bf16.msra.mxu0 0
      %551 = vmatprep.subr.bf16.mxu0 0
      %552 = vmatpush2.bf16.msra.mxu0 0
      %553 = vmatprep.subr.bf16.mxu0 0
      %554 = vmatpush2.bf16.msra.mxu0 0
      %555 = vmatprep.subr.bf16.mxu0 0
      %556 = vmatpush2.bf16.msra.mxu0 0
      %557 = vmatprep.subr.bf16.mxu0 0
      %558 = vmatpush2.bf16.msra.mxu0 0
      %559 = vmatprep.mubr.bf16.mxu0 0
      %560 = vmatmul.mubr.bf16.gmra.mxu0 %v480
      %v561 = vpop.f32.mrf.mxu0
      %v562 = vadd.f32 %v372, %v561
      %v563 = vpop.f32.mrf.mxu0
      %v564 = vpop.f32.mrf.mxu0
      %v565 = vadd.f32 %v372, %v564
      %v566 = vpop.f32.mrf.mxu0
      %567 = vmatprep.mubr.bf16.mxu0 0
      %568 = vmatmul.mubr.bf16.gmra.mxu0 %v483
      %v569 = vpop.f32.mrf.mxu0
      %v570 = vadd.f32 %v372, %v569
      %v571 = vpop.f32.mrf.mxu0
      %v572 = vpop.f32.mrf.mxu0
      %v573 = vadd.f32 %v372, %v572
      %v574 = vpop.f32.mrf.mxu0
      %575 = vmatprep.mubr.bf16.mxu0 0
      %576 = vmatmul.mubr.bf16.gmra.mxu0 %v486
      %v577 = vpop.f32.mrf.mxu0
      %v578 = vadd.f32 %v372, %v577
      %v579 = vpop.f32.mrf.mxu0
      %v580 = vpop.f32.mrf.mxu0
      %v581 = vadd.f32 %v372, %v580
      %v582 = vpop.f32.mrf.mxu0
      %583 = vmatprep.mubr.bf16.mxu0 0
      %584 = vmatmul.mubr.bf16.gmra.mxu0 %v489
      %v585 = vpop.f32.mrf.mxu0
      %v586 = vadd.f32 %v372, %v585
      %v587 = vpop.f32.mrf.mxu0
      %v588 = vpop.f32.mrf.mxu0
      %v589 = vadd.f32 %v372, %v588
      %v590 = vpop.f32.mrf.mxu0
      %591 = vmatprep.mubr.bf16.mxu0 0
      %592 = vmatmul.mubr.bf16.gmra.mxu0 %v492
      %v593 = vpop.f32.mrf.mxu0
      %v594 = vadd.f32 %v372, %v593
      %v595 = vpop.f32.mrf.mxu0
      %v596 = vpop.f32.mrf.mxu0
      %v597 = vadd.f32 %v372, %v596
      %v598 = vpop.f32.mrf.mxu0
      %599 = vmatprep.mubr.bf16.mxu0 0
      %600 = vmatmul.mubr.bf16.gmra.mxu0 %v495
      %v601 = vpop.f32.mrf.mxu0
      %v602 = vadd.f32 %v372, %v601
      %v603 = vpop.f32.mrf.mxu0
      %v604 = vpop.f32.mrf.mxu0
      %v605 = vadd.f32 %v372, %v604
      %v606 = vpop.f32.mrf.mxu0
      %607 = vmatprep.mubr.bf16.mxu0 0
      %608 = vmatmul.mubr.bf16.gmra.mxu0 %v498
      %v609 = vpop.f32.mrf.mxu0
      %v610 = vadd.f32 %v372, %v609
      %v611 = vpop.f32.mrf.mxu0
      %v612 = vpop.f32.mrf.mxu0
      %v613 = vadd.f32 %v372, %v612
      %v614 = vpop.f32.mrf.mxu0
      %615 = vmatprep.mubr.bf16.mxu0 0
      %616 = vmatmul.mubr.bf16.gmra.mxu0 %v501
      %v617 = vpop.f32.mrf.mxu0
      %v618 = vadd.f32 %v372, %v617
      %v619 = vpop.f32.mrf.mxu0
      %v620 = vpop.f32.mrf.mxu0
      %v621 = vadd.f32 %v372, %v620
      %v622 = vpop.f32.mrf.mxu0
      %623 = vmatprep.mubr.bf16.mxu0 0
      %624 = vmatmul.mubr.bf16.gmra.mxu0 %v504
      %v625 = vpop.f32.mrf.mxu0
      %v626 = vadd.f32 %v372, %v625
      %v627 = vpop.f32.mrf.mxu0
      %v628 = vpop.f32.mrf.mxu0
      %v629 = vadd.f32 %v372, %v628
      %v630 = vpop.f32.mrf.mxu0
      %631 = vmatprep.mubr.bf16.mxu0 0
      %632 = vmatmul.mubr.bf16.gmra.mxu0 %v507
      %v633 = vpop.f32.mrf.mxu0
      %v634 = vadd.f32 %v372, %v633
      %v635 = vpop.f32.mrf.mxu0
      %v636 = vpop.f32.mrf.mxu0
      %v637 = vadd.f32 %v372, %v636
      %v638 = vpop.f32.mrf.mxu0
      %639 = vmatprep.mubr.bf16.mxu0 0
      %640 = vmatmul.mubr.bf16.gmra.mxu0 %v510
      %v641 = vpop.f32.mrf.mxu0
      %v642 = vadd.f32 %v372, %v641
      %v643 = vpop.f32.mrf.mxu0
      %v644 = vpop.f32.mrf.mxu0
      %v645 = vadd.f32 %v372, %v644
      %v646 = vpop.f32.mrf.mxu0
      %647 = vmatprep.mubr.bf16.mxu0 0
      %648 = vmatmul.mubr.bf16.gmra.mxu0 %v513
      %v649 = vpop.f32.mrf.mxu0
      %v650 = vadd.f32 %v372, %v649
      %v651 = vpop.f32.mrf.mxu0
      %v652 = vpop.f32.mrf.mxu0
      %v653 = vadd.f32 %v372, %v652
      %v654 = vpop.f32.mrf.mxu0
      %655 = vmatprep.mubr.bf16.mxu0 0
      %656 = vmatmul.mubr.bf16.gmra.mxu0 %v516
      %v657 = vpop.f32.mrf.mxu0
      %v658 = vadd.f32 %v372, %v657
      %v659 = vpop.f32.mrf.mxu0
      %v660 = vpop.f32.mrf.mxu0
      %v661 = vadd.f32 %v372, %v660
      %v662 = vpop.f32.mrf.mxu0
      %663 = vmatprep.mubr.bf16.mxu0 0
      %664 = vmatmul.mubr.bf16.gmra.mxu0 %v519
      %v665 = vpop.f32.mrf.mxu0
      %v666 = vadd.f32 %v372, %v665
      %v667 = vpop.f32.mrf.mxu0
      %v668 = vpop.f32.mrf.mxu0
      %v669 = vadd.f32 %v372, %v668
      %v670 = vpop.f32.mrf.mxu0
      %671 = vmatprep.mubr.bf16.mxu0 0
      %672 = vmatmul.mubr.bf16.gmra.mxu0 %v522
      %v673 = vpop.f32.mrf.mxu0
      %v674 = vadd.f32 %v372, %v673
      %v675 = vpop.f32.mrf.mxu0
      %v676 = vpop.f32.mrf.mxu0
      %v677 = vadd.f32 %v372, %v676
      %v678 = vpop.f32.mrf.mxu0
      %679 = vmatprep.mubr.bf16.mxu0 0
      %680 = vmatmul.mubr.bf16.gmra.mxu0 %v525
      %v681 = vpop.f32.mrf.mxu0
      %v682 = vadd.f32 %v372, %v681
      %v683 = vpop.f32.mrf.mxu0
      %v684 = vpop.f32.mrf.mxu0
      %v685 = vadd.f32 %v372, %v684
      %v686 = vpop.f32.mrf.mxu0
      %687 = vdwg.mxu0
      %v688 = vmax.f32 %v562, 0.0
      %v689 = vmax.f32 %v565, 0.0
      %v690 = vmax.f32 %v570, 0.0
      %v691 = vmax.f32 %v573, 0.0
      %v692 = vmax.f32 %v578, 0.0
      %v693 = vmax.f32 %v581, 0.0
      %v694 = vmax.f32 %v586, 0.0
      %v695 = vmax.f32 %v589, 0.0
      %v696 = vmax.f32 %v594, 0.0
      %v697 = vmax.f32 %v597, 0.0
      %v698 = vmax.f32 %v602, 0.0
      %v699 = vmax.f32 %v605, 0.0
      %v700 = vmax.f32 %v610, 0.0
      %v701 = vmax.f32 %v613, 0.0
      %v702 = vmax.f32 %v618, 0.0
      %v703 = vmax.f32 %v621, 0.0
      %v704 = vmax.f32 %v626, 0.0
      %v705 = vmax.f32 %v629, 0.0
      %v706 = vmax.f32 %v634, 0.0
      %v707 = vmax.f32 %v637, 0.0
      %v708 = vmax.f32 %v642, 0.0
      %v709 = vmax.f32 %v645, 0.0
      %v710 = vmax.f32 %v650, 0.0
      %v711 = vmax.f32 %v653, 0.0
      %v712 = vmax.f32 %v658, 0.0
      %v713 = vmax.f32 %v661, 0.0
      %v714 = vmax.f32 %v666, 0.0
      %v715 = vmax.f32 %v669, 0.0
      %v716 = vmax.f32 %v674, 0.0
      %v717 = vmax.f32 %v677, 0.0
      %v718 = vmax.f32 %v682, 0.0
      %v719 = vmax.f32 %v685, 0.0
      %v720 = vpack.c.bf16 %v689, %v688
      %v721 = vpack.c.bf16 %v691, %v690
      %v722 = vpack.c.bf16 %v693, %v692
      %v723 = vpack.c.bf16 %v695, %v694
      %v724 = vpack.c.bf16 %v697, %v696
      %v725 = vpack.c.bf16 %v699, %v698
      %v726 = vpack.c.bf16 %v701, %v700
      %v727 = vpack.c.bf16 %v703, %v702
      %v728 = vpack.c.bf16 %v705, %v704
      %v729 = vpack.c.bf16 %v707, %v706
      %v730 = vpack.c.bf16 %v709, %v708
      %v731 = vpack.c.bf16 %v711, %v710
      %v732 = vpack.c.bf16 %v713, %v712
      %v733 = vpack.c.bf16 %v715, %v714
      %v734 = vpack.c.bf16 %v717, %v716
      %v735 = vpack.c.bf16 %v719, %v718
      %vm736 = vcmask 125952
      %737 = vst.msk [vmem:[#allocation2] sm:$0xf] %vm736, 0
      %738 = vst.msk [vmem:[#allocation2 + $0x4] sm:$0xf] %vm736, 0
      %739 = vst.msk [vmem:[#allocation2 + $0x8] sm:$0xf] %vm736, 0
      %740 = vst.msk [vmem:[#allocation2 + $0xc] sm:$0xf] %vm736, 0
      %741 = vst.msk [vmem:[#allocation2 + $0x10] sm:$0xf] %vm736, 0
      %742 = vst.msk [vmem:[#allocation2 + $0x14] sm:$0xf] %vm736, 0
      %743 = vst.msk [vmem:[#allocation2 + $0x18] sm:$0xf] %vm736, 0
      %744 = vst.msk [vmem:[#allocation2 + $0x1c] sm:$0xf] %vm736, 0
      %745 = vst.msk [vmem:[#allocation2 + $0x20] sm:$0xf] %vm736, 0
      %746 = vst.msk [vmem:[#allocation2 + $0x24] sm:$0xf] %vm736, 0
      %747 = vst.msk [vmem:[#allocation2 + $0x28] sm:$0xf] %vm736, 0
      %748 = vst.msk [vmem:[#allocation2 + $0x2c] sm:$0xf] %vm736, 0
      %749 = vst.msk [vmem:[#allocation2 + $0x30] sm:$0xf] %vm736, 0
      %750 = vst.msk [vmem:[#allocation2 + $0x34] sm:$0xf] %vm736, 0
      %751 = vst.msk [vmem:[#allocation2 + $0x38] sm:$0xf] %vm736, 0
      %752 = vst.msk [vmem:[#allocation2 + $0x3c] sm:$0xf] %vm736, 0
      %753 = vst.msk [vmem:[#allocation2 + $0x40] sm:$0xf] %vm736, 0
      %754 = vst.msk [vmem:[#allocation2 + $0x44] sm:$0xf] %vm736, 0
      %755 = vst.msk [vmem:[#allocation2 + $0x48] sm:$0xf] %vm736, 0
      %756 = vst.msk [vmem:[#allocation2 + $0x4c] sm:$0xf] %vm736, 0
      %757 = vst.msk [vmem:[#allocation2 + $0x50] sm:$0xf] %vm736, 0
      %758 = vst.msk [vmem:[#allocation2 + $0x54] sm:$0xf] %vm736, 0
      %759 = vst.msk [vmem:[#allocation2 + $0x58] sm:$0xf] %vm736, 0
      %760 = vst.msk [vmem:[#allocation2 + $0x5c] sm:$0xf] %vm736, 0
      %761 = vst.msk [vmem:[#allocation2 + $0x60] sm:$0xf] %vm736, 0
      %762 = vst.msk [vmem:[#allocation2 + $0x64] sm:$0xf] %vm736, 0
      %763 = vst.msk [vmem:[#allocation2 + $0x68] sm:$0xf] %vm736, 0
      %764 = vst.msk [vmem:[#allocation2 + $0x6c] sm:$0xf] %vm736, 0
      %765 = vst.msk [vmem:[#allocation2 + $0x70] sm:$0xf] %vm736, 0
      %766 = vst.msk [vmem:[#allocation2 + $0x74] sm:$0xf] %vm736, 0
      %767 = vst.msk [vmem:[#allocation2 + $0x78] sm:$0xf] %vm736, 0
      %768 = vst.msk [vmem:[#allocation2 + $0x7c] sm:$0xf] %vm736, 0
      %769 = vst.msk [vmem:[#allocation2 + $0x80] sm:$0xf] %vm736, 0
      %770 = vst.msk [vmem:[#allocation2 + $0x84] sm:$0xf] %vm736, 0
      %771 = vst.msk [vmem:[#allocation2 + $0x88] sm:$0xf] %vm736, 0
      %772 = vst.msk [vmem:[#allocation2 + $0x8c] sm:$0xf] %vm736, 0
      %773 = vst.msk [vmem:[#allocation2 + $0x90] sm:$0xf] %vm736, 0
      %774 = vst.msk [vmem:[#allocation2 + $0x94] sm:$0xf] %vm736, 0
      %775 = vst.msk [vmem:[#allocation2 + $0x98] sm:$0xf] %vm736, 0
      %776 = vst.msk [vmem:[#allocation2 + $0x9c] sm:$0xf] %vm736, 0
      %777 = vst.msk [vmem:[#allocation2 + $0xa0] sm:$0xf] %vm736, 0
      %778 = vst.msk [vmem:[#allocation2 + $0xa4] sm:$0xf] %vm736, 0
      %779 = vst.msk [vmem:[#allocation2 + $0xa8] sm:$0xf] %vm736, 0
      %780 = vst.msk [vmem:[#allocation2 + $0xac] sm:$0xf] %vm736, 0
      %781 = vst.msk [vmem:[#allocation2 + $0xb0] sm:$0xf] %vm736, 0
      %782 = vst.msk [vmem:[#allocation2 + $0xb4] sm:$0xf] %vm736, 0
      %783 = vst.msk [vmem:[#allocation2 + $0xb8] sm:$0xf] %vm736, 0
      %784 = vst.msk [vmem:[#allocation2 + $0xbc] sm:$0xf] %vm736, 0
      %785 = vst.msk [vmem:[#allocation2 + $0xc0] sm:$0xf] %vm736, 0
      %786 = vst.msk [vmem:[#allocation2 + $0xc4] sm:$0xf] %vm736, 0
      %787 = vst.msk [vmem:[#allocation2 + $0xc8] sm:$0xf] %vm736, 0
      %788 = vst.msk [vmem:[#allocation2 + $0xcc] sm:$0xf] %vm736, 0
      %789 = vst.msk [vmem:[#allocation2 + $0xd0] sm:$0xf] %vm736, 0
      %790 = vst.msk [vmem:[#allocation2 + $0xd4] sm:$0xf] %vm736, 0
      %791 = vst.msk [vmem:[#allocation2 + $0xd8] sm:$0xf] %vm736, 0
      %v793 = vunpack.c.l.b16 %v720
      %v794 = vunpack.c.h.b16 %v720
      %v795 = vpack.c.b16 %v793, %v793
      %v796 = vpack.c.b16 %v794, %v794
      %799 = vst.msk [vmem:[#allocation2 + $0x10] sm:$0xf] %vm736, %v795
      %800 = vst.msk [vmem:[#allocation2 + $0x14] sm:$0xf] %vm736, %v796
      %v802 = vunpack.c.l.b16 %v721
      %v803 = vunpack.c.h.b16 %v721
      %v804 = vpack.c.b16 %v802, %v802
      %v805 = vpack.c.b16 %v803, %v803
      %808 = vst.msk [vmem:[#allocation2 + $0x1c] sm:$0xf] %vm736, %v804
      %809 = vst.msk [vmem:[#allocation2 + $0x20] sm:$0xf] %vm736, %v805
      %v811 = vunpack.c.l.b16 %v722
      %v812 = vunpack.c.h.b16 %v722
      %v813 = vpack.c.b16 %v811, %v811
      %v814 = vpack.c.b16 %v812, %v812
      %817 = vst.msk [vmem:[#allocation2 + $0x28] sm:$0xf] %vm736, %v813
      %818 = vst.msk [vmem:[#allocation2 + $0x2c] sm:$0xf] %vm736, %v814
      %v820 = vunpack.c.l.b16 %v723
      %v821 = vunpack.c.h.b16 %v723
      %v822 = vpack.c.b16 %v820, %v820
      %v823 = vpack.c.b16 %v821, %v821
      %826 = vst.msk [vmem:[#allocation2 + $0x34] sm:$0xf] %vm736, %v822
      %827 = vst.msk [vmem:[#allocation2 + $0x38] sm:$0xf] %vm736, %v823
      %v829 = vunpack.c.l.b16 %v724
      %v830 = vunpack.c.h.b16 %v724
      %v831 = vpack.c.b16 %v829, %v829
      %v832 = vpack.c.b16 %v830, %v830
      %835 = vst.msk [vmem:[#allocation2 + $0x40] sm:$0xf] %vm736, %v831
      %836 = vst.msk [vmem:[#allocation2 + $0x44] sm:$0xf] %vm736, %v832
      %v838 = vunpack.c.l.b16 %v725
      %v839 = vunpack.c.h.b16 %v725
      %v840 = vpack.c.b16 %v838, %v838
      %v841 = vpack.c.b16 %v839, %v839
      %844 = vst.msk [vmem:[#allocation2 + $0x4c] sm:$0xf] %vm736, %v840
      %845 = vst.msk [vmem:[#allocation2 + $0x50] sm:$0xf] %vm736, %v841
      %v847 = vunpack.c.l.b16 %v726
      %v848 = vunpack.c.h.b16 %v726
      %v849 = vpack.c.b16 %v847, %v847
      %v850 = vpack.c.b16 %v848, %v848
      %853 = vst.msk [vmem:[#allocation2 + $0x58] sm:$0xf] %vm736, %v849
      %854 = vst.msk [vmem:[#allocation2 + $0x5c] sm:$0xf] %vm736, %v850
      %v856 = vunpack.c.l.b16 %v727
      %v857 = vunpack.c.h.b16 %v727
      %v858 = vpack.c.b16 %v856, %v856
      %v859 = vpack.c.b16 %v857, %v857
      %862 = vst.msk [vmem:[#allocation2 + $0x64] sm:$0xf] %vm736, %v858
      %863 = vst.msk [vmem:[#allocation2 + $0x68] sm:$0xf] %vm736, %v859
      %v865 = vunpack.c.l.b16 %v728
      %v866 = vunpack.c.h.b16 %v728
      %v867 = vpack.c.b16 %v865, %v865
      %v868 = vpack.c.b16 %v866, %v866
      %871 = vst.msk [vmem:[#allocation2 + $0x70] sm:$0xf] %vm736, %v867
      %872 = vst.msk [vmem:[#allocation2 + $0x74] sm:$0xf] %vm736, %v868
      %v874 = vunpack.c.l.b16 %v729
      %v875 = vunpack.c.h.b16 %v729
      %v876 = vpack.c.b16 %v874, %v874
      %v877 = vpack.c.b16 %v875, %v875
      %880 = vst.msk [vmem:[#allocation2 + $0x7c] sm:$0xf] %vm736, %v876
      %881 = vst.msk [vmem:[#allocation2 + $0x80] sm:$0xf] %vm736, %v877
      %v883 = vunpack.c.l.b16 %v730
      %v884 = vunpack.c.h.b16 %v730
      %v885 = vpack.c.b16 %v883, %v883
      %v886 = vpack.c.b16 %v884, %v884
      %889 = vst.msk [vmem:[#allocation2 + $0x88] sm:$0xf] %vm736, %v885
      %890 = vst.msk [vmem:[#allocation2 + $0x8c] sm:$0xf] %vm736, %v886
      %v892 = vunpack.c.l.b16 %v731
      %v893 = vunpack.c.h.b16 %v731
      %v894 = vpack.c.b16 %v892, %v892
      %v895 = vpack.c.b16 %v893, %v893
      %898 = vst.msk [vmem:[#allocation2 + $0x94] sm:$0xf] %vm736, %v894
      %899 = vst.msk [vmem:[#allocation2 + $0x98] sm:$0xf] %vm736, %v895
      %v901 = vunpack.c.l.b16 %v732
      %v902 = vunpack.c.h.b16 %v732
      %v903 = vpack.c.b16 %v901, %v901
      %v904 = vpack.c.b16 %v902, %v902
      %907 = vst.msk [vmem:[#allocation2 + $0xa0] sm:$0xf] %vm736, %v903
      %908 = vst.msk [vmem:[#allocation2 + $0xa4] sm:$0xf] %vm736, %v904
      %v910 = vunpack.c.l.b16 %v733
      %v911 = vunpack.c.h.b16 %v733
      %v912 = vpack.c.b16 %v910, %v910
      %v913 = vpack.c.b16 %v911, %v911
      %916 = vst.msk [vmem:[#allocation2 + $0xac] sm:$0xf] %vm736, %v912
      %917 = vst.msk [vmem:[#allocation2 + $0xb0] sm:$0xf] %vm736, %v913
      %v919 = vunpack.c.l.b16 %v734
      %v920 = vunpack.c.h.b16 %v734
      %v921 = vpack.c.b16 %v919, %v919
      %v922 = vpack.c.b16 %v920, %v920
      %925 = vst.msk [vmem:[#allocation2 + $0xb8] sm:$0xf] %vm736, %v921
      %926 = vst.msk [vmem:[#allocation2 + $0xbc] sm:$0xf] %vm736, %v922
      %v928 = vunpack.c.l.b16 %v735
      %v929 = vunpack.c.h.b16 %v735
      %v930 = vpack.c.b16 %v928, %v928
      %v931 = vpack.c.b16 %v929, %v929
      %934 = vst.msk [vmem:[#allocation2 + $0xc4] sm:$0xf] %vm736, %v930
      %935 = vst.msk [vmem:[#allocation2 + $0xc8] sm:$0xf] %vm736, %v931
      %v936 = vld [vmem:[#allocation2] sm:$0x8]
      %v937 = vld [vmem:[#allocation2 + $0x4] sm:$0xf]
      %v938 = vld [vmem:[#allocation2 + $0x8] sm:$0xf]
      %v939 = vld [vmem:[#allocation2 + $0xc] sm:$0xf]
      %v940 = vld [vmem:[#allocation2 + $0x10] sm:$0xf]
      %v941 = vld [vmem:[#allocation2 + $0x14] sm:$0xf]
      %v942 = vld [vmem:[#allocation2 + $0x18] sm:$0xf]
      %v943 = vld [vmem:[#allocation2 + $0x1c] sm:$0xf]
      %v944 = vld [vmem:[#allocation2 + $0x20] sm:$0xf]
      %v945 = vld [vmem:[#allocation2 + $0x24] sm:$0xf]
      %v946 = vld [vmem:[#allocation2 + $0x28] sm:$0xf]
      %v947 = vld [vmem:[#allocation2 + $0x2c] sm:$0xf]
      %v948 = vld [vmem:[#allocation2 + $0x30] sm:$0xf]
      %v949 = vld [vmem:[#allocation2 + $0x34] sm:$0xf]
      %v950 = vld [vmem:[#allocation2 + $0x38] sm:$0xf]
      %v951 = vld [vmem:[#allocation2 + $0x3c] sm:$0xf]
      %v952 = vld [vmem:[#allocation2 + $0x40] sm:$0xf]
      %v953 = vld [vmem:[#allocation2 + $0x44] sm:$0xf]
      %v954 = vld [vmem:[#allocation2 + $0x48] sm:$0xf]
      %v955 = vld [vmem:[#allocation2 + $0x4c] sm:$0xf]
      %v956 = vld [vmem:[#allocation2 + $0x50] sm:$0xf]
      %v957 = vld [vmem:[#allocation2 + $0x54] sm:$0xf]
      %v958 = vld [vmem:[#allocation2 + $0x58] sm:$0xf]
      %v959 = vld [vmem:[#allocation2 + $0x5c] sm:$0xf]
      %v960 = vld [vmem:[#allocation2 + $0x60] sm:$0xf]
      %v961 = vld [vmem:[#allocation2 + $0x64] sm:$0xf]
      %v962 = vld [vmem:[#allocation2 + $0x68] sm:$0xf]
      %v963 = vld [vmem:[#allocation2 + $0x6c] sm:$0xf]
      %v964 = vld [vmem:[#allocation2 + $0x70] sm:$0xf]
      %v965 = vld [vmem:[#allocation2 + $0x74] sm:$0xf]
      %v966 = vld [vmem:[#allocation2 + $0x78] sm:$0xf]
      %v967 = vld [vmem:[#allocation2 + $0x7c] sm:$0xf]
      %v968 = vld [vmem:[#allocation2 + $0x80] sm:$0xf]
      %v969 = vld [vmem:[#allocation2 + $0x84] sm:$0xf]
      %v970 = vld [vmem:[#allocation2 + $0x88] sm:$0xf]
      %v971 = vld [vmem:[#allocation2 + $0x8c] sm:$0xf]
      %v972 = vld [vmem:[#allocation2 + $0x90] sm:$0xf]
      %v973 = vld [vmem:[#allocation2 + $0x94] sm:$0xf]
      %v974 = vld [vmem:[#allocation2 + $0x98] sm:$0xf]
      %v975 = vld [vmem:[#allocation2 + $0x9c] sm:$0xf]
      %v976 = vld [vmem:[#allocation2 + $0xa0] sm:$0xf]
      %v977 = vld [vmem:[#allocation2 + $0xa4] sm:$0xf]
      %v978 = vld [vmem:[#allocation2 + $0xa8] sm:$0xf]
      %v979 = vld [vmem:[#allocation2 + $0xac] sm:$0xf]
      %v980 = vld [vmem:[#allocation2 + $0xb0] sm:$0xf]
      %v981 = vld [vmem:[#allocation2 + $0xb4] sm:$0xf]
      %v982 = vld [vmem:[#allocation2 + $0xb8] sm:$0xf]
      %v983 = vld [vmem:[#allocation2 + $0xbc] sm:$0xf]
      %vm984 = vsmask.f32 256
      %vm985 = vsmask.f32 4368
      %vm986 = vmor %vm984, %vm985
      %v988 = vshrl.u32 %v936, 16
      %v990 = vrot.slane %v988, 7
      %v991 = vrot.slane %v990, 4
      %v993 = vshrl.u32 %v937, 16
      %v995 = vrot.slane %v993, 7
      %v996 = vshll.u32 %v937, 16
      %v998 = vor.u32 %v995, %v996
      %v999 = vsel %vm986, %v991, %v998
      %v1000 = vrot.slane %v995, 4
      %v1002 = vshrl.u32 %v938, 16
      %v1004 = vrot.slane %v1002, 7
      %v1005 = vshll.u32 %v938, 16
      %v1007 = vor.u32 %v1004, %v1005
      %v1008 = vsel %vm986, %v1000, %v1007
      %v1009 = vrot.slane %v1004, 4
      %v1011 = vshrl.u32 %v939, 16
      %v1013 = vrot.slane %v1011, 7
      %v1014 = vshll.u32 %v939, 16
      %v1016 = vor.u32 %v1013, %v1014
      %v1017 = vsel %vm986, %v1009, %v1016
      %v1018 = vrot.slane %v1013, 4
      %v1020 = vshrl.u32 %v940, 16
      %v1022 = vrot.slane %v1020, 7
      %v1023 = vshll.u32 %v940, 16
      %v1025 = vor.u32 %v1022, %v1023
      %v1026 = vsel %vm986, %v1018, %v1025
      %v1027 = vrot.slane %v1022, 4
      %v1029 = vshrl.u32 %v941, 16
      %v1031 = vrot.slane %v1029, 7
      %v1032 = vshll.u32 %v941, 16
      %v1034 = vor.u32 %v1031, %v1032
      %v1035 = vsel %vm986, %v1027, %v1034
      %v1036 = vrot.slane %v1031, 4
      %v1038 = vshrl.u32 %v942, 16
      %v1040 = vrot.slane %v1038, 7
      %v1041 = vshll.u32 %v942, 16
      %v1043 = vor.u32 %v1040, %v1041
      %v1044 = vsel %vm986, %v1036, %v1043
      %v1045 = vrot.slane %v1040, 4
      %v1047 = vshrl.u32 %v943, 16
      %v1049 = vrot.slane %v1047, 7
      %v1050 = vshll.u32 %v943, 16
      %v1052 = vor.u32 %v1049, %v1050
      %v1053 = vsel %vm986, %v1045, %v1052
      %v1054 = vrot.slane %v1049, 4
      %v1056 = vshrl.u32 %v944, 16
      %v1058 = vrot.slane %v1056, 7
      %v1059 = vshll.u32 %v944, 16
      %v1061 = vor.u32 %v1058, %v1059
      %v1062 = vsel %vm986, %v1054, %v1061
      %v1063 = vrot.slane %v1058, 4
      %v1065 = vshrl.u32 %v945, 16
      %v1067 = vrot.slane %v1065, 7
      %v1068 = vshll.u32 %v945, 16
      %v1070 = vor.u32 %v1067, %v1068
      %v1071 = vsel %vm986, %v1063, %v1070
      %v1072 = vrot.slane %v1067, 4
      %v1074 = vshrl.u32 %v946, 16
      %v1076 = vrot.slane %v1074, 7
      %v1077 = vshll.u32 %v946, 16
      %v1079 = vor.u32 %v1076, %v1077
      %v1080 = vsel %vm986, %v1072, %v1079
      %v1081 = vrot.slane %v1076, 4
      %v1083 = vshrl.u32 %v947, 16
      %v1085 = vrot.slane %v1083, 7
      %v1086 = vshll.u32 %v947, 16
      %v1088 = vor.u32 %v1085, %v1086
      %v1089 = vsel %vm986, %v1081, %v1088
      %v1090 = vrot.slane %v1085, 4
      %v1092 = vshrl.u32 %v948, 16
      %v1094 = vrot.slane %v1092, 7
      %v1095 = vshll.u32 %v948, 16
      %v1097 = vor.u32 %v1094, %v1095
      %v1098 = vsel %vm986, %v1090, %v1097
      %v1099 = vrot.slane %v1094, 4
      %v1101 = vshrl.u32 %v949, 16
      %v1103 = vrot.slane %v1101, 7
      %v1104 = vshll.u32 %v949, 16
      %v1106 = vor.u32 %v1103, %v1104
      %v1107 = vsel %vm986, %v1099, %v1106
      %v1108 = vrot.slane %v1103, 4
      %v1110 = vshrl.u32 %v950, 16
      %v1112 = vrot.slane %v1110, 7
      %v1113 = vshll.u32 %v950, 16
      %v1115 = vor.u32 %v1112, %v1113
      %v1116 = vsel %vm986, %v1108, %v1115
      %v1117 = vrot.slane %v1112, 4
      %v1119 = vshrl.u32 %v951, 16
      %v1121 = vrot.slane %v1119, 7
      %v1122 = vshll.u32 %v951, 16
      %v1124 = vor.u32 %v1121, %v1122
      %v1125 = vsel %vm986, %v1117, %v1124
      %v1126 = vrot.slane %v1121, 4
      %v1128 = vshrl.u32 %v952, 16
      %v1130 = vrot.slane %v1128, 7
      %v1131 = vshll.u32 %v952, 16
      %v1133 = vor.u32 %v1130, %v1131
      %v1134 = vsel %vm986, %v1126, %v1133
      %v1135 = vrot.slane %v1130, 4
      %v1137 = vshrl.u32 %v953, 16
      %v1139 = vrot.slane %v1137, 7
      %v1140 = vshll.u32 %v953, 16
      %v1142 = vor.u32 %v1139, %v1140
      %v1143 = vsel %vm986, %v1135, %v1142
      %v1144 = vrot.slane %v1139, 4
      %v1146 = vshrl.u32 %v954, 16
      %v1148 = vrot.slane %v1146, 7
      %v1149 = vshll.u32 %v954, 16
      %v1151 = vor.u32 %v1148, %v1149
      %v1152 = vsel %vm986, %v1144, %v1151
      %v1153 = vrot.slane %v1148, 4
      %v1155 = vshrl.u32 %v955, 16
      %v1157 = vrot.slane %v1155, 7
      %v1158 = vshll.u32 %v955, 16
      %v1160 = vor.u32 %v1157, %v1158
      %v1161 = vsel %vm986, %v1153, %v1160
      %v1162 = vrot.slane %v1157, 4
      %v1164 = vshrl.u32 %v956, 16
      %v1166 = vrot.slane %v1164, 7
      %v1167 = vshll.u32 %v956, 16
      %v1169 = vor.u32 %v1166, %v1167
      %v1170 = vsel %vm986, %v1162, %v1169
      %v1171 = vrot.slane %v1166, 4
      %v1173 = vshrl.u32 %v957, 16
      %v1175 = vrot.slane %v1173, 7
      %v1176 = vshll.u32 %v957, 16
      %v1178 = vor.u32 %v1175, %v1176
      %v1179 = vsel %vm986, %v1171, %v1178
      %v1180 = vrot.slane %v1175, 4
      %v1182 = vshrl.u32 %v958, 16
      %v1184 = vrot.slane %v1182, 7
      %v1185 = vshll.u32 %v958, 16
      %v1187 = vor.u32 %v1184, %v1185
      %v1188 = vsel %vm986, %v1180, %v1187
      %v1189 = vrot.slane %v1184, 4
      %v1191 = vshrl.u32 %v959, 16
      %v1193 = vrot.slane %v1191, 7
      %v1194 = vshll.u32 %v959, 16
      %v1196 = vor.u32 %v1193, %v1194
      %v1197 = vsel %vm986, %v1189, %v1196
      %v1198 = vrot.slane %v1193, 4
      %v1200 = vshrl.u32 %v960, 16
      %v1202 = vrot.slane %v1200, 7
      %v1203 = vshll.u32 %v960, 16
      %v1205 = vor.u32 %v1202, %v1203
      %v1206 = vsel %vm986, %v1198, %v1205
      %v1207 = vrot.slane %v1202, 4
      %v1209 = vshrl.u32 %v961, 16
      %v1211 = vrot.slane %v1209, 7
      %v1212 = vshll.u32 %v961, 16
      %v1214 = vor.u32 %v1211, %v1212
      %v1215 = vsel %vm986, %v1207, %v1214
      %v1216 = vrot.slane %v1211, 4
      %v1218 = vshrl.u32 %v962, 16
      %v1220 = vrot.slane %v1218, 7
      %v1221 = vshll.u32 %v962, 16
      %v1223 = vor.u32 %v1220, %v1221
      %v1224 = vsel %vm986, %v1216, %v1223
      %v1225 = vrot.slane %v1220, 4
      %v1227 = vshrl.u32 %v963, 16
      %v1229 = vrot.slane %v1227, 7
      %v1230 = vshll.u32 %v963, 16
      %v1232 = vor.u32 %v1229, %v1230
      %v1233 = vsel %vm986, %v1225, %v1232
      %v1234 = vrot.slane %v1229, 4
      %v1236 = vshrl.u32 %v964, 16
      %v1238 = vrot.slane %v1236, 7
      %v1239 = vshll.u32 %v964, 16
      %v1241 = vor.u32 %v1238, %v1239
      %v1242 = vsel %vm986, %v1234, %v1241
      %v1243 = vrot.slane %v1238, 4
      %v1245 = vshrl.u32 %v965, 16
      %v1247 = vrot.slane %v1245, 7
      %v1248 = vshll.u32 %v965, 16
      %v1250 = vor.u32 %v1247, %v1248
      %v1251 = vsel %vm986, %v1243, %v1250
      %v1252 = vrot.slane %v1247, 4
      %v1254 = vshrl.u32 %v966, 16
      %v1256 = vrot.slane %v1254, 7
      %v1257 = vshll.u32 %v966, 16
      %v1259 = vor.u32 %v1256, %v1257
      %v1260 = vsel %vm986, %v1252, %v1259
      %v1261 = vrot.slane %v1256, 4
      %v1263 = vshrl.u32 %v967, 16
      %v1265 = vrot.slane %v1263, 7
      %v1266 = vshll.u32 %v967, 16
      %v1268 = vor.u32 %v1265, %v1266
      %v1269 = vsel %vm986, %v1261, %v1268
      %v1270 = vrot.slane %v1265, 4
      %v1272 = vshrl.u32 %v968, 16
      %v1274 = vrot.slane %v1272, 7
      %v1275 = vshll.u32 %v968, 16
      %v1277 = vor.u32 %v1274, %v1275
      %v1278 = vsel %vm986, %v1270, %v1277
      %v1279 = vrot.slane %v1274, 4
      %v1281 = vshrl.u32 %v969, 16
      %v1283 = vrot.slane %v1281, 7
      %v1284 = vshll.u32 %v969, 16
      %v1286 = vor.u32 %v1283, %v1284
      %v1287 = vsel %vm986, %v1279, %v1286
      %v1288 = vrot.slane %v1283, 4
      %v1290 = vshrl.u32 %v970, 16
      %v1292 = vrot.slane %v1290, 7
      %v1293 = vshll.u32 %v970, 16
      %v1295 = vor.u32 %v1292, %v1293
      %v1296 = vsel %vm986, %v1288, %v1295
      %v1297 = vrot.slane %v1292, 4
      %v1299 = vshrl.u32 %v971, 16
      %v1301 = vrot.slane %v1299, 7
      %v1302 = vshll.u32 %v971, 16
      %v1304 = vor.u32 %v1301, %v1302
      %v1305 = vsel %vm986, %v1297, %v1304
      %v1306 = vrot.slane %v1301, 4
      %v1308 = vshrl.u32 %v972, 16
      %v1310 = vrot.slane %v1308, 7
      %v1311 = vshll.u32 %v972, 16
      %v1313 = vor.u32 %v1310, %v1311
      %v1314 = vsel %vm986, %v1306, %v1313
      %v1315 = vrot.slane %v1310, 4
      %v1317 = vshrl.u32 %v973, 16
      %v1319 = vrot.slane %v1317, 7
      %v1320 = vshll.u32 %v973, 16
      %v1322 = vor.u32 %v1319, %v1320
      %v1323 = vsel %vm986, %v1315, %v1322
      %v1324 = vrot.slane %v1319, 4
      %v1326 = vshrl.u32 %v974, 16
      %v1328 = vrot.slane %v1326, 7
      %v1329 = vshll.u32 %v974, 16
      %v1331 = vor.u32 %v1328, %v1329
      %v1332 = vsel %vm986, %v1324, %v1331
      %v1333 = vrot.slane %v1328, 4
      %v1335 = vshrl.u32 %v975, 16
      %v1337 = vrot.slane %v1335, 7
      %v1338 = vshll.u32 %v975, 16
      %v1340 = vor.u32 %v1337, %v1338
      %v1341 = vsel %vm986, %v1333, %v1340
      %v1342 = vrot.slane %v1337, 4
      %v1344 = vshrl.u32 %v976, 16
      %v1346 = vrot.slane %v1344, 7
      %v1347 = vshll.u32 %v976, 16
      %v1349 = vor.u32 %v1346, %v1347
      %v1350 = vsel %vm986, %v1342, %v1349
      %v1351 = vrot.slane %v1346, 4
      %v1353 = vshrl.u32 %v977, 16
      %v1355 = vrot.slane %v1353, 7
      %v1356 = vshll.u32 %v977, 16
      %v1358 = vor.u32 %v1355, %v1356
      %v1359 = vsel %vm986, %v1351, %v1358
      %v1360 = vrot.slane %v1355, 4
      %v1362 = vshrl.u32 %v978, 16
      %v1364 = vrot.slane %v1362, 7
      %v1365 = vshll.u32 %v978, 16
      %v1367 = vor.u32 %v1364, %v1365
      %v1368 = vsel %vm986, %v1360, %v1367
      %v1369 = vrot.slane %v1364, 4
      %v1371 = vshrl.u32 %v979, 16
      %v1373 = vrot.slane %v1371, 7
      %v1374 = vshll.u32 %v979, 16
      %v1376 = vor.u32 %v1373, %v1374
      %v1377 = vsel %vm986, %v1369, %v1376
      %v1378 = vrot.slane %v1373, 4
      %v1380 = vshrl.u32 %v980, 16
      %v1382 = vrot.slane %v1380, 7
      %v1383 = vshll.u32 %v980, 16
      %v1385 = vor.u32 %v1382, %v1383
      %v1386 = vsel %vm986, %v1378, %v1385
      %v1387 = vrot.slane %v1382, 4
      %v1389 = vshrl.u32 %v981, 16
      %v1391 = vrot.slane %v1389, 7
      %v1392 = vshll.u32 %v981, 16
      %v1394 = vor.u32 %v1391, %v1392
      %v1395 = vsel %vm986, %v1387, %v1394
      %v1396 = vrot.slane %v1391, 4
      %v1398 = vshrl.u32 %v982, 16
      %v1400 = vrot.slane %v1398, 7
      %v1401 = vshll.u32 %v982, 16
      %v1403 = vor.u32 %v1400, %v1401
      %v1404 = vsel %vm986, %v1396, %v1403
      %v1405 = vrot.slane %v1400, 4
      %v1407 = vshrl.u32 %v983, 16
      %v1409 = vrot.slane %v1407, 7
      %v1410 = vshll.u32 %v983, 16
      %v1412 = vor.u32 %v1409, %v1410
      %v1413 = vsel %vm986, %v1405, %v1412
      %1461 = vst.msk [vmem:[#allocation3] sm:$0xf] %vm736, %v999
      %1462 = vst.msk [vmem:[#allocation3 + $0x8] sm:$0xf] %vm736, %v1008
      %1463 = vst.msk [vmem:[#allocation3 + $0x10] sm:$0xf] %vm736, %v1017
      %1464 = vst.msk [vmem:[#allocation3 + $0x18] sm:$0xf] %vm736, %v1026
      %1465 = vst.msk [vmem:[#allocation3 + $0x20] sm:$0xf] %vm736, %v1035
      %1466 = vst.msk [vmem:[#allocation3 + $0x28] sm:$0xf] %vm736, %v1044
      %1467 = vst.msk [vmem:[#allocation3 + $0x30] sm:$0xf] %vm736, %v1053
      %1468 = vst.msk [vmem:[#allocation3 + $0x38] sm:$0xf] %vm736, %v1062
      %1469 = vst.msk [vmem:[#allocation3 + $0x40] sm:$0xf] %vm736, %v1071
      %1470 = vst.msk [vmem:[#allocation3 + $0x48] sm:$0xf] %vm736, %v1080
      %1471 = vst.msk [vmem:[#allocation3 + $0x50] sm:$0xf] %vm736, %v1089
      %1472 = vst.msk [vmem:[#allocation3 + $0x58] sm:$0xf] %vm736, %v1098
      %1473 = vst.msk [vmem:[#allocation3 + $0x60] sm:$0xf] %vm736, %v1107
      %1474 = vst.msk [vmem:[#allocation3 + $0x68] sm:$0xf] %vm736, %v1116
      %1475 = vst.msk [vmem:[#allocation3 + $0x70] sm:$0xf] %vm736, %v1125
      %1476 = vst.msk [vmem:[#allocation3 + $0x78] sm:$0xf] %vm736, %v1134
      %1477 = vst.msk [vmem:[#allocation3 + $0x80] sm:$0xf] %vm736, %v1143
      %1478 = vst.msk [vmem:[#allocation3 + $0x88] sm:$0xf] %vm736, %v1152
      %1479 = vst.msk [vmem:[#allocation3 + $0x90] sm:$0xf] %vm736, %v1161
      %1480 = vst.msk [vmem:[#allocation3 + $0x98] sm:$0xf] %vm736, %v1170
      %1481 = vst.msk [vmem:[#allocation3 + $0xa0] sm:$0xf] %vm736, %v1179
      %1482 = vst.msk [vmem:[#allocation3 + $0xa8] sm:$0xf] %vm736, %v1188
      %1483 = vst.msk [vmem:[#allocation3 + $0xb0] sm:$0xf] %vm736, %v1197
      %1484 = vst.msk [vmem:[#allocation3 + $0xb8] sm:$0xf] %vm736, %v1206
      %1485 = vst.msk [vmem:[#allocation3 + $0xc0] sm:$0xf] %vm736, %v1215
      %1486 = vst.msk [vmem:[#allocation3 + $0xc8] sm:$0xf] %vm736, %v1224
      %1487 = vst.msk [vmem:[#allocation3 + $0xd0] sm:$0xf] %vm736, %v1233
      %1488 = vst.msk [vmem:[#allocation3 + $0xd8] sm:$0xf] %vm736, %v1242
      %1489 = vst.msk [vmem:[#allocation3 + $0xe0] sm:$0xf] %vm736, %v1251
      %1490 = vst.msk [vmem:[#allocation3 + $0xe8] sm:$0xf] %vm736, %v1260
      %1491 = vst.msk [vmem:[#allocation3 + $0xf0] sm:$0xf] %vm736, %v1269
      %1492 = vst.msk [vmem:[#allocation3 + $0xf8] sm:$0xf] %vm736, %v1278
      %1493 = vst.msk [vmem:[#allocation3 + $0x100] sm:$0xf] %vm736, %v1287
      %1494 = vst.msk [vmem:[#allocation3 + $0x108] sm:$0xf] %vm736, %v1296
      %1495 = vst.msk [vmem:[#allocation3 + $0x110] sm:$0xf] %vm736, %v1305
      %1496 = vst.msk [vmem:[#allocation3 + $0x118] sm:$0xf] %vm736, %v1314
      %1497 = vst.msk [vmem:[#allocation3 + $0x120] sm:$0xf] %vm736, %v1323
      %1498 = vst.msk [vmem:[#allocation3 + $0x128] sm:$0xf] %vm736, %v1332
      %1499 = vst.msk [vmem:[#allocation3 + $0x130] sm:$0xf] %vm736, %v1341
      %1500 = vst.msk [vmem:[#allocation3 + $0x138] sm:$0xf] %vm736, %v1350
      %1501 = vst.msk [vmem:[#allocation3 + $0x140] sm:$0xf] %vm736, %v1359
      %1502 = vst.msk [vmem:[#allocation3 + $0x148] sm:$0xf] %vm736, %v1368
      %1503 = vst.msk [vmem:[#allocation3 + $0x150] sm:$0xf] %vm736, %v1377
      %1504 = vst.msk [vmem:[#allocation3 + $0x158] sm:$0xf] %vm736, %v1386
      %1505 = vst.msk [vmem:[#allocation3 + $0x160] sm:$0xf] %vm736, %v1395
      %1506 = vst.msk [vmem:[#allocation3 + $0x168] sm:$0xf] %vm736, %v1404
      %1507 = vst.msk [vmem:[#allocation3 + $0x170] sm:$0xf] %vm736, %v1413
      %v1508 = vld [vmem:[#allocation2 + $0x4] sm:$0xf]
      %v1509 = vld [vmem:[#allocation2 + $0x8] sm:$0xf]
      %v1510 = vld [vmem:[#allocation2 + $0xc] sm:$0xf]
      %v1511 = vld [vmem:[#allocation2 + $0x10] sm:$0xf]
      %v1512 = vld [vmem:[#allocation2 + $0x14] sm:$0xf]
      %v1513 = vld [vmem:[#allocation2 + $0x18] sm:$0xf]
      %v1514 = vld [vmem:[#allocation2 + $0x1c] sm:$0xf]
      %v1515 = vld [vmem:[#allocation2 + $0x20] sm:$0xf]
      %v1516 = vld [vmem:[#allocation2 + $0x24] sm:$0xf]
      %v1517 = vld [vmem:[#allocation2 + $0x28] sm:$0xf]
      %v1518 = vld [vmem:[#allocation2 + $0x2c] sm:$0xf]
      %v1519 = vld [vmem:[#allocation2 + $0x30] sm:$0xf]
      %v1520 = vld [vmem:[#allocation2 + $0x34] sm:$0xf]
      %v1521 = vld [vmem:[#allocation2 + $0x38] sm:$0xf]
      %v1522 = vld [vmem:[#allocation2 + $0x3c] sm:$0xf]
      %v1523 = vld [vmem:[#allocation2 + $0x40] sm:$0xf]
      %v1524 = vld [vmem:[#allocation2 + $0x44] sm:$0xf]
      %v1525 = vld [vmem:[#allocation2 + $0x48] sm:$0xf]
      %v1526 = vld [vmem:[#allocation2 + $0x4c] sm:$0xf]
      %v1527 = vld [vmem:[#allocation2 + $0x50] sm:$0xf]
      %v1528 = vld [vmem:[#allocation2 + $0x54] sm:$0xf]
      %v1529 = vld [vmem:[#allocation2 + $0x58] sm:$0xf]
      %v1530 = vld [vmem:[#allocation2 + $0x5c] sm:$0xf]
      %v1531 = vld [vmem:[#allocation2 + $0x60] sm:$0xf]
      %v1532 = vld [vmem:[#allocation2 + $0x64] sm:$0xf]
      %v1533 = vld [vmem:[#allocation2 + $0x68] sm:$0xf]
      %v1534 = vld [vmem:[#allocation2 + $0x6c] sm:$0xf]
      %v1535 = vld [vmem:[#allocation2 + $0x70] sm:$0xf]
      %v1536 = vld [vmem:[#allocation2 + $0x74] sm:$0xf]
      %v1537 = vld [vmem:[#allocation2 + $0x78] sm:$0xf]
      %v1538 = vld [vmem:[#allocation2 + $0x7c] sm:$0xf]
      %v1539 = vld [vmem:[#allocation2 + $0x80] sm:$0xf]
      %v1540 = vld [vmem:[#allocation2 + $0x84] sm:$0xf]
      %v1541 = vld [vmem:[#allocation2 + $0x88] sm:$0xf]
      %v1542 = vld [vmem:[#allocation2 + $0x8c] sm:$0xf]
      %v1543 = vld [vmem:[#allocation2 + $0x90] sm:$0xf]
      %v1544 = vld [vmem:[#allocation2 + $0x94] sm:$0xf]
      %v1545 = vld [vmem:[#allocation2 + $0x98] sm:$0xf]
      %v1546 = vld [vmem:[#allocation2 + $0x9c] sm:$0xf]
      %v1547 = vld [vmem:[#allocation2 + $0xa0] sm:$0xf]
      %v1548 = vld [vmem:[#allocation2 + $0xa4] sm:$0xf]
      %v1549 = vld [vmem:[#allocation2 + $0xa8] sm:$0xf]
      %v1550 = vld [vmem:[#allocation2 + $0xac] sm:$0xf]
      %v1551 = vld [vmem:[#allocation2 + $0xb0] sm:$0xf]
      %v1552 = vld [vmem:[#allocation2 + $0xb4] sm:$0xf]
      %v1553 = vld [vmem:[#allocation2 + $0xb8] sm:$0xf]
      %v1554 = vld [vmem:[#allocation2 + $0xbc] sm:$0xf]
      %1602 = vrot.lane.b32.xlu0 %v1508, 16
      %v1603 = vpop.permute.xlu0 %1602
      %1604 = vrot.lane.b32.xlu0 %v1509, 16
      %v1605 = vpop.permute.xlu0 %1604
      %1606 = vrot.lane.b32.xlu0 %v1510, 16
      %v1607 = vpop.permute.xlu0 %1606
      %1608 = vrot.lane.b32.xlu0 %v1511, 16
      %v1609 = vpop.permute.xlu0 %1608
      %1610 = vrot.lane.b32.xlu0 %v1512, 16
      %v1611 = vpop.permute.xlu0 %1610
      %1612 = vrot.lane.b32.xlu0 %v1513, 16
      %v1613 = vpop.permute.xlu0 %1612
      %1614 = vrot.lane.b32.xlu0 %v1514, 16
      %v1615 = vpop.permute.xlu0 %1614
      %1616 = vrot.lane.b32.xlu0 %v1515, 16
      %v1617 = vpop.permute.xlu0 %1616
      %1618 = vrot.lane.b32.xlu0 %v1516, 16
      %v1619 = vpop.permute.xlu0 %1618
      %1620 = vrot.lane.b32.xlu0 %v1517, 16
      %v1621 = vpop.permute.xlu0 %1620
      %1622 = vrot.lane.b32.xlu0 %v1518, 16
      %v1623 = vpop.permute.xlu0 %1622
      %1624 = vrot.lane.b32.xlu0 %v1519, 16
      %v1625 = vpop.permute.xlu0 %1624
      %1626 = vrot.lane.b32.xlu0 %v1520, 16
      %v1627 = vpop.permute.xlu0 %1626
      %1628 = vrot.lane.b32.xlu0 %v1521, 16
      %v1629 = vpop.permute.xlu0 %1628
      %1630 = vrot.lane.b32.xlu0 %v1522, 16
      %v1631 = vpop.permute.xlu0 %1630
      %1632 = vrot.lane.b32.xlu0 %v1523, 16
      %v1633 = vpop.permute.xlu0 %1632
      %1634 = vrot.lane.b32.xlu0 %v1524, 16
      %v1635 = vpop.permute.xlu0 %1634
      %1636 = vrot.lane.b32.xlu0 %v1525, 16
      %v1637 = vpop.permute.xlu0 %1636
      %1638 = vrot.lane.b32.xlu0 %v1526, 16
      %v1639 = vpop.permute.xlu0 %1638
      %1640 = vrot.lane.b32.xlu0 %v1527, 16
      %v1641 = vpop.permute.xlu0 %1640
      %1642 = vrot.lane.b32.xlu0 %v1528, 16
      %v1643 = vpop.permute.xlu0 %1642
      %1644 = vrot.lane.b32.xlu0 %v1529, 16
      %v1645 = vpop.permute.xlu0 %1644
      %1646 = vrot.lane.b32.xlu0 %v1530, 16
      %v1647 = vpop.permute.xlu0 %1646
      %1648 = vrot.lane.b32.xlu0 %v1531, 16
      %v1649 = vpop.permute.xlu0 %1648
      %1650 = vrot.lane.b32.xlu0 %v1532, 16
      %v1651 = vpop.permute.xlu0 %1650
      %1652 = vrot.lane.b32.xlu0 %v1533, 16
      %v1653 = vpop.permute.xlu0 %1652
      %1654 = vrot.lane.b32.xlu0 %v1534, 16
      %v1655 = vpop.permute.xlu0 %1654
      %1656 = vrot.lane.b32.xlu0 %v1535, 16
      %v1657 = vpop.permute.xlu0 %1656
      %1658 = vrot.lane.b32.xlu0 %v1536, 16
      %v1659 = vpop.permute.xlu0 %1658
      %1660 = vrot.lane.b32.xlu0 %v1537, 16
      %v1661 = vpop.permute.xlu0 %1660
      %1662 = vrot.lane.b32.xlu0 %v1538, 16
      %v1663 = vpop.permute.xlu0 %1662
      %1664 = vrot.lane.b32.xlu0 %v1539, 16
      %v1665 = vpop.permute.xlu0 %1664
      %1666 = vrot.lane.b32.xlu0 %v1540, 16
      %v1667 = vpop.permute.xlu0 %1666
      %1668 = vrot.lane.b32.xlu0 %v1541, 16
      %v1669 = vpop.permute.xlu0 %1668
      %1670 = vrot.lane.b32.xlu0 %v1542, 16
      %v1671 = vpop.permute.xlu0 %1670
      %1672 = vrot.lane.b32.xlu0 %v1543, 16
      %v1673 = vpop.permute.xlu0 %1672
      %1674 = vrot.lane.b32.xlu0 %v1544, 16
      %v1675 = vpop.permute.xlu0 %1674
      %1676 = vrot.lane.b32.xlu0 %v1545, 16
      %v1677 = vpop.permute.xlu0 %1676
      %1678 = vrot.lane.b32.xlu0 %v1546, 16
      %v1679 = vpop.permute.xlu0 %1678
      %1680 = vrot.lane.b32.xlu0 %v1547, 16
      %v1681 = vpop.permute.xlu0 %1680
      %1682 = vrot.lane.b32.xlu0 %v1548, 16
      %v1683 = vpop.permute.xlu0 %1682
      %1684 = vrot.lane.b32.xlu0 %v1549, 16
      %v1685 = vpop.permute.xlu0 %1684
      %1686 = vrot.lane.b32.xlu0 %v1550, 16
      %v1687 = vpop.permute.xlu0 %1686
      %1688 = vrot.lane.b32.xlu0 %v1551, 16
      %v1689 = vpop.permute.xlu0 %1688
      %1690 = vrot.lane.b32.xlu0 %v1552, 16
      %v1691 = vpop.permute.xlu0 %1690
      %1692 = vrot.lane.b32.xlu0 %v1553, 16
      %v1693 = vpop.permute.xlu0 %1692
      %1694 = vrot.lane.b32.xlu0 %v1554, 16
      %v1695 = vpop.permute.xlu0 %1694
      %vm1743 = vcmask 257152
      %1744 = vst.msk [vmem:[#allocation3] sm:$0xf] %vm1743, %v1603
      %1745 = vst.msk [vmem:[#allocation3 + $0x8] sm:$0xf] %vm1743, %v1605
      %1746 = vst.msk [vmem:[#allocation3 + $0x10] sm:$0xf] %vm1743, %v1607
      %1747 = vst.msk [vmem:[#allocation3 + $0x18] sm:$0xf] %vm1743, %v1609
      %1748 = vst.msk [vmem:[#allocation3 + $0x20] sm:$0xf] %vm1743, %v1611
      %1749 = vst.msk [vmem:[#allocation3 + $0x28] sm:$0xf] %vm1743, %v1613
      %1750 = vst.msk [vmem:[#allocation3 + $0x30] sm:$0xf] %vm1743, %v1615
      %1751 = vst.msk [vmem:[#allocation3 + $0x38] sm:$0xf] %vm1743, %v1617
      %1752 = vst.msk [vmem:[#allocation3 + $0x40] sm:$0xf] %vm1743, %v1619
      %1753 = vst.msk [vmem:[#allocation3 + $0x48] sm:$0xf] %vm1743, %v1621
      %1754 = vst.msk [vmem:[#allocation3 + $0x50] sm:$0xf] %vm1743, %v1623
      %1755 = vst.msk [vmem:[#allocation3 + $0x58] sm:$0xf] %vm1743, %v1625
      %1756 = vst.msk [vmem:[#allocation3 + $0x60] sm:$0xf] %vm1743, %v1627
      %1757 = vst.msk [vmem:[#allocation3 + $0x68] sm:$0xf] %vm1743, %v1629
      %1758 = vst.msk [vmem:[#allocation3 + $0x70] sm:$0xf] %vm1743, %v1631
      %1759 = vst.msk [vmem:[#allocation3 + $0x78] sm:$0xf] %vm1743, %v1633
      %1760 = vst.msk [vmem:[#allocation3 + $0x80] sm:$0xf] %vm1743, %v1635
      %1761 = vst.msk [vmem:[#allocation3 + $0x88] sm:$0xf] %vm1743, %v1637
      %1762 = vst.msk [vmem:[#allocation3 + $0x90] sm:$0xf] %vm1743, %v1639
      %1763 = vst.msk [vmem:[#allocation3 + $0x98] sm:$0xf] %vm1743, %v1641
      %1764 = vst.msk [vmem:[#allocation3 + $0xa0] sm:$0xf] %vm1743, %v1643
      %1765 = vst.msk [vmem:[#allocation3 + $0xa8] sm:$0xf] %vm1743, %v1645
      %1766 = vst.msk [vmem:[#allocation3 + $0xb0] sm:$0xf] %vm1743, %v1647
      %1767 = vst.msk [vmem:[#allocation3 + $0xb8] sm:$0xf] %vm1743, %v1649
      %1768 = vst.msk [vmem:[#allocation3 + $0xc0] sm:$0xf] %vm1743, %v1651
      %1769 = vst.msk [vmem:[#allocation3 + $0xc8] sm:$0xf] %vm1743, %v1653
      %1770 = vst.msk [vmem:[#allocation3 + $0xd0] sm:$0xf] %vm1743, %v1655
      %1771 = vst.msk [vmem:[#allocation3 + $0xd8] sm:$0xf] %vm1743, %v1657
      %1772 = vst.msk [vmem:[#allocation3 + $0xe0] sm:$0xf] %vm1743, %v1659
      %1773 = vst.msk [vmem:[#allocation3 + $0xe8] sm:$0xf] %vm1743, %v1661
      %1774 = vst.msk [vmem:[#allocation3 + $0xf0] sm:$0xf] %vm1743, %v1663
      %1775 = vst.msk [vmem:[#allocation3 + $0xf8] sm:$0xf] %vm1743, %v1665
      %1776 = vst.msk [vmem:[#allocation3 + $0x100] sm:$0xf] %vm1743, %v1667
      %1777 = vst.msk [vmem:[#allocation3 + $0x108] sm:$0xf] %vm1743, %v1669
      %1778 = vst.msk [vmem:[#allocation3 + $0x110] sm:$0xf] %vm1743, %v1671
      %1779 = vst.msk [vmem:[#allocation3 + $0x118] sm:$0xf] %vm1743, %v1673
      %1780 = vst.msk [vmem:[#allocation3 + $0x120] sm:$0xf] %vm1743, %v1675
      %1781 = vst.msk [vmem:[#allocation3 + $0x128] sm:$0xf] %vm1743, %v1677
      %1782 = vst.msk [vmem:[#allocation3 + $0x130] sm:$0xf] %vm1743, %v1679
      %1783 = vst.msk [vmem:[#allocation3 + $0x138] sm:$0xf] %vm1743, %v1681
      %1784 = vst.msk [vmem:[#allocation3 + $0x140] sm:$0xf] %vm1743, %v1683
      %1785 = vst.msk [vmem:[#allocation3 + $0x148] sm:$0xf] %vm1743, %v1685
      %1786 = vst.msk [vmem:[#allocation3 + $0x150] sm:$0xf] %vm1743, %v1687
      %1787 = vst.msk [vmem:[#allocation3 + $0x158] sm:$0xf] %vm1743, %v1689
      %1788 = vst.msk [vmem:[#allocation3 + $0x160] sm:$0xf] %vm1743, %v1691
      %1789 = vst.msk [vmem:[#allocation3 + $0x168] sm:$0xf] %vm1743, %v1693
      %1790 = vst.msk [vmem:[#allocation3 + $0x170] sm:$0xf] %vm1743, %v1695
      %v1791 = vld [vmem:[#allocation2 + $0x4] sm:$0xf]
      %v1792 = vld [vmem:[#allocation2 + $0x8] sm:$0xf]
      %v1793 = vld [vmem:[#allocation2 + $0xc] sm:$0xf]
      %v1794 = vld [vmem:[#allocation2 + $0x10] sm:$0xf]
      %v1795 = vld [vmem:[#allocation2 + $0x14] sm:$0xf]
      %v1796 = vld [vmem:[#allocation2 + $0x18] sm:$0xf]
      %v1797 = vld [vmem:[#allocation2 + $0x1c] sm:$0xf]
      %v1798 = vld [vmem:[#allocation2 + $0x20] sm:$0xf]
      %v1799 = vld [vmem:[#allocation2 + $0x24] sm:$0xf]
      %v1800 = vld [vmem:[#allocation2 + $0x28] sm:$0xf]
      %v1801 = vld [vmem:[#allocation2 + $0x2c] sm:$0xf]
      %v1802 = vld [vmem:[#allocation2 + $0x30] sm:$0xf]
      %v1803 = vld [vmem:[#allocation2 + $0x34] sm:$0xf]
      %v1804 = vld [vmem:[#allocation2 + $0x38] sm:$0xf]
      %v1805 = vld [vmem:[#allocation2 + $0x3c] sm:$0xf]
      %v1806 = vld [vmem:[#allocation2 + $0x40] sm:$0xf]
      %v1807 = vld [vmem:[#allocation2 + $0x44] sm:$0xf]
      %v1808 = vld [vmem:[#allocation2 + $0x48] sm:$0xf]
      %v1809 = vld [vmem:[#allocation2 + $0x4c] sm:$0xf]
      %v1810 = vld [vmem:[#allocation2 + $0x50] sm:$0xf]
      %v1811 = vld [vmem:[#allocation2 + $0x54] sm:$0xf]
      %v1812 = vld [vmem:[#allocation2 + $0x58] sm:$0xf]
      %v1813 = vld [vmem:[#allocation2 + $0x5c] sm:$0xf]
      %v1814 = vld [vmem:[#allocation2 + $0x60] sm:$0xf]
      %v1815 = vld [vmem:[#allocation2 + $0x64] sm:$0xf]
      %v1816 = vld [vmem:[#allocation2 + $0x68] sm:$0xf]
      %v1817 = vld [vmem:[#allocation2 + $0x6c] sm:$0xf]
      %v1818 = vld [vmem:[#allocation2 + $0x70] sm:$0xf]
      %v1819 = vld [vmem:[#allocation2 + $0x74] sm:$0xf]
      %v1820 = vld [vmem:[#allocation2 + $0x78] sm:$0xf]
      %v1821 = vld [vmem:[#allocation2 + $0x7c] sm:$0xf]
      %v1822 = vld [vmem:[#allocation2 + $0x80] sm:$0xf]
      %v1823 = vld [vmem:[#allocation2 + $0x84] sm:$0xf]
      %v1824 = vld [vmem:[#allocation2 + $0x88] sm:$0xf]
      %v1825 = vld [vmem:[#allocation2 + $0x8c] sm:$0xf]
      %v1826 = vld [vmem:[#allocation2 + $0x90] sm:$0xf]
      %v1827 = vld [vmem:[#allocation2 + $0x94] sm:$0xf]
      %v1828 = vld [vmem:[#allocation2 + $0x98] sm:$0xf]
      %v1829 = vld [vmem:[#allocation2 + $0x9c] sm:$0xf]
      %v1830 = vld [vmem:[#allocation2 + $0xa0] sm:$0xf]
      %v1831 = vld [vmem:[#allocation2 + $0xa4] sm:$0xf]
      %v1832 = vld [vmem:[#allocation2 + $0xa8] sm:$0xf]
      %v1833 = vld [vmem:[#allocation2 + $0xac] sm:$0xf]
      %v1834 = vld [vmem:[#allocation2 + $0xb0] sm:$0xf]
      %v1835 = vld [vmem:[#allocation2 + $0xb4] sm:$0xf]
      %v1836 = vld [vmem:[#allocation2 + $0xb8] sm:$0xf]
      %v1837 = vld [vmem:[#allocation2 + $0xbc] sm:$0xf]
      %v1838 = vld [vmem:[#allocation2 + $0xc0] sm:$0x1]
      %vm1839 = vsmask.f32 3328
      %vm1840 = vsmask.f32 7440
      %vm1841 = vmor %vm1839, %vm1840
      %v1843 = vshrl.u32 %v1791, 16
      %v1845 = vrot.slane %v1843, 4
      %v1846 = vshll.u32 %v1791, 16
      %v1848 = vrot.slane %v1846, 5
      %v1849 = vor.u32 %v1845, %v1848
      %v1850 = vrot.slane %v1849, 4
      %v1852 = vshll.u32 %v1792, 16
      %v1854 = vrot.slane %v1852, 5
      %v1855 = vsel %vm1841, %v1850, %v1854
      %v1856 = vshrl.u32 %v1792, 16
      %v1858 = vrot.slane %v1856, 4
      %v1859 = vor.u32 %v1858, %v1854
      %v1860 = vrot.slane %v1859, 4
      %v1862 = vshll.u32 %v1793, 16
      %v1864 = vrot.slane %v1862, 5
      %v1865 = vsel %vm1841, %v1860, %v1864
      %v1866 = vshrl.u32 %v1793, 16
      %v1868 = vrot.slane %v1866, 4
      %v1869 = vor.u32 %v1868, %v1864
      %v1870 = vrot.slane %v1869, 4
      %v1872 = vshll.u32 %v1794, 16
      %v1874 = vrot.slane %v1872, 5
      %v1875 = vsel %vm1841, %v1870, %v1874
      %v1876 = vshrl.u32 %v1794, 16
      %v1878 = vrot.slane %v1876, 4
      %v1879 = vor.u32 %v1878, %v1874
      %v1880 = vrot.slane %v1879, 4
      %v1882 = vshll.u32 %v1795, 16
      %v1884 = vrot.slane %v1882, 5
      %v1885 = vsel %vm1841, %v1880, %v1884
      %v1886 = vshrl.u32 %v1795, 16
      %v1888 = vrot.slane %v1886, 4
      %v1889 = vor.u32 %v1888, %v1884
      %v1890 = vrot.slane %v1889, 4
      %v1892 = vshll.u32 %v1796, 16
      %v1894 = vrot.slane %v1892, 5
      %v1895 = vsel %vm1841, %v1890, %v1894
      %v1896 = vshrl.u32 %v1796, 16
      %v1898 = vrot.slane %v1896, 4
      %v1899 = vor.u32 %v1898, %v1894
      %v1900 = vrot.slane %v1899, 4
      %v1902 = vshll.u32 %v1797, 16
      %v1904 = vrot.slane %v1902, 5
      %v1905 = vsel %vm1841, %v1900, %v1904
      %v1906 = vshrl.u32 %v1797, 16
      %v1908 = vrot.slane %v1906, 4
      %v1909 = vor.u32 %v1908, %v1904
      %v1910 = vrot.slane %v1909, 4
      %v1912 = vshll.u32 %v1798, 16
      %v1914 = vrot.slane %v1912, 5
      %v1915 = vsel %vm1841, %v1910, %v1914
      %v1916 = vshrl.u32 %v1798, 16
      %v1918 = vrot.slane %v1916, 4
      %v1919 = vor.u32 %v1918, %v1914
      %v1920 = vrot.slane %v1919, 4
      %v1922 = vshll.u32 %v1799, 16
      %v1924 = vrot.slane %v1922, 5
      %v1925 = vsel %vm1841, %v1920, %v1924
      %v1926 = vshrl.u32 %v1799, 16
      %v1928 = vrot.slane %v1926, 4
      %v1929 = vor.u32 %v1928, %v1924
      %v1930 = vrot.slane %v1929, 4
      %v1932 = vshll.u32 %v1800, 16
      %v1934 = vrot.slane %v1932, 5
      %v1935 = vsel %vm1841, %v1930, %v1934
      %v1936 = vshrl.u32 %v1800, 16
      %v1938 = vrot.slane %v1936, 4
      %v1939 = vor.u32 %v1938, %v1934
      %v1940 = vrot.slane %v1939, 4
      %v1942 = vshll.u32 %v1801, 16
      %v1944 = vrot.slane %v1942, 5
      %v1945 = vsel %vm1841, %v1940, %v1944
      %v1946 = vshrl.u32 %v1801, 16
      %v1948 = vrot.slane %v1946, 4
      %v1949 = vor.u32 %v1948, %v1944
      %v1950 = vrot.slane %v1949, 4
      %v1952 = vshll.u32 %v1802, 16
      %v1954 = vrot.slane %v1952, 5
      %v1955 = vsel %vm1841, %v1950, %v1954
      %v1956 = vshrl.u32 %v1802, 16
      %v1958 = vrot.slane %v1956, 4
      %v1959 = vor.u32 %v1958, %v1954
      %v1960 = vrot.slane %v1959, 4
      %v1962 = vshll.u32 %v1803, 16
      %v1964 = vrot.slane %v1962, 5
      %v1965 = vsel %vm1841, %v1960, %v1964
      %v1966 = vshrl.u32 %v1803, 16
      %v1968 = vrot.slane %v1966, 4
      %v1969 = vor.u32 %v1968, %v1964
      %v1970 = vrot.slane %v1969, 4
      %v1972 = vshll.u32 %v1804, 16
      %v1974 = vrot.slane %v1972, 5
      %v1975 = vsel %vm1841, %v1970, %v1974
      %v1976 = vshrl.u32 %v1804, 16
      %v1978 = vrot.slane %v1976, 4
      %v1979 = vor.u32 %v1978, %v1974
      %v1980 = vrot.slane %v1979, 4
      %v1982 = vshll.u32 %v1805, 16
      %v1984 = vrot.slane %v1982, 5
      %v1985 = vsel %vm1841, %v1980, %v1984
      %v1986 = vshrl.u32 %v1805, 16
      %v1988 = vrot.slane %v1986, 4
      %v1989 = vor.u32 %v1988, %v1984
      %v1990 = vrot.slane %v1989, 4
      %v1992 = vshll.u32 %v1806, 16
      %v1994 = vrot.slane %v1992, 5
      %v1995 = vsel %vm1841, %v1990, %v1994
      %v1996 = vshrl.u32 %v1806, 16
      %v1998 = vrot.slane %v1996, 4
      %v1999 = vor.u32 %v1998, %v1994
      %v2000 = vrot.slane %v1999, 4
      %v2002 = vshll.u32 %v1807, 16
      %v2004 = vrot.slane %v2002, 5
      %v2005 = vsel %vm1841, %v2000, %v2004
      %v2006 = vshrl.u32 %v1807, 16
      %v2008 = vrot.slane %v2006, 4
      %v2009 = vor.u32 %v2008, %v2004
      %v2010 = vrot.slane %v2009, 4
      %v2012 = vshll.u32 %v1808, 16
      %v2014 = vrot.slane %v2012, 5
      %v2015 = vsel %vm1841, %v2010, %v2014
      %v2016 = vshrl.u32 %v1808, 16
      %v2018 = vrot.slane %v2016, 4
      %v2019 = vor.u32 %v2018, %v2014
      %v2020 = vrot.slane %v2019, 4
      %v2022 = vshll.u32 %v1809, 16
      %v2024 = vrot.slane %v2022, 5
      %v2025 = vsel %vm1841, %v2020, %v2024
      %v2026 = vshrl.u32 %v1809, 16
      %v2028 = vrot.slane %v2026, 4
      %v2029 = vor.u32 %v2028, %v2024
      %v2030 = vrot.slane %v2029, 4
      %v2032 = vshll.u32 %v1810, 16
      %v2034 = vrot.slane %v2032, 5
      %v2035 = vsel %vm1841, %v2030, %v2034
      %v2036 = vshrl.u32 %v1810, 16
      %v2038 = vrot.slane %v2036, 4
      %v2039 = vor.u32 %v2038, %v2034
      %v2040 = vrot.slane %v2039, 4
      %v2042 = vshll.u32 %v1811, 16
      %v2044 = vrot.slane %v2042, 5
      %v2045 = vsel %vm1841, %v2040, %v2044
      %v2046 = vshrl.u32 %v1811, 16
      %v2048 = vrot.slane %v2046, 4
      %v2049 = vor.u32 %v2048, %v2044
      %v2050 = vrot.slane %v2049, 4
      %v2052 = vshll.u32 %v1812, 16
      %v2054 = vrot.slane %v2052, 5
      %v2055 = vsel %vm1841, %v2050, %v2054
      %v2056 = vshrl.u32 %v1812, 16
      %v2058 = vrot.slane %v2056, 4
      %v2059 = vor.u32 %v2058, %v2054
      %v2060 = vrot.slane %v2059, 4
      %v2062 = vshll.u32 %v1813, 16
      %v2064 = vrot.slane %v2062, 5
      %v2065 = vsel %vm1841, %v2060, %v2064
      %v2066 = vshrl.u32 %v1813, 16
      %v2068 = vrot.slane %v2066, 4
      %v2069 = vor.u32 %v2068, %v2064
      %v2070 = vrot.slane %v2069, 4
      %v2072 = vshll.u32 %v1814, 16
      %v2074 = vrot.slane %v2072, 5
      %v2075 = vsel %vm1841, %v2070, %v2074
      %v2076 = vshrl.u32 %v1814, 16
      %v2078 = vrot.slane %v2076, 4
      %v2079 = vor.u32 %v2078, %v2074
      %v2080 = vrot.slane %v2079, 4
      %v2082 = vshll.u32 %v1815, 16
      %v2084 = vrot.slane %v2082, 5
      %v2085 = vsel %vm1841, %v2080, %v2084
      %v2086 = vshrl.u32 %v1815, 16
      %v2088 = vrot.slane %v2086, 4
      %v2089 = vor.u32 %v2088, %v2084
      %v2090 = vrot.slane %v2089, 4
      %v2092 = vshll.u32 %v1816, 16
      %v2094 = vrot.slane %v2092, 5
      %v2095 = vsel %vm1841, %v2090, %v2094
      %v2096 = vshrl.u32 %v1816, 16
      %v2098 = vrot.slane %v2096, 4
      %v2099 = vor.u32 %v2098, %v2094
      %v2100 = vrot.slane %v2099, 4
      %v2102 = vshll.u32 %v1817, 16
      %v2104 = vrot.slane %v2102, 5
      %v2105 = vsel %vm1841, %v2100, %v2104
      %v2106 = vshrl.u32 %v1817, 16
      %v2108 = vrot.slane %v2106, 4
      %v2109 = vor.u32 %v2108, %v2104
      %v2110 = vrot.slane %v2109, 4
      %v2112 = vshll.u32 %v1818, 16
      %v2114 = vrot.slane %v2112, 5
      %v2115 = vsel %vm1841, %v2110, %v2114
      %v2116 = vshrl.u32 %v1818, 16
      %v2118 = vrot.slane %v2116, 4
      %v2119 = vor.u32 %v2118, %v2114
      %v2120 = vrot.slane %v2119, 4
      %v2122 = vshll.u32 %v1819, 16
      %v2124 = vrot.slane %v2122, 5
      %v2125 = vsel %vm1841, %v2120, %v2124
      %v2126 = vshrl.u32 %v1819, 16
      %v2128 = vrot.slane %v2126, 4
      %v2129 = vor.u32 %v2128, %v2124
      %v2130 = vrot.slane %v2129, 4
      %v2132 = vshll.u32 %v1820, 16
      %v2134 = vrot.slane %v2132, 5
      %v2135 = vsel %vm1841, %v2130, %v2134
      %v2136 = vshrl.u32 %v1820, 16
      %v2138 = vrot.slane %v2136, 4
      %v2139 = vor.u32 %v2138, %v2134
      %v2140 = vrot.slane %v2139, 4
      %v2142 = vshll.u32 %v1821, 16
      %v2144 = vrot.slane %v2142, 5
      %v2145 = vsel %vm1841, %v2140, %v2144
      %v2146 = vshrl.u32 %v1821, 16
      %v2148 = vrot.slane %v2146, 4
      %v2149 = vor.u32 %v2148, %v2144
      %v2150 = vrot.slane %v2149, 4
      %v2152 = vshll.u32 %v1822, 16
      %v2154 = vrot.slane %v2152, 5
      %v2155 = vsel %vm1841, %v2150, %v2154
      %v2156 = vshrl.u32 %v1822, 16
      %v2158 = vrot.slane %v2156, 4
      %v2159 = vor.u32 %v2158, %v2154
      %v2160 = vrot.slane %v2159, 4
      %v2162 = vshll.u32 %v1823, 16
      %v2164 = vrot.slane %v2162, 5
      %v2165 = vsel %vm1841, %v2160, %v2164
      %v2166 = vshrl.u32 %v1823, 16
      %v2168 = vrot.slane %v2166, 4
      %v2169 = vor.u32 %v2168, %v2164
      %v2170 = vrot.slane %v2169, 4
      %v2172 = vshll.u32 %v1824, 16
      %v2174 = vrot.slane %v2172, 5
      %v2175 = vsel %vm1841, %v2170, %v2174
      %v2176 = vshrl.u32 %v1824, 16
      %v2178 = vrot.slane %v2176, 4
      %v2179 = vor.u32 %v2178, %v2174
      %v2180 = vrot.slane %v2179, 4
      %v2182 = vshll.u32 %v1825, 16
      %v2184 = vrot.slane %v2182, 5
      %v2185 = vsel %vm1841, %v2180, %v2184
      %v2186 = vshrl.u32 %v1825, 16
      %v2188 = vrot.slane %v2186, 4
      %v2189 = vor.u32 %v2188, %v2184
      %v2190 = vrot.slane %v2189, 4
      %v2192 = vshll.u32 %v1826, 16
      %v2194 = vrot.slane %v2192, 5
      %v2195 = vsel %vm1841, %v2190, %v2194
      %v2196 = vshrl.u32 %v1826, 16
      %v2198 = vrot.slane %v2196, 4
      %v2199 = vor.u32 %v2198, %v2194
      %v2200 = vrot.slane %v2199, 4
      %v2202 = vshll.u32 %v1827, 16
      %v2204 = vrot.slane %v2202, 5
      %v2205 = vsel %vm1841, %v2200, %v2204
      %v2206 = vshrl.u32 %v1827, 16
      %v2208 = vrot.slane %v2206, 4
      %v2209 = vor.u32 %v2208, %v2204
      %v2210 = vrot.slane %v2209, 4
      %v2212 = vshll.u32 %v1828, 16
      %v2214 = vrot.slane %v2212, 5
      %v2215 = vsel %vm1841, %v2210, %v2214
      %v2216 = vshrl.u32 %v1828, 16
      %v2218 = vrot.slane %v2216, 4
      %v2219 = vor.u32 %v2218, %v2214
      %v2220 = vrot.slane %v2219, 4
      %v2222 = vshll.u32 %v1829, 16
      %v2224 = vrot.slane %v2222, 5
      %v2225 = vsel %vm1841, %v2220, %v2224
      %v2226 = vshrl.u32 %v1829, 16
      %v2228 = vrot.slane %v2226, 4
      %v2229 = vor.u32 %v2228, %v2224
      %v2230 = vrot.slane %v2229, 4
      %v2232 = vshll.u32 %v1830, 16
      %v2234 = vrot.slane %v2232, 5
      %v2235 = vsel %vm1841, %v2230, %v2234
      %v2236 = vshrl.u32 %v1830, 16
      %v2238 = vrot.slane %v2236, 4
      %v2239 = vor.u32 %v2238, %v2234
      %v2240 = vrot.slane %v2239, 4
      %v2242 = vshll.u32 %v1831, 16
      %v2244 = vrot.slane %v2242, 5
      %v2245 = vsel %vm1841, %v2240, %v2244
      %v2246 = vshrl.u32 %v1831, 16
      %v2248 = vrot.slane %v2246, 4
      %v2249 = vor.u32 %v2248, %v2244
      %v2250 = vrot.slane %v2249, 4
      %v2252 = vshll.u32 %v1832, 16
      %v2254 = vrot.slane %v2252, 5
      %v2255 = vsel %vm1841, %v2250, %v2254
      %v2256 = vshrl.u32 %v1832, 16
      %v2258 = vrot.slane %v2256, 4
      %v2259 = vor.u32 %v2258, %v2254
      %v2260 = vrot.slane %v2259, 4
      %v2262 = vshll.u32 %v1833, 16
      %v2264 = vrot.slane %v2262, 5
      %v2265 = vsel %vm1841, %v2260, %v2264
      %v2266 = vshrl.u32 %v1833, 16
      %v2268 = vrot.slane %v2266, 4
      %v2269 = vor.u32 %v2268, %v2264
      %v2270 = vrot.slane %v2269, 4
      %v2272 = vshll.u32 %v1834, 16
      %v2274 = vrot.slane %v2272, 5
      %v2275 = vsel %vm1841, %v2270, %v2274
      %v2276 = vshrl.u32 %v1834, 16
      %v2278 = vrot.slane %v2276, 4
      %v2279 = vor.u32 %v2278, %v2274
      %v2280 = vrot.slane %v2279, 4
      %v2282 = vshll.u32 %v1835, 16
      %v2284 = vrot.slane %v2282, 5
      %v2285 = vsel %vm1841, %v2280, %v2284
      %v2286 = vshrl.u32 %v1835, 16
      %v2288 = vrot.slane %v2286, 4
      %v2289 = vor.u32 %v2288, %v2284
      %v2290 = vrot.slane %v2289, 4
      %v2292 = vshll.u32 %v1836, 16
      %v2294 = vrot.slane %v2292, 5
      %v2295 = vsel %vm1841, %v2290, %v2294
      %v2296 = vshrl.u32 %v1836, 16
      %v2298 = vrot.slane %v2296, 4
      %v2299 = vor.u32 %v2298, %v2294
      %v2300 = vrot.slane %v2299, 4
      %v2302 = vshll.u32 %v1837, 16
      %v2304 = vrot.slane %v2302, 5
      %v2305 = vsel %vm1841, %v2300, %v2304
      %v2306 = vshrl.u32 %v1837, 16
      %v2308 = vrot.slane %v2306, 4
      %v2309 = vor.u32 %v2308, %v2304
      %v2310 = vrot.slane %v2309, 4
      %v2312 = vshll.u32 %v1838, 16
      %v2314 = vrot.slane %v2312, 5
      %v2315 = vsel %vm1841, %v2310, %v2314
      %2316 = vrot.lane.b32.xlu0 %v1855, 32
      %v2317 = vpop.permute.xlu0 %2316
      %2318 = vrot.lane.b32.xlu0 %v1865, 32
      %v2319 = vpop.permute.xlu0 %2318
      %2320 = vrot.lane.b32.xlu0 %v1875, 32
      %v2321 = vpop.permute.xlu0 %2320
      %2322 = vrot.lane.b32.xlu0 %v1885, 32
      %v2323 = vpop.permute.xlu0 %2322
      %2324 = vrot.lane.b32.xlu0 %v1895, 32
      %v2325 = vpop.permute.xlu0 %2324
      %2326 = vrot.lane.b32.xlu0 %v1905, 32
      %v2327 = vpop.permute.xlu0 %2326
      %2328 = vrot.lane.b32.xlu0 %v1915, 32
      %v2329 = vpop.permute.xlu0 %2328
      %2330 = vrot.lane.b32.xlu0 %v1925, 32
      %v2331 = vpop.permute.xlu0 %2330
      %2332 = vrot.lane.b32.xlu0 %v1935, 32
      %v2333 = vpop.permute.xlu0 %2332
      %2334 = vrot.lane.b32.xlu0 %v1945, 32
      %v2335 = vpop.permute.xlu0 %2334
      %2336 = vrot.lane.b32.xlu0 %v1955, 32
      %v2337 = vpop.permute.xlu0 %2336
      %2338 = vrot.lane.b32.xlu0 %v1965, 32
      %v2339 = vpop.permute.xlu0 %2338
      %2340 = vrot.lane.b32.xlu0 %v1975, 32
      %v2341 = vpop.permute.xlu0 %2340
      %2342 = vrot.lane.b32.xlu0 %v1985, 32
      %v2343 = vpop.permute.xlu0 %2342
      %2344 = vrot.lane.b32.xlu0 %v1995, 32
      %v2345 = vpop.permute.xlu0 %2344
      %2346 = vrot.lane.b32.xlu0 %v2005, 32
      %v2347 = vpop.permute.xlu0 %2346
      %2348 = vrot.lane.b32.xlu0 %v2015, 32
      %v2349 = vpop.permute.xlu0 %2348
      %2350 = vrot.lane.b32.xlu0 %v2025, 32
      %v2351 = vpop.permute.xlu0 %2350
      %2352 = vrot.lane.b32.xlu0 %v2035, 32
      %v2353 = vpop.permute.xlu0 %2352
      %2354 = vrot.lane.b32.xlu0 %v2045, 32
      %v2355 = vpop.permute.xlu0 %2354
      %2356 = vrot.lane.b32.xlu0 %v2055, 32
      %v2357 = vpop.permute.xlu0 %2356
      %2358 = vrot.lane.b32.xlu0 %v2065, 32
      %v2359 = vpop.permute.xlu0 %2358
      %2360 = vrot.lane.b32.xlu0 %v2075, 32
      %v2361 = vpop.permute.xlu0 %2360
      %2362 = vrot.lane.b32.xlu0 %v2085, 32
      %v2363 = vpop.permute.xlu0 %2362
      %2364 = vrot.lane.b32.xlu0 %v2095, 32
      %v2365 = vpop.permute.xlu0 %2364
      %2366 = vrot.lane.b32.xlu0 %v2105, 32
      %v2367 = vpop.permute.xlu0 %2366
      %2368 = vrot.lane.b32.xlu0 %v2115, 32
      %v2369 = vpop.permute.xlu0 %2368
      %2370 = vrot.lane.b32.xlu0 %v2125, 32
      %v2371 = vpop.permute.xlu0 %2370
      %2372 = vrot.lane.b32.xlu0 %v2135, 32
      %v2373 = vpop.permute.xlu0 %2372
      %2374 = vrot.lane.b32.xlu0 %v2145, 32
      %v2375 = vpop.permute.xlu0 %2374
      %2376 = vrot.lane.b32.xlu0 %v2155, 32
      %v2377 = vpop.permute.xlu0 %2376
      %2378 = vrot.lane.b32.xlu0 %v2165, 32
      %v2379 = vpop.permute.xlu0 %2378
      %2380 = vrot.lane.b32.xlu0 %v2175, 32
      %v2381 = vpop.permute.xlu0 %2380
      %2382 = vrot.lane.b32.xlu0 %v2185, 32
      %v2383 = vpop.permute.xlu0 %2382
      %2384 = vrot.lane.b32.xlu0 %v2195, 32
      %v2385 = vpop.permute.xlu0 %2384
      %2386 = vrot.lane.b32.xlu0 %v2205, 32
      %v2387 = vpop.permute.xlu0 %2386
      %2388 = vrot.lane.b32.xlu0 %v2215, 32
      %v2389 = vpop.permute.xlu0 %2388
      %2390 = vrot.lane.b32.xlu0 %v2225, 32
      %v2391 = vpop.permute.xlu0 %2390
      %2392 = vrot.lane.b32.xlu0 %v2235, 32
      %v2393 = vpop.permute.xlu0 %2392
      %2394 = vrot.lane.b32.xlu0 %v2245, 32
      %v2395 = vpop.permute.xlu0 %2394
      %2396 = vrot.lane.b32.xlu0 %v2255, 32
      %v2397 = vpop.permute.xlu0 %2396
      %2398 = vrot.lane.b32.xlu0 %v2265, 32
      %v2399 = vpop.permute.xlu0 %2398
      %2400 = vrot.lane.b32.xlu0 %v2275, 32
      %v2401 = vpop.permute.xlu0 %2400
      %2402 = vrot.lane.b32.xlu0 %v2285, 32
      %v2403 = vpop.permute.xlu0 %2402
      %2404 = vrot.lane.b32.xlu0 %v2295, 32
      %v2405 = vpop.permute.xlu0 %2404
      %2406 = vrot.lane.b32.xlu0 %v2305, 32
      %v2407 = vpop.permute.xlu0 %2406
      %2408 = vrot.lane.b32.xlu0 %v2315, 32
      %v2409 = vpop.permute.xlu0 %2408
      %vm2457 = vcmask 388352
      %2458 = vst.msk [vmem:[#allocation3] sm:$0xf] %vm2457, %v2317
      %2459 = vst.msk [vmem:[#allocation3 + $0x8] sm:$0xf] %vm2457, %v2319
      %2460 = vst.msk [vmem:[#allocation3 + $0x10] sm:$0xf] %vm2457, %v2321
      %2461 = vst.msk [vmem:[#allocation3 + $0x18] sm:$0xf] %vm2457, %v2323
      %2462 = vst.msk [vmem:[#allocation3 + $0x20] sm:$0xf] %vm2457, %v2325
      %2463 = vst.msk [vmem:[#allocation3 + $0x28] sm:$0xf] %vm2457, %v2327
      %2464 = vst.msk [vmem:[#allocation3 + $0x30] sm:$0xf] %vm2457, %v2329
      %2465 = vst.msk [vmem:[#allocation3 + $0x38] sm:$0xf] %vm2457, %v2331
      %2466 = vst.msk [vmem:[#allocation3 + $0x40] sm:$0xf] %vm2457, %v2333
      %2467 = vst.msk [vmem:[#allocation3 + $0x48] sm:$0xf] %vm2457, %v2335
      %2468 = vst.msk [vmem:[#allocation3 + $0x50] sm:$0xf] %vm2457, %v2337
      %2469 = vst.msk [vmem:[#allocation3 + $0x58] sm:$0xf] %vm2457, %v2339
      %2470 = vst.msk [vmem:[#allocation3 + $0x60] sm:$0xf] %vm2457, %v2341
      %2471 = vst.msk [vmem:[#allocation3 + $0x68] sm:$0xf] %vm2457, %v2343
      %2472 = vst.msk [vmem:[#allocation3 + $0x70] sm:$0xf] %vm2457, %v2345
      %2473 = vst.msk [vmem:[#allocation3 + $0x78] sm:$0xf] %vm2457, %v2347
      %2474 = vst.msk [vmem:[#allocation3 + $0x80] sm:$0xf] %vm2457, %v2349
      %2475 = vst.msk [vmem:[#allocation3 + $0x88] sm:$0xf] %vm2457, %v2351
      %2476 = vst.msk [vmem:[#allocation3 + $0x90] sm:$0xf] %vm2457, %v2353
      %2477 = vst.msk [vmem:[#allocation3 + $0x98] sm:$0xf] %vm2457, %v2355
      %2478 = vst.msk [vmem:[#allocation3 + $0xa0] sm:$0xf] %vm2457, %v2357
      %2479 = vst.msk [vmem:[#allocation3 + $0xa8] sm:$0xf] %vm2457, %v2359
      %2480 = vst.msk [vmem:[#allocation3 + $0xb0] sm:$0xf] %vm2457, %v2361
      %2481 = vst.msk [vmem:[#allocation3 + $0xb8] sm:$0xf] %vm2457, %v2363
      %2482 = vst.msk [vmem:[#allocation3 + $0xc0] sm:$0xf] %vm2457, %v2365
      %2483 = vst.msk [vmem:[#allocation3 + $0xc8] sm:$0xf] %vm2457, %v2367
      %2484 = vst.msk [vmem:[#allocation3 + $0xd0] sm:$0xf] %vm2457, %v2369
      %2485 = vst.msk [vmem:[#allocation3 + $0xd8] sm:$0xf] %vm2457, %v2371
      %2486 = vst.msk [vmem:[#allocation3 + $0xe0] sm:$0xf] %vm2457, %v2373
      %2487 = vst.msk [vmem:[#allocation3 + $0xe8] sm:$0xf] %vm2457, %v2375
      %2488 = vst.msk [vmem:[#allocation3 + $0xf0] sm:$0xf] %vm2457, %v2377
      %2489 = vst.msk [vmem:[#allocation3 + $0xf8] sm:$0xf] %vm2457, %v2379
      %2490 = vst.msk [vmem:[#allocation3 + $0x100] sm:$0xf] %vm2457, %v2381
      %2491 = vst.msk [vmem:[#allocation3 + $0x108] sm:$0xf] %vm2457, %v2383
      %2492 = vst.msk [vmem:[#allocation3 + $0x110] sm:$0xf] %vm2457, %v2385
      %2493 = vst.msk [vmem:[#allocation3 + $0x118] sm:$0xf] %vm2457, %v2387
      %2494 = vst.msk [vmem:[#allocation3 + $0x120] sm:$0xf] %vm2457, %v2389
      %2495 = vst.msk [vmem:[#allocation3 + $0x128] sm:$0xf] %vm2457, %v2391
      %2496 = vst.msk [vmem:[#allocation3 + $0x130] sm:$0xf] %vm2457, %v2393
      %2497 = vst.msk [vmem:[#allocation3 + $0x138] sm:$0xf] %vm2457, %v2395
      %2498 = vst.msk [vmem:[#allocation3 + $0x140] sm:$0xf] %vm2457, %v2397
      %2499 = vst.msk [vmem:[#allocation3 + $0x148] sm:$0xf] %vm2457, %v2399
      %2500 = vst.msk [vmem:[#allocation3 + $0x150] sm:$0xf] %vm2457, %v2401
      %2501 = vst.msk [vmem:[#allocation3 + $0x158] sm:$0xf] %vm2457, %v2403
      %2502 = vst.msk [vmem:[#allocation3 + $0x160] sm:$0xf] %vm2457, %v2405
      %2503 = vst.msk [vmem:[#allocation3 + $0x168] sm:$0xf] %vm2457, %v2407
      %2504 = vst.msk [vmem:[#allocation3 + $0x170] sm:$0xf] %vm2457, %v2409
      %v2505 = vld [vmem:[#allocation2 + $0xc] sm:$0x8]
      %v2506 = vld [vmem:[#allocation2 + $0x10] sm:$0xf]
      %v2507 = vld [vmem:[#allocation2 + $0x14] sm:$0xf]
      %v2508 = vld [vmem:[#allocation2 + $0x18] sm:$0xf]
      %v2509 = vld [vmem:[#allocation2 + $0x1c] sm:$0xf]
      %v2510 = vld [vmem:[#allocation2 + $0x20] sm:$0xf]
      %v2511 = vld [vmem:[#allocation2 + $0x24] sm:$0xf]
      %v2512 = vld [vmem:[#allocation2 + $0x28] sm:$0xf]
      %v2513 = vld [vmem:[#allocation2 + $0x2c] sm:$0xf]
      %v2514 = vld [vmem:[#allocation2 + $0x30] sm:$0xf]
      %v2515 = vld [vmem:[#allocation2 + $0x34] sm:$0xf]
      %v2516 = vld [vmem:[#allocation2 + $0x38] sm:$0xf]
      %v2517 = vld [vmem:[#allocation2 + $0x3c] sm:$0xf]
      %v2518 = vld [vmem:[#allocation2 + $0x40] sm:$0xf]
      %v2519 = vld [vmem:[#allocation2 + $0x44] sm:$0xf]
      %v2520 = vld [vmem:[#allocation2 + $0x48] sm:$0xf]
      %v2521 = vld [vmem:[#allocation2 + $0x4c] sm:$0xf]
      %v2522 = vld [vmem:[#allocation2 + $0x50] sm:$0xf]
      %v2523 = vld [vmem:[#allocation2 + $0x54] sm:$0xf]
      %v2524 = vld [vmem:[#allocation2 + $0x58] sm:$0xf]
      %v2525 = vld [vmem:[#allocation2 + $0x5c] sm:$0xf]
      %v2526 = vld [vmem:[#allocation2 + $0x60] sm:$0xf]
      %v2527 = vld [vmem:[#allocation2 + $0x64] sm:$0xf]
      %v2528 = vld [vmem:[#allocation2 + $0x68] sm:$0xf]
      %v2529 = vld [vmem:[#allocation2 + $0x6c] sm:$0xf]
      %v2530 = vld [vmem:[#allocation2 + $0x70] sm:$0xf]
      %v2531 = vld [vmem:[#allocation2 + $0x74] sm:$0xf]
      %v2532 = vld [vmem:[#allocation2 + $0x78] sm:$0xf]
      %v2533 = vld [vmem:[#allocation2 + $0x7c] sm:$0xf]
      %v2534 = vld [vmem:[#allocation2 + $0x80] sm:$0xf]
      %v2535 = vld [vmem:[#allocation2 + $0x84] sm:$0xf]
      %v2536 = vld [vmem:[#allocation2 + $0x88] sm:$0xf]
      %v2537 = vld [vmem:[#allocation2 + $0x8c] sm:$0xf]
      %v2538 = vld [vmem:[#allocation2 + $0x90] sm:$0xf]
      %v2539 = vld [vmem:[#allocation2 + $0x94] sm:$0xf]
      %v2540 = vld [vmem:[#allocation2 + $0x98] sm:$0xf]
      %v2541 = vld [vmem:[#allocation2 + $0x9c] sm:$0xf]
      %v2542 = vld [vmem:[#allocation2 + $0xa0] sm:$0xf]
      %v2543 = vld [vmem:[#allocation2 + $0xa4] sm:$0xf]
      %v2544 = vld [vmem:[#allocation2 + $0xa8] sm:$0xf]
      %v2545 = vld [vmem:[#allocation2 + $0xac] sm:$0xf]
      %v2546 = vld [vmem:[#allocation2 + $0xb0] sm:$0xf]
      %v2547 = vld [vmem:[#allocation2 + $0xb4] sm:$0xf]
      %v2548 = vld [vmem:[#allocation2 + $0xb8] sm:$0xf]
      %v2549 = vld [vmem:[#allocation2 + $0xbc] sm:$0xf]
      %v2550 = vld [vmem:[#allocation2 + $0xc0] sm:$0xf]
      %v2551 = vld [vmem:[#allocation2 + $0xc4] sm:$0xf]
      %v2552 = vld [vmem:[#allocation2 + $0xc8] sm:$0xf]
      %v2554 = vshrl.u32 %v2505, 16
      %v2556 = vrot.slane %v2554, 7
      %v2557 = vrot.slane %v2556, 4
      %v2559 = vshrl.u32 %v2506, 16
      %v2561 = vrot.slane %v2559, 7
      %v2562 = vshll.u32 %v2506, 16
      %v2564 = vor.u32 %v2561, %v2562
      %v2565 = vsel %vm986, %v2557, %v2564
      %v2566 = vrot.slane %v2561, 4
      %v2568 = vshrl.u32 %v2507, 16
      %v2570 = vrot.slane %v2568, 7
      %v2571 = vshll.u32 %v2507, 16
      %v2573 = vor.u32 %v2570, %v2571
      %v2574 = vsel %vm986, %v2566, %v2573
      %v2575 = vrot.slane %v2570, 4
      %v2577 = vshrl.u32 %v2508, 16
      %v2579 = vrot.slane %v2577, 7
      %v2580 = vshll.u32 %v2508, 16
      %v2582 = vor.u32 %v2579, %v2580
      %v2583 = vsel %vm986, %v2575, %v2582
      %v2584 = vrot.slane %v2579, 4
      %v2586 = vshrl.u32 %v2509, 16
      %v2588 = vrot.slane %v2586, 7
      %v2589 = vshll.u32 %v2509, 16
      %v2591 = vor.u32 %v2588, %v2589
      %v2592 = vsel %vm986, %v2584, %v2591
      %v2593 = vrot.slane %v2588, 4
      %v2595 = vshrl.u32 %v2510, 16
      %v2597 = vrot.slane %v2595, 7
      %v2598 = vshll.u32 %v2510, 16
      %v2600 = vor.u32 %v2597, %v2598
      %v2601 = vsel %vm986, %v2593, %v2600
      %v2602 = vrot.slane %v2597, 4
      %v2604 = vshrl.u32 %v2511, 16
      %v2606 = vrot.slane %v2604, 7
      %v2607 = vshll.u32 %v2511, 16
      %v2609 = vor.u32 %v2606, %v2607
      %v2610 = vsel %vm986, %v2602, %v2609
      %v2611 = vrot.slane %v2606, 4
      %v2613 = vshrl.u32 %v2512, 16
      %v2615 = vrot.slane %v2613, 7
      %v2616 = vshll.u32 %v2512, 16
      %v2618 = vor.u32 %v2615, %v2616
      %v2619 = vsel %vm986, %v2611, %v2618
      %v2620 = vrot.slane %v2615, 4
      %v2622 = vshrl.u32 %v2513, 16
      %v2624 = vrot.slane %v2622, 7
      %v2625 = vshll.u32 %v2513, 16
      %v2627 = vor.u32 %v2624, %v2625
      %v2628 = vsel %vm986, %v2620, %v2627
      %v2629 = vrot.slane %v2624, 4
      %v2631 = vshrl.u32 %v2514, 16
      %v2633 = vrot.slane %v2631, 7
      %v2634 = vshll.u32 %v2514, 16
      %v2636 = vor.u32 %v2633, %v2634
      %v2637 = vsel %vm986, %v2629, %v2636
      %v2638 = vrot.slane %v2633, 4
      %v2640 = vshrl.u32 %v2515, 16
      %v2642 = vrot.slane %v2640, 7
      %v2643 = vshll.u32 %v2515, 16
      %v2645 = vor.u32 %v2642, %v2643
      %v2646 = vsel %vm986, %v2638, %v2645
      %v2647 = vrot.slane %v2642, 4
      %v2649 = vshrl.u32 %v2516, 16
      %v2651 = vrot.slane %v2649, 7
      %v2652 = vshll.u32 %v2516, 16
      %v2654 = vor.u32 %v2651, %v2652
      %v2655 = vsel %vm986, %v2647, %v2654
      %v2656 = vrot.slane %v2651, 4
      %v2658 = vshrl.u32 %v2517, 16
      %v2660 = vrot.slane %v2658, 7
      %v2661 = vshll.u32 %v2517, 16
      %v2663 = vor.u32 %v2660, %v2661
      %v2664 = vsel %vm986, %v2656, %v2663
      %v2665 = vrot.slane %v2660, 4
      %v2667 = vshrl.u32 %v2518, 16
      %v2669 = vrot.slane %v2667, 7
      %v2670 = vshll.u32 %v2518, 16
      %v2672 = vor.u32 %v2669, %v2670
      %v2673 = vsel %vm986, %v2665, %v2672
      %v2674 = vrot.slane %v2669, 4
      %v2676 = vshrl.u32 %v2519, 16
      %v2678 = vrot.slane %v2676, 7
      %v2679 = vshll.u32 %v2519, 16
      %v2681 = vor.u32 %v2678, %v2679
      %v2682 = vsel %vm986, %v2674, %v2681
      %v2683 = vrot.slane %v2678, 4
      %v2685 = vshrl.u32 %v2520, 16
      %v2687 = vrot.slane %v2685, 7
      %v2688 = vshll.u32 %v2520, 16
      %v2690 = vor.u32 %v2687, %v2688
      %v2691 = vsel %vm986, %v2683, %v2690
      %v2692 = vrot.slane %v2687, 4
      %v2694 = vshrl.u32 %v2521, 16
      %v2696 = vrot.slane %v2694, 7
      %v2697 = vshll.u32 %v2521, 16
      %v2699 = vor.u32 %v2696, %v2697
      %v2700 = vsel %vm986, %v2692, %v2699
      %v2701 = vrot.slane %v2696, 4
      %v2703 = vshrl.u32 %v2522, 16
      %v2705 = vrot.slane %v2703, 7
      %v2706 = vshll.u32 %v2522, 16
      %v2708 = vor.u32 %v2705, %v2706
      %v2709 = vsel %vm986, %v2701, %v2708
      %v2710 = vrot.slane %v2705, 4
      %v2712 = vshrl.u32 %v2523, 16
      %v2714 = vrot.slane %v2712, 7
      %v2715 = vshll.u32 %v2523, 16
      %v2717 = vor.u32 %v2714, %v2715
      %v2718 = vsel %vm986, %v2710, %v2717
      %v2719 = vrot.slane %v2714, 4
      %v2721 = vshrl.u32 %v2524, 16
      %v2723 = vrot.slane %v2721, 7
      %v2724 = vshll.u32 %v2524, 16
      %v2726 = vor.u32 %v2723, %v2724
      %v2727 = vsel %vm986, %v2719, %v2726
      %v2728 = vrot.slane %v2723, 4
      %v2730 = vshrl.u32 %v2525, 16
      %v2732 = vrot.slane %v2730, 7
      %v2733 = vshll.u32 %v2525, 16
      %v2735 = vor.u32 %v2732, %v2733
      %v2736 = vsel %vm986, %v2728, %v2735
      %v2737 = vrot.slane %v2732, 4
      %v2739 = vshrl.u32 %v2526, 16
      %v2741 = vrot.slane %v2739, 7
      %v2742 = vshll.u32 %v2526, 16
      %v2744 = vor.u32 %v2741, %v2742
      %v2745 = vsel %vm986, %v2737, %v2744
      %v2746 = vrot.slane %v2741, 4
      %v2748 = vshrl.u32 %v2527, 16
      %v2750 = vrot.slane %v2748, 7
      %v2751 = vshll.u32 %v2527, 16
      %v2753 = vor.u32 %v2750, %v2751
      %v2754 = vsel %vm986, %v2746, %v2753
      %v2755 = vrot.slane %v2750, 4
      %v2757 = vshrl.u32 %v2528, 16
      %v2759 = vrot.slane %v2757, 7
      %v2760 = vshll.u32 %v2528, 16
      %v2762 = vor.u32 %v2759, %v2760
      %v2763 = vsel %vm986, %v2755, %v2762
      %v2764 = vrot.slane %v2759, 4
      %v2766 = vshrl.u32 %v2529, 16
      %v2768 = vrot.slane %v2766, 7
      %v2769 = vshll.u32 %v2529, 16
      %v2771 = vor.u32 %v2768, %v2769
      %v2772 = vsel %vm986, %v2764, %v2771
      %v2773 = vrot.slane %v2768, 4
      %v2775 = vshrl.u32 %v2530, 16
      %v2777 = vrot.slane %v2775, 7
      %v2778 = vshll.u32 %v2530, 16
      %v2780 = vor.u32 %v2777, %v2778
      %v2781 = vsel %vm986, %v2773, %v2780
      %v2782 = vrot.slane %v2777, 4
      %v2784 = vshrl.u32 %v2531, 16
      %v2786 = vrot.slane %v2784, 7
      %v2787 = vshll.u32 %v2531, 16
      %v2789 = vor.u32 %v2786, %v2787
      %v2790 = vsel %vm986, %v2782, %v2789
      %v2791 = vrot.slane %v2786, 4
      %v2793 = vshrl.u32 %v2532, 16
      %v2795 = vrot.slane %v2793, 7
      %v2796 = vshll.u32 %v2532, 16
      %v2798 = vor.u32 %v2795, %v2796
      %v2799 = vsel %vm986, %v2791, %v2798
      %v2800 = vrot.slane %v2795, 4
      %v2802 = vshrl.u32 %v2533, 16
      %v2804 = vrot.slane %v2802, 7
      %v2805 = vshll.u32 %v2533, 16
      %v2807 = vor.u32 %v2804, %v2805
      %v2808 = vsel %vm986, %v2800, %v2807
      %v2809 = vrot.slane %v2804, 4
      %v2811 = vshrl.u32 %v2534, 16
      %v2813 = vrot.slane %v2811, 7
      %v2814 = vshll.u32 %v2534, 16
      %v2816 = vor.u32 %v2813, %v2814
      %v2817 = vsel %vm986, %v2809, %v2816
      %v2818 = vrot.slane %v2813, 4
      %v2820 = vshrl.u32 %v2535, 16
      %v2822 = vrot.slane %v2820, 7
      %v2823 = vshll.u32 %v2535, 16
      %v2825 = vor.u32 %v2822, %v2823
      %v2826 = vsel %vm986, %v2818, %v2825
      %v2827 = vrot.slane %v2822, 4
      %v2829 = vshrl.u32 %v2536, 16
      %v2831 = vrot.slane %v2829, 7
      %v2832 = vshll.u32 %v2536, 16
      %v2834 = vor.u32 %v2831, %v2832
      %v2835 = vsel %vm986, %v2827, %v2834
      %v2836 = vrot.slane %v2831, 4
      %v2838 = vshrl.u32 %v2537, 16
      %v2840 = vrot.slane %v2838, 7
      %v2841 = vshll.u32 %v2537, 16
      %v2843 = vor.u32 %v2840, %v2841
      %v2844 = vsel %vm986, %v2836, %v2843
      %v2845 = vrot.slane %v2840, 4
      %v2847 = vshrl.u32 %v2538, 16
      %v2849 = vrot.slane %v2847, 7
      %v2850 = vshll.u32 %v2538, 16
      %v2852 = vor.u32 %v2849, %v2850
      %v2853 = vsel %vm986, %v2845, %v2852
      %v2854 = vrot.slane %v2849, 4
      %v2856 = vshrl.u32 %v2539, 16
      %v2858 = vrot.slane %v2856, 7
      %v2859 = vshll.u32 %v2539, 16
      %v2861 = vor.u32 %v2858, %v2859
      %v2862 = vsel %vm986, %v2854, %v2861
      %v2863 = vrot.slane %v2858, 4
      %v2865 = vshrl.u32 %v2540, 16
      %v2867 = vrot.slane %v2865, 7
      %v2868 = vshll.u32 %v2540, 16
      %v2870 = vor.u32 %v2867, %v2868
      %v2871 = vsel %vm986, %v2863, %v2870
      %v2872 = vrot.slane %v2867, 4
      %v2874 = vshrl.u32 %v2541, 16
      %v2876 = vrot.slane %v2874, 7
      %v2877 = vshll.u32 %v2541, 16
      %v2879 = vor.u32 %v2876, %v2877
      %v2880 = vsel %vm986, %v2872, %v2879
      %v2881 = vrot.slane %v2876, 4
      %v2883 = vshrl.u32 %v2542, 16
      %v2885 = vrot.slane %v2883, 7
      %v2886 = vshll.u32 %v2542, 16
      %v2888 = vor.u32 %v2885, %v2886
      %v2889 = vsel %vm986, %v2881, %v2888
      %v2890 = vrot.slane %v2885, 4
      %v2892 = vshrl.u32 %v2543, 16
      %v2894 = vrot.slane %v2892, 7
      %v2895 = vshll.u32 %v2543, 16
      %v2897 = vor.u32 %v2894, %v2895
      %v2898 = vsel %vm986, %v2890, %v2897
      %v2899 = vrot.slane %v2894, 4
      %v2901 = vshrl.u32 %v2544, 16
      %v2903 = vrot.slane %v2901, 7
      %v2904 = vshll.u32 %v2544, 16
      %v2906 = vor.u32 %v2903, %v2904
      %v2907 = vsel %vm986, %v2899, %v2906
      %v2908 = vrot.slane %v2903, 4
      %v2910 = vshrl.u32 %v2545, 16
      %v2912 = vrot.slane %v2910, 7
      %v2913 = vshll.u32 %v2545, 16
      %v2915 = vor.u32 %v2912, %v2913
      %v2916 = vsel %vm986, %v2908, %v2915
      %v2917 = vrot.slane %v2912, 4
      %v2919 = vshrl.u32 %v2546, 16
      %v2921 = vrot.slane %v2919, 7
      %v2922 = vshll.u32 %v2546, 16
      %v2924 = vor.u32 %v2921, %v2922
      %v2925 = vsel %vm986, %v2917, %v2924
      %v2926 = vrot.slane %v2921, 4
      %v2928 = vshrl.u32 %v2547, 16
      %v2930 = vrot.slane %v2928, 7
      %v2931 = vshll.u32 %v2547, 16
      %v2933 = vor.u32 %v2930, %v2931
      %v2934 = vsel %vm986, %v2926, %v2933
      %v2935 = vrot.slane %v2930, 4
      %v2937 = vshrl.u32 %v2548, 16
      %v2939 = vrot.slane %v2937, 7
      %v2940 = vshll.u32 %v2548, 16
      %v2942 = vor.u32 %v2939, %v2940
      %v2943 = vsel %vm986, %v2935, %v2942
      %v2944 = vrot.slane %v2939, 4
      %v2946 = vshrl.u32 %v2549, 16
      %v2948 = vrot.slane %v2946, 7
      %v2949 = vshll.u32 %v2549, 16
      %v2951 = vor.u32 %v2948, %v2949
      %v2952 = vsel %vm986, %v2944, %v2951
      %v2953 = vrot.slane %v2948, 4
      %v2955 = vshrl.u32 %v2550, 16
      %v2957 = vrot.slane %v2955, 7
      %v2958 = vshll.u32 %v2550, 16
      %v2960 = vor.u32 %v2957, %v2958
      %v2961 = vsel %vm986, %v2953, %v2960
      %v2962 = vrot.slane %v2957, 4
      %v2964 = vshrl.u32 %v2551, 16
      %v2966 = vrot.slane %v2964, 7
      %v2967 = vshll.u32 %v2551, 16
      %v2969 = vor.u32 %v2966, %v2967
      %v2970 = vsel %vm986, %v2962, %v2969
      %v2971 = vrot.slane %v2966, 4
      %v2973 = vshrl.u32 %v2552, 16
      %v2975 = vrot.slane %v2973, 7
      %v2976 = vshll.u32 %v2552, 16
      %v2978 = vor.u32 %v2975, %v2976
      %v2979 = vsel %vm986, %v2971, %v2978
      %2980 = vrot.lane.b32.xlu0 %v2565, 48
      %v2981 = vpop.permute.xlu0 %2980
      %2982 = vrot.lane.b32.xlu0 %v2574, 48
      %v2983 = vpop.permute.xlu0 %2982
      %2984 = vrot.lane.b32.xlu0 %v2583, 48
      %v2985 = vpop.permute.xlu0 %2984
      %2986 = vrot.lane.b32.xlu0 %v2592, 48
      %v2987 = vpop.permute.xlu0 %2986
      %2988 = vrot.lane.b32.xlu0 %v2601, 48
      %v2989 = vpop.permute.xlu0 %2988
      %2990 = vrot.lane.b32.xlu0 %v2610, 48
      %v2991 = vpop.permute.xlu0 %2990
      %2992 = vrot.lane.b32.xlu0 %v2619, 48
      %v2993 = vpop.permute.xlu0 %2992
      %2994 = vrot.lane.b32.xlu0 %v2628, 48
      %v2995 = vpop.permute.xlu0 %2994
      %2996 = vrot.lane.b32.xlu0 %v2637, 48
      %v2997 = vpop.permute.xlu0 %2996
      %2998 = vrot.lane.b32.xlu0 %v2646, 48
      %v2999 = vpop.permute.xlu0 %2998
      %3000 = vrot.lane.b32.xlu0 %v2655, 48
      %v3001 = vpop.permute.xlu0 %3000
      %3002 = vrot.lane.b32.xlu0 %v2664, 48
      %v3003 = vpop.permute.xlu0 %3002
      %3004 = vrot.lane.b32.xlu0 %v2673, 48
      %v3005 = vpop.permute.xlu0 %3004
      %3006 = vrot.lane.b32.xlu0 %v2682, 48
      %v3007 = vpop.permute.xlu0 %3006
      %3008 = vrot.lane.b32.xlu0 %v2691, 48
      %v3009 = vpop.permute.xlu0 %3008
      %3010 = vrot.lane.b32.xlu0 %v2700, 48
      %v3011 = vpop.permute.xlu0 %3010
      %3012 = vrot.lane.b32.xlu0 %v2709, 48
      %v3013 = vpop.permute.xlu0 %3012
      %3014 = vrot.lane.b32.xlu0 %v2718, 48
      %v3015 = vpop.permute.xlu0 %3014
      %3016 = vrot.lane.b32.xlu0 %v2727, 48
      %v3017 = vpop.permute.xlu0 %3016
      %3018 = vrot.lane.b32.xlu0 %v2736, 48
      %v3019 = vpop.permute.xlu0 %3018
      %3020 = vrot.lane.b32.xlu0 %v2745, 48
      %v3021 = vpop.permute.xlu0 %3020
      %3022 = vrot.lane.b32.xlu0 %v2754, 48
      %v3023 = vpop.permute.xlu0 %3022
      %3024 = vrot.lane.b32.xlu0 %v2763, 48
      %v3025 = vpop.permute.xlu0 %3024
      %3026 = vrot.lane.b32.xlu0 %v2772, 48
      %v3027 = vpop.permute.xlu0 %3026
      %3028 = vrot.lane.b32.xlu0 %v2781, 48
      %v3029 = vpop.permute.xlu0 %3028
      %3030 = vrot.lane.b32.xlu0 %v2790, 48
      %v3031 = vpop.permute.xlu0 %3030
      %3032 = vrot.lane.b32.xlu0 %v2799, 48
      %v3033 = vpop.permute.xlu0 %3032
      %3034 = vrot.lane.b32.xlu0 %v2808, 48
      %v3035 = vpop.permute.xlu0 %3034
      %3036 = vrot.lane.b32.xlu0 %v2817, 48
      %v3037 = vpop.permute.xlu0 %3036
      %3038 = vrot.lane.b32.xlu0 %v2826, 48
      %v3039 = vpop.permute.xlu0 %3038
      %3040 = vrot.lane.b32.xlu0 %v2835, 48
      %v3041 = vpop.permute.xlu0 %3040
      %3042 = vrot.lane.b32.xlu0 %v2844, 48
      %v3043 = vpop.permute.xlu0 %3042
      %3044 = vrot.lane.b32.xlu0 %v2853, 48
      %v3045 = vpop.permute.xlu0 %3044
      %3046 = vrot.lane.b32.xlu0 %v2862, 48
      %v3047 = vpop.permute.xlu0 %3046
      %3048 = vrot.lane.b32.xlu0 %v2871, 48
      %v3049 = vpop.permute.xlu0 %3048
      %3050 = vrot.lane.b32.xlu0 %v2880, 48
      %v3051 = vpop.permute.xlu0 %3050
      %3052 = vrot.lane.b32.xlu0 %v2889, 48
      %v3053 = vpop.permute.xlu0 %3052
      %3054 = vrot.lane.b32.xlu0 %v2898, 48
      %v3055 = vpop.permute.xlu0 %3054
      %3056 = vrot.lane.b32.xlu0 %v2907, 48
      %v3057 = vpop.permute.xlu0 %3056
      %3058 = vrot.lane.b32.xlu0 %v2916, 48
      %v3059 = vpop.permute.xlu0 %3058
      %3060 = vrot.lane.b32.xlu0 %v2925, 48
      %v3061 = vpop.permute.xlu0 %3060
      %3062 = vrot.lane.b32.xlu0 %v2934, 48
      %v3063 = vpop.permute.xlu0 %3062
      %3064 = vrot.lane.b32.xlu0 %v2943, 48
      %v3065 = vpop.permute.xlu0 %3064
      %3066 = vrot.lane.b32.xlu0 %v2952, 48
      %v3067 = vpop.permute.xlu0 %3066
      %3068 = vrot.lane.b32.xlu0 %v2961, 48
      %v3069 = vpop.permute.xlu0 %3068
      %3070 = vrot.lane.b32.xlu0 %v2970, 48
      %v3071 = vpop.permute.xlu0 %3070
      %3072 = vrot.lane.b32.xlu0 %v2979, 48
      %v3073 = vpop.permute.xlu0 %3072
      %vm3121 = vcmask 519552
      %3122 = vst.msk [vmem:[#allocation3] sm:$0xf] %vm3121, %v2981
      %3123 = vst.msk [vmem:[#allocation3 + $0x8] sm:$0xf] %vm3121, %v2983
      %3124 = vst.msk [vmem:[#allocation3 + $0x10] sm:$0xf] %vm3121, %v2985
      %3125 = vst.msk [vmem:[#allocation3 + $0x18] sm:$0xf] %vm3121, %v2987
      %3126 = vst.msk [vmem:[#allocation3 + $0x20] sm:$0xf] %vm3121, %v2989
      %3127 = vst.msk [vmem:[#allocation3 + $0x28] sm:$0xf] %vm3121, %v2991
      %3128 = vst.msk [vmem:[#allocation3 + $0x30] sm:$0xf] %vm3121, %v2993
      %3129 = vst.msk [vmem:[#allocation3 + $0x38] sm:$0xf] %vm3121, %v2995
      %3130 = vst.msk [vmem:[#allocation3 + $0x40] sm:$0xf] %vm3121, %v2997
      %3131 = vst.msk [vmem:[#allocation3 + $0x48] sm:$0xf] %vm3121, %v2999
      %3132 = vst.msk [vmem:[#allocation3 + $0x50] sm:$0xf] %vm3121, %v3001
      %3133 = vst.msk [vmem:[#allocation3 + $0x58] sm:$0xf] %vm3121, %v3003
      %3134 = vst.msk [vmem:[#allocation3 + $0x60] sm:$0xf] %vm3121, %v3005
      %3135 = vst.msk [vmem:[#allocation3 + $0x68] sm:$0xf] %vm3121, %v3007
      %3136 = vst.msk [vmem:[#allocation3 + $0x70] sm:$0xf] %vm3121, %v3009
      %3137 = vst.msk [vmem:[#allocation3 + $0x78] sm:$0xf] %vm3121, %v3011
      %3138 = vst.msk [vmem:[#allocation3 + $0x80] sm:$0xf] %vm3121, %v3013
      %3139 = vst.msk [vmem:[#allocation3 + $0x88] sm:$0xf] %vm3121, %v3015
      %3140 = vst.msk [vmem:[#allocation3 + $0x90] sm:$0xf] %vm3121, %v3017
      %3141 = vst.msk [vmem:[#allocation3 + $0x98] sm:$0xf] %vm3121, %v3019
      %3142 = vst.msk [vmem:[#allocation3 + $0xa0] sm:$0xf] %vm3121, %v3021
      %3143 = vst.msk [vmem:[#allocation3 + $0xa8] sm:$0xf] %vm3121, %v3023
      %3144 = vst.msk [vmem:[#allocation3 + $0xb0] sm:$0xf] %vm3121, %v3025
      %3145 = vst.msk [vmem:[#allocation3 + $0xb8] sm:$0xf] %vm3121, %v3027
      %3146 = vst.msk [vmem:[#allocation3 + $0xc0] sm:$0xf] %vm3121, %v3029
      %3147 = vst.msk [vmem:[#allocation3 + $0xc8] sm:$0xf] %vm3121, %v3031
      %3148 = vst.msk [vmem:[#allocation3 + $0xd0] sm:$0xf] %vm3121, %v3033
      %3149 = vst.msk [vmem:[#allocation3 + $0xd8] sm:$0xf] %vm3121, %v3035
      %3150 = vst.msk [vmem:[#allocation3 + $0xe0] sm:$0xf] %vm3121, %v3037
      %3151 = vst.msk [vmem:[#allocation3 + $0xe8] sm:$0xf] %vm3121, %v3039
      %3152 = vst.msk [vmem:[#allocation3 + $0xf0] sm:$0xf] %vm3121, %v3041
      %3153 = vst.msk [vmem:[#allocation3 + $0xf8] sm:$0xf] %vm3121, %v3043
      %3154 = vst.msk [vmem:[#allocation3 + $0x100] sm:$0xf] %vm3121, %v3045
      %3155 = vst.msk [vmem:[#allocation3 + $0x108] sm:$0xf] %vm3121, %v3047
      %3156 = vst.msk [vmem:[#allocation3 + $0x110] sm:$0xf] %vm3121, %v3049
      %3157 = vst.msk [vmem:[#allocation3 + $0x118] sm:$0xf] %vm3121, %v3051
      %3158 = vst.msk [vmem:[#allocation3 + $0x120] sm:$0xf] %vm3121, %v3053
      %3159 = vst.msk [vmem:[#allocation3 + $0x128] sm:$0xf] %vm3121, %v3055
      %3160 = vst.msk [vmem:[#allocation3 + $0x130] sm:$0xf] %vm3121, %v3057
      %3161 = vst.msk [vmem:[#allocation3 + $0x138] sm:$0xf] %vm3121, %v3059
      %3162 = vst.msk [vmem:[#allocation3 + $0x140] sm:$0xf] %vm3121, %v3061
      %3163 = vst.msk [vmem:[#allocation3 + $0x148] sm:$0xf] %vm3121, %v3063
      %3164 = vst.msk [vmem:[#allocation3 + $0x150] sm:$0xf] %vm3121, %v3065
      %3165 = vst.msk [vmem:[#allocation3 + $0x158] sm:$0xf] %vm3121, %v3067
      %3166 = vst.msk [vmem:[#allocation3 + $0x160] sm:$0xf] %vm3121, %v3069
      %3167 = vst.msk [vmem:[#allocation3 + $0x168] sm:$0xf] %vm3121, %v3071
      %3168 = vst.msk [vmem:[#allocation3 + $0x170] sm:$0xf] %vm3121, %v3073
      %v3169 = vld [vmem:[#allocation2 + $0x10] sm:$0xf]
      %v3170 = vld [vmem:[#allocation2 + $0x14] sm:$0xf]
      %v3171 = vld [vmem:[#allocation2 + $0x18] sm:$0xf]
      %v3172 = vld [vmem:[#allocation2 + $0x1c] sm:$0xf]
      %v3173 = vld [vmem:[#allocation2 + $0x20] sm:$0xf]
      %v3174 = vld [vmem:[#allocation2 + $0x24] sm:$0xf]
      %v3175 = vld [vmem:[#allocation2 + $0x28] sm:$0xf]
      %v3176 = vld [vmem:[#allocation2 + $0x2c] sm:$0xf]
      %v3177 = vld [vmem:[#allocation2 + $0x30] sm:$0xf]
      %v3178 = vld [vmem:[#allocation2 + $0x34] sm:$0xf]
      %v3179 = vld [vmem:[#allocation2 + $0x38] sm:$0xf]
      %v3180 = vld [vmem:[#allocation2 + $0x3c] sm:$0xf]
      %v3181 = vld [vmem:[#allocation2 + $0x40] sm:$0xf]
      %v3182 = vld [vmem:[#allocation2 + $0x44] sm:$0xf]
      %v3183 = vld [vmem:[#allocation2 + $0x48] sm:$0xf]
      %v3184 = vld [vmem:[#allocation2 + $0x4c] sm:$0xf]
      %v3185 = vld [vmem:[#allocation2 + $0x50] sm:$0xf]
      %v3186 = vld [vmem:[#allocation2 + $0x54] sm:$0xf]
      %v3187 = vld [vmem:[#allocation2 + $0x58] sm:$0xf]
      %v3188 = vld [vmem:[#allocation2 + $0x5c] sm:$0xf]
      %v3189 = vld [vmem:[#allocation2 + $0x60] sm:$0xf]
      %v3190 = vld [vmem:[#allocation2 + $0x64] sm:$0xf]
      %v3191 = vld [vmem:[#allocation2 + $0x68] sm:$0xf]
      %v3192 = vld [vmem:[#allocation2 + $0x6c] sm:$0xf]
      %v3193 = vld [vmem:[#allocation2 + $0x70] sm:$0xf]
      %v3194 = vld [vmem:[#allocation2 + $0x74] sm:$0xf]
      %v3195 = vld [vmem:[#allocation2 + $0x78] sm:$0xf]
      %v3196 = vld [vmem:[#allocation2 + $0x7c] sm:$0xf]
      %v3197 = vld [vmem:[#allocation2 + $0x80] sm:$0xf]
      %v3198 = vld [vmem:[#allocation2 + $0x84] sm:$0xf]
      %v3199 = vld [vmem:[#allocation2 + $0x88] sm:$0xf]
      %v3200 = vld [vmem:[#allocation2 + $0x8c] sm:$0xf]
      %v3201 = vld [vmem:[#allocation2 + $0x90] sm:$0xf]
      %v3202 = vld [vmem:[#allocation2 + $0x94] sm:$0xf]
      %v3203 = vld [vmem:[#allocation2 + $0x98] sm:$0xf]
      %v3204 = vld [vmem:[#allocation2 + $0x9c] sm:$0xf]
      %v3205 = vld [vmem:[#allocation2 + $0xa0] sm:$0xf]
      %v3206 = vld [vmem:[#allocation2 + $0xa4] sm:$0xf]
      %v3207 = vld [vmem:[#allocation2 + $0xa8] sm:$0xf]
      %v3208 = vld [vmem:[#allocation2 + $0xac] sm:$0xf]
      %v3209 = vld [vmem:[#allocation2 + $0xb0] sm:$0xf]
      %v3210 = vld [vmem:[#allocation2 + $0xb4] sm:$0xf]
      %v3211 = vld [vmem:[#allocation2 + $0xb8] sm:$0xf]
      %v3212 = vld [vmem:[#allocation2 + $0xbc] sm:$0xf]
      %v3213 = vld [vmem:[#allocation2 + $0xc0] sm:$0xf]
      %v3214 = vld [vmem:[#allocation2 + $0xc4] sm:$0xf]
      %v3215 = vld [vmem:[#allocation2 + $0xc8] sm:$0xf]
      %3263 = vrot.lane.b32.xlu0 %v3169, 64
      %v3264 = vpop.permute.xlu0 %3263
      %3265 = vrot.lane.b32.xlu0 %v3170, 64
      %v3266 = vpop.permute.xlu0 %3265
      %3267 = vrot.lane.b32.xlu0 %v3171, 64
      %v3268 = vpop.permute.xlu0 %3267
      %3269 = vrot.lane.b32.xlu0 %v3172, 64
      %v3270 = vpop.permute.xlu0 %3269
      %3271 = vrot.lane.b32.xlu0 %v3173, 64
      %v3272 = vpop.permute.xlu0 %3271
      %3273 = vrot.lane.b32.xlu0 %v3174, 64
      %v3274 = vpop.permute.xlu0 %3273
      %3275 = vrot.lane.b32.xlu0 %v3175, 64
      %v3276 = vpop.permute.xlu0 %3275
      %3277 = vrot.lane.b32.xlu0 %v3176, 64
      %v3278 = vpop.permute.xlu0 %3277
      %3279 = vrot.lane.b32.xlu0 %v3177, 64
      %v3280 = vpop.permute.xlu0 %3279
      %3281 = vrot.lane.b32.xlu0 %v3178, 64
      %v3282 = vpop.permute.xlu0 %3281
      %3283 = vrot.lane.b32.xlu0 %v3179, 64
      %v3284 = vpop.permute.xlu0 %3283
      %3285 = vrot.lane.b32.xlu0 %v3180, 64
      %v3286 = vpop.permute.xlu0 %3285
      %3287 = vrot.lane.b32.xlu0 %v3181, 64
      %v3288 = vpop.permute.xlu0 %3287
      %3289 = vrot.lane.b32.xlu0 %v3182, 64
      %v3290 = vpop.permute.xlu0 %3289
      %3291 = vrot.lane.b32.xlu0 %v3183, 64
      %v3292 = vpop.permute.xlu0 %3291
      %3293 = vrot.lane.b32.xlu0 %v3184, 64
      %v3294 = vpop.permute.xlu0 %3293
      %3295 = vrot.lane.b32.xlu0 %v3185, 64
      %v3296 = vpop.permute.xlu0 %3295
      %3297 = vrot.lane.b32.xlu0 %v3186, 64
      %v3298 = vpop.permute.xlu0 %3297
      %3299 = vrot.lane.b32.xlu0 %v3187, 64
      %v3300 = vpop.permute.xlu0 %3299
      %3301 = vrot.lane.b32.xlu0 %v3188, 64
      %v3302 = vpop.permute.xlu0 %3301
      %3303 = vrot.lane.b32.xlu0 %v3189, 64
      %v3304 = vpop.permute.xlu0 %3303
      %3305 = vrot.lane.b32.xlu0 %v3190, 64
      %v3306 = vpop.permute.xlu0 %3305
      %3307 = vrot.lane.b32.xlu0 %v3191, 64
      %v3308 = vpop.permute.xlu0 %3307
      %3309 = vrot.lane.b32.xlu0 %v3192, 64
      %v3310 = vpop.permute.xlu0 %3309
      %3311 = vrot.lane.b32.xlu0 %v3193, 64
      %v3312 = vpop.permute.xlu0 %3311
      %3313 = vrot.lane.b32.xlu0 %v3194, 64
      %v3314 = vpop.permute.xlu0 %3313
      %3315 = vrot.lane.b32.xlu0 %v3195, 64
      %v3316 = vpop.permute.xlu0 %3315
      %3317 = vrot.lane.b32.xlu0 %v3196, 64
      %v3318 = vpop.permute.xlu0 %3317
      %3319 = vrot.lane.b32.xlu0 %v3197, 64
      %v3320 = vpop.permute.xlu0 %3319
      %3321 = vrot.lane.b32.xlu0 %v3198, 64
      %v3322 = vpop.permute.xlu0 %3321
      %3323 = vrot.lane.b32.xlu0 %v3199, 64
      %v3324 = vpop.permute.xlu0 %3323
      %3325 = vrot.lane.b32.xlu0 %v3200, 64
      %v3326 = vpop.permute.xlu0 %3325
      %3327 = vrot.lane.b32.xlu0 %v3201, 64
      %v3328 = vpop.permute.xlu0 %3327
      %3329 = vrot.lane.b32.xlu0 %v3202, 64
      %v3330 = vpop.permute.xlu0 %3329
      %3331 = vrot.lane.b32.xlu0 %v3203, 64
      %v3332 = vpop.permute.xlu0 %3331
      %3333 = vrot.lane.b32.xlu0 %v3204, 64
      %v3334 = vpop.permute.xlu0 %3333
      %3335 = vrot.lane.b32.xlu0 %v3205, 64
      %v3336 = vpop.permute.xlu0 %3335
      %3337 = vrot.lane.b32.xlu0 %v3206, 64
      %v3338 = vpop.permute.xlu0 %3337
      %3339 = vrot.lane.b32.xlu0 %v3207, 64
      %v3340 = vpop.permute.xlu0 %3339
      %3341 = vrot.lane.b32.xlu0 %v3208, 64
      %v3342 = vpop.permute.xlu0 %3341
      %3343 = vrot.lane.b32.xlu0 %v3209, 64
      %v3344 = vpop.permute.xlu0 %3343
      %3345 = vrot.lane.b32.xlu0 %v3210, 64
      %v3346 = vpop.permute.xlu0 %3345
      %3347 = vrot.lane.b32.xlu0 %v3211, 64
      %v3348 = vpop.permute.xlu0 %3347
      %3349 = vrot.lane.b32.xlu0 %v3212, 64
      %v3350 = vpop.permute.xlu0 %3349
      %3351 = vrot.lane.b32.xlu0 %v3213, 64
      %v3352 = vpop.permute.xlu0 %3351
      %3353 = vrot.lane.b32.xlu0 %v3214, 64
      %v3354 = vpop.permute.xlu0 %3353
      %3355 = vrot.lane.b32.xlu0 %v3215, 64
      %v3356 = vpop.permute.xlu0 %3355
      %vm3404 = vcmask 650752
      %3405 = vst.msk [vmem:[#allocation3] sm:$0xf] %vm3404, %v3264
      %3406 = vst.msk [vmem:[#allocation3 + $0x8] sm:$0xf] %vm3404, %v3266
      %3407 = vst.msk [vmem:[#allocation3 + $0x10] sm:$0xf] %vm3404, %v3268
      %3408 = vst.msk [vmem:[#allocation3 + $0x18] sm:$0xf] %vm3404, %v3270
      %3409 = vst.msk [vmem:[#allocation3 + $0x20] sm:$0xf] %vm3404, %v3272
      %3410 = vst.msk [vmem:[#allocation3 + $0x28] sm:$0xf] %vm3404, %v3274
      %3411 = vst.msk [vmem:[#allocation3 + $0x30] sm:$0xf] %vm3404, %v3276
      %3412 = vst.msk [vmem:[#allocation3 + $0x38] sm:$0xf] %vm3404, %v3278
      %3413 = vst.msk [vmem:[#allocation3 + $0x40] sm:$0xf] %vm3404, %v3280
      %3414 = vst.msk [vmem:[#allocation3 + $0x48] sm:$0xf] %vm3404, %v3282
      %3415 = vst.msk [vmem:[#allocation3 + $0x50] sm:$0xf] %vm3404, %v3284
      %3416 = vst.msk [vmem:[#allocation3 + $0x58] sm:$0xf] %vm3404, %v3286
      %3417 = vst.msk [vmem:[#allocation3 + $0x60] sm:$0xf] %vm3404, %v3288
      %3418 = vst.msk [vmem:[#allocation3 + $0x68] sm:$0xf] %vm3404, %v3290
      %3419 = vst.msk [vmem:[#allocation3 + $0x70] sm:$0xf] %vm3404, %v3292
      %3420 = vst.msk [vmem:[#allocation3 + $0x78] sm:$0xf] %vm3404, %v3294
      %3421 = vst.msk [vmem:[#allocation3 + $0x80] sm:$0xf] %vm3404, %v3296
      %3422 = vst.msk [vmem:[#allocation3 + $0x88] sm:$0xf] %vm3404, %v3298
      %3423 = vst.msk [vmem:[#allocation3 + $0x90] sm:$0xf] %vm3404, %v3300
      %3424 = vst.msk [vmem:[#allocation3 + $0x98] sm:$0xf] %vm3404, %v3302
      %3425 = vst.msk [vmem:[#allocation3 + $0xa0] sm:$0xf] %vm3404, %v3304
      %3426 = vst.msk [vmem:[#allocation3 + $0xa8] sm:$0xf] %vm3404, %v3306
      %3427 = vst.msk [vmem:[#allocation3 + $0xb0] sm:$0xf] %vm3404, %v3308
      %3428 = vst.msk [vmem:[#allocation3 + $0xb8] sm:$0xf] %vm3404, %v3310
      %3429 = vst.msk [vmem:[#allocation3 + $0xc0] sm:$0xf] %vm3404, %v3312
      %3430 = vst.msk [vmem:[#allocation3 + $0xc8] sm:$0xf] %vm3404, %v3314
      %3431 = vst.msk [vmem:[#allocation3 + $0xd0] sm:$0xf] %vm3404, %v3316
      %3432 = vst.msk [vmem:[#allocation3 + $0xd8] sm:$0xf] %vm3404, %v3318
      %3433 = vst.msk [vmem:[#allocation3 + $0xe0] sm:$0xf] %vm3404, %v3320
      %3434 = vst.msk [vmem:[#allocation3 + $0xe8] sm:$0xf] %vm3404, %v3322
      %3435 = vst.msk [vmem:[#allocation3 + $0xf0] sm:$0xf] %vm3404, %v3324
      %3436 = vst.msk [vmem:[#allocation3 + $0xf8] sm:$0xf] %vm3404, %v3326
      %3437 = vst.msk [vmem:[#allocation3 + $0x100] sm:$0xf] %vm3404, %v3328
      %3438 = vst.msk [vmem:[#allocation3 + $0x108] sm:$0xf] %vm3404, %v3330
      %3439 = vst.msk [vmem:[#allocation3 + $0x110] sm:$0xf] %vm3404, %v3332
      %3440 = vst.msk [vmem:[#allocation3 + $0x118] sm:$0xf] %vm3404, %v3334
      %3441 = vst.msk [vmem:[#allocation3 + $0x120] sm:$0xf] %vm3404, %v3336
      %3442 = vst.msk [vmem:[#allocation3 + $0x128] sm:$0xf] %vm3404, %v3338
      %3443 = vst.msk [vmem:[#allocation3 + $0x130] sm:$0xf] %vm3404, %v3340
      %3444 = vst.msk [vmem:[#allocation3 + $0x138] sm:$0xf] %vm3404, %v3342
      %3445 = vst.msk [vmem:[#allocation3 + $0x140] sm:$0xf] %vm3404, %v3344
      %3446 = vst.msk [vmem:[#allocation3 + $0x148] sm:$0xf] %vm3404, %v3346
      %3447 = vst.msk [vmem:[#allocation3 + $0x150] sm:$0xf] %vm3404, %v3348
      %3448 = vst.msk [vmem:[#allocation3 + $0x158] sm:$0xf] %vm3404, %v3350
      %3449 = vst.msk [vmem:[#allocation3 + $0x160] sm:$0xf] %vm3404, %v3352
      %3450 = vst.msk [vmem:[#allocation3 + $0x168] sm:$0xf] %vm3404, %v3354
      %3451 = vst.msk [vmem:[#allocation3 + $0x170] sm:$0xf] %vm3404, %v3356
      %v3452 = vld [vmem:[#allocation2 + $0x10] sm:$0xf]
      %v3453 = vld [vmem:[#allocation2 + $0x14] sm:$0xf]
      %v3454 = vld [vmem:[#allocation2 + $0x18] sm:$0xf]
      %v3455 = vld [vmem:[#allocation2 + $0x1c] sm:$0xf]
      %v3456 = vld [vmem:[#allocation2 + $0x20] sm:$0xf]
      %v3457 = vld [vmem:[#allocation2 + $0x24] sm:$0xf]
      %v3458 = vld [vmem:[#allocation2 + $0x28] sm:$0xf]
      %v3459 = vld [vmem:[#allocation2 + $0x2c] sm:$0xf]
      %v3460 = vld [vmem:[#allocation2 + $0x30] sm:$0xf]
      %v3461 = vld [vmem:[#allocation2 + $0x34] sm:$0xf]
      %v3462 = vld [vmem:[#allocation2 + $0x38] sm:$0xf]
      %v3463 = vld [vmem:[#allocation2 + $0x3c] sm:$0xf]
      %v3464 = vld [vmem:[#allocation2 + $0x40] sm:$0xf]
      %v3465 = vld [vmem:[#allocation2 + $0x44] sm:$0xf]
      %v3466 = vld [vmem:[#allocation2 + $0x48] sm:$0xf]
      %v3467 = vld [vmem:[#allocation2 + $0x4c] sm:$0xf]
      %v3468 = vld [vmem:[#allocation2 + $0x50] sm:$0xf]
      %v3469 = vld [vmem:[#allocation2 + $0x54] sm:$0xf]
      %v3470 = vld [vmem:[#allocation2 + $0x58] sm:$0xf]
      %v3471 = vld [vmem:[#allocation2 + $0x5c] sm:$0xf]
      %v3472 = vld [vmem:[#allocation2 + $0x60] sm:$0xf]
      %v3473 = vld [vmem:[#allocation2 + $0x64] sm:$0xf]
      %v3474 = vld [vmem:[#allocation2 + $0x68] sm:$0xf]
      %v3475 = vld [vmem:[#allocation2 + $0x6c] sm:$0xf]
      %v3476 = vld [vmem:[#allocation2 + $0x70] sm:$0xf]
      %v3477 = vld [vmem:[#allocation2 + $0x74] sm:$0xf]
      %v3478 = vld [vmem:[#allocation2 + $0x78] sm:$0xf]
      %v3479 = vld [vmem:[#allocation2 + $0x7c] sm:$0xf]
      %v3480 = vld [vmem:[#allocation2 + $0x80] sm:$0xf]
      %v3481 = vld [vmem:[#allocation2 + $0x84] sm:$0xf]
      %v3482 = vld [vmem:[#allocation2 + $0x88] sm:$0xf]
      %v3483 = vld [vmem:[#allocation2 + $0x8c] sm:$0xf]
      %v3484 = vld [vmem:[#allocation2 + $0x90] sm:$0xf]
      %v3485 = vld [vmem:[#allocation2 + $0x94] sm:$0xf]
      %v3486 = vld [vmem:[#allocation2 + $0x98] sm:$0xf]
      %v3487 = vld [vmem:[#allocation2 + $0x9c] sm:$0xf]
      %v3488 = vld [vmem:[#allocation2 + $0xa0] sm:$0xf]
      %v3489 = vld [vmem:[#allocation2 + $0xa4] sm:$0xf]
      %v3490 = vld [vmem:[#allocation2 + $0xa8] sm:$0xf]
      %v3491 = vld [vmem:[#allocation2 + $0xac] sm:$0xf]
      %v3492 = vld [vmem:[#allocation2 + $0xb0] sm:$0xf]
      %v3493 = vld [vmem:[#allocation2 + $0xb4] sm:$0xf]
      %v3494 = vld [vmem:[#allocation2 + $0xb8] sm:$0xf]
      %v3495 = vld [vmem:[#allocation2 + $0xbc] sm:$0xf]
      %v3496 = vld [vmem:[#allocation2 + $0xc0] sm:$0xf]
      %v3497 = vld [vmem:[#allocation2 + $0xc4] sm:$0xf]
      %v3498 = vld [vmem:[#allocation2 + $0xc8] sm:$0xf]
      %v3499 = vld [vmem:[#allocation2 + $0xcc] sm:$0x1]
      %v3501 = vshrl.u32 %v3452, 16
      %v3503 = vrot.slane %v3501, 4
      %v3504 = vshll.u32 %v3452, 16
      %v3506 = vrot.slane %v3504, 5
      %v3507 = vor.u32 %v3503, %v3506
      %v3508 = vrot.slane %v3507, 4
      %v3510 = vshll.u32 %v3453, 16
      %v3512 = vrot.slane %v3510, 5
      %v3513 = vsel %vm1841, %v3508, %v3512
      %v3514 = vshrl.u32 %v3453, 16
      %v3516 = vrot.slane %v3514, 4
      %v3517 = vor.u32 %v3516, %v3512
      %v3518 = vrot.slane %v3517, 4
      %v3520 = vshll.u32 %v3454, 16
      %v3522 = vrot.slane %v3520, 5
      %v3523 = vsel %vm1841, %v3518, %v3522
      %v3524 = vshrl.u32 %v3454, 16
      %v3526 = vrot.slane %v3524, 4
      %v3527 = vor.u32 %v3526, %v3522
      %v3528 = vrot.slane %v3527, 4
      %v3530 = vshll.u32 %v3455, 16
      %v3532 = vrot.slane %v3530, 5
      %v3533 = vsel %vm1841, %v3528, %v3532
      %v3534 = vshrl.u32 %v3455, 16
      %v3536 = vrot.slane %v3534, 4
      %v3537 = vor.u32 %v3536, %v3532
      %v3538 = vrot.slane %v3537, 4
      %v3540 = vshll.u32 %v3456, 16
      %v3542 = vrot.slane %v3540, 5
      %v3543 = vsel %vm1841, %v3538, %v3542
      %v3544 = vshrl.u32 %v3456, 16
      %v3546 = vrot.slane %v3544, 4
      %v3547 = vor.u32 %v3546, %v3542
      %v3548 = vrot.slane %v3547, 4
      %v3550 = vshll.u32 %v3457, 16
      %v3552 = vrot.slane %v3550, 5
      %v3553 = vsel %vm1841, %v3548, %v3552
      %v3554 = vshrl.u32 %v3457, 16
      %v3556 = vrot.slane %v3554, 4
      %v3557 = vor.u32 %v3556, %v3552
      %v3558 = vrot.slane %v3557, 4
      %v3560 = vshll.u32 %v3458, 16
      %v3562 = vrot.slane %v3560, 5
      %v3563 = vsel %vm1841, %v3558, %v3562
      %v3564 = vshrl.u32 %v3458, 16
      %v3566 = vrot.slane %v3564, 4
      %v3567 = vor.u32 %v3566, %v3562
      %v3568 = vrot.slane %v3567, 4
      %v3570 = vshll.u32 %v3459, 16
      %v3572 = vrot.slane %v3570, 5
      %v3573 = vsel %vm1841, %v3568, %v3572
      %v3574 = vshrl.u32 %v3459, 16
      %v3576 = vrot.slane %v3574, 4
      %v3577 = vor.u32 %v3576, %v3572
      %v3578 = vrot.slane %v3577, 4
      %v3580 = vshll.u32 %v3460, 16
      %v3582 = vrot.slane %v3580, 5
      %v3583 = vsel %vm1841, %v3578, %v3582
      %v3584 = vshrl.u32 %v3460, 16
      %v3586 = vrot.slane %v3584, 4
      %v3587 = vor.u32 %v3586, %v3582
      %v3588 = vrot.slane %v3587, 4
      %v3590 = vshll.u32 %v3461, 16
      %v3592 = vrot.slane %v3590, 5
      %v3593 = vsel %vm1841, %v3588, %v3592
      %v3594 = vshrl.u32 %v3461, 16
      %v3596 = vrot.slane %v3594, 4
      %v3597 = vor.u32 %v3596, %v3592
      %v3598 = vrot.slane %v3597, 4
      %v3600 = vshll.u32 %v3462, 16
      %v3602 = vrot.slane %v3600, 5
      %v3603 = vsel %vm1841, %v3598, %v3602
      %v3604 = vshrl.u32 %v3462, 16
      %v3606 = vrot.slane %v3604, 4
      %v3607 = vor.u32 %v3606, %v3602
      %v3608 = vrot.slane %v3607, 4
      %v3610 = vshll.u32 %v3463, 16
      %v3612 = vrot.slane %v3610, 5
      %v3613 = vsel %vm1841, %v3608, %v3612
      %v3614 = vshrl.u32 %v3463, 16
      %v3616 = vrot.slane %v3614, 4
      %v3617 = vor.u32 %v3616, %v3612
      %v3618 = vrot.slane %v3617, 4
      %v3620 = vshll.u32 %v3464, 16
      %v3622 = vrot.slane %v3620, 5
      %v3623 = vsel %vm1841, %v3618, %v3622
      %v3624 = vshrl.u32 %v3464, 16
      %v3626 = vrot.slane %v3624, 4
      %v3627 = vor.u32 %v3626, %v3622
      %v3628 = vrot.slane %v3627, 4
      %v3630 = vshll.u32 %v3465, 16
      %v3632 = vrot.slane %v3630, 5
      %v3633 = vsel %vm1841, %v3628, %v3632
      %v3634 = vshrl.u32 %v3465, 16
      %v3636 = vrot.slane %v3634, 4
      %v3637 = vor.u32 %v3636, %v3632
      %v3638 = vrot.slane %v3637, 4
      %v3640 = vshll.u32 %v3466, 16
      %v3642 = vrot.slane %v3640, 5
      %v3643 = vsel %vm1841, %v3638, %v3642
      %v3644 = vshrl.u32 %v3466, 16
      %v3646 = vrot.slane %v3644, 4
      %v3647 = vor.u32 %v3646, %v3642
      %v3648 = vrot.slane %v3647, 4
      %v3650 = vshll.u32 %v3467, 16
      %v3652 = vrot.slane %v3650, 5
      %v3653 = vsel %vm1841, %v3648, %v3652
      %v3654 = vshrl.u32 %v3467, 16
      %v3656 = vrot.slane %v3654, 4
      %v3657 = vor.u32 %v3656, %v3652
      %v3658 = vrot.slane %v3657, 4
      %v3660 = vshll.u32 %v3468, 16
      %v3662 = vrot.slane %v3660, 5
      %v3663 = vsel %vm1841, %v3658, %v3662
      %v3664 = vshrl.u32 %v3468, 16
      %v3666 = vrot.slane %v3664, 4
      %v3667 = vor.u32 %v3666, %v3662
      %v3668 = vrot.slane %v3667, 4
      %v3670 = vshll.u32 %v3469, 16
      %v3672 = vrot.slane %v3670, 5
      %v3673 = vsel %vm1841, %v3668, %v3672
      %v3674 = vshrl.u32 %v3469, 16
      %v3676 = vrot.slane %v3674, 4
      %v3677 = vor.u32 %v3676, %v3672
      %v3678 = vrot.slane %v3677, 4
      %v3680 = vshll.u32 %v3470, 16
      %v3682 = vrot.slane %v3680, 5
      %v3683 = vsel %vm1841, %v3678, %v3682
      %v3684 = vshrl.u32 %v3470, 16
      %v3686 = vrot.slane %v3684, 4
      %v3687 = vor.u32 %v3686, %v3682
      %v3688 = vrot.slane %v3687, 4
      %v3690 = vshll.u32 %v3471, 16
      %v3692 = vrot.slane %v3690, 5
      %v3693 = vsel %vm1841, %v3688, %v3692
      %v3694 = vshrl.u32 %v3471, 16
      %v3696 = vrot.slane %v3694, 4
      %v3697 = vor.u32 %v3696, %v3692
      %v3698 = vrot.slane %v3697, 4
      %v3700 = vshll.u32 %v3472, 16
      %v3702 = vrot.slane %v3700, 5
      %v3703 = vsel %vm1841, %v3698, %v3702
      %v3704 = vshrl.u32 %v3472, 16
      %v3706 = vrot.slane %v3704, 4
      %v3707 = vor.u32 %v3706, %v3702
      %v3708 = vrot.slane %v3707, 4
      %v3710 = vshll.u32 %v3473, 16
      %v3712 = vrot.slane %v3710, 5
      %v3713 = vsel %vm1841, %v3708, %v3712
      %v3714 = vshrl.u32 %v3473, 16
      %v3716 = vrot.slane %v3714, 4
      %v3717 = vor.u32 %v3716, %v3712
      %v3718 = vrot.slane %v3717, 4
      %v3720 = vshll.u32 %v3474, 16
      %v3722 = vrot.slane %v3720, 5
      %v3723 = vsel %vm1841, %v3718, %v3722
      %v3724 = vshrl.u32 %v3474, 16
      %v3726 = vrot.slane %v3724, 4
      %v3727 = vor.u32 %v3726, %v3722
      %v3728 = vrot.slane %v3727, 4
      %v3730 = vshll.u32 %v3475, 16
      %v3732 = vrot.slane %v3730, 5
      %v3733 = vsel %vm1841, %v3728, %v3732
      %v3734 = vshrl.u32 %v3475, 16
      %v3736 = vrot.slane %v3734, 4
      %v3737 = vor.u32 %v3736, %v3732
      %v3738 = vrot.slane %v3737, 4
      %v3740 = vshll.u32 %v3476, 16
      %v3742 = vrot.slane %v3740, 5
      %v3743 = vsel %vm1841, %v3738, %v3742
      %v3744 = vshrl.u32 %v3476, 16
      %v3746 = vrot.slane %v3744, 4
      %v3747 = vor.u32 %v3746, %v3742
      %v3748 = vrot.slane %v3747, 4
      %v3750 = vshll.u32 %v3477, 16
      %v3752 = vrot.slane %v3750, 5
      %v3753 = vsel %vm1841, %v3748, %v3752
      %v3754 = vshrl.u32 %v3477, 16
      %v3756 = vrot.slane %v3754, 4
      %v3757 = vor.u32 %v3756, %v3752
      %v3758 = vrot.slane %v3757, 4
      %v3760 = vshll.u32 %v3478, 16
      %v3762 = vrot.slane %v3760, 5
      %v3763 = vsel %vm1841, %v3758, %v3762
      %v3764 = vshrl.u32 %v3478, 16
      %v3766 = vrot.slane %v3764, 4
      %v3767 = vor.u32 %v3766, %v3762
      %v3768 = vrot.slane %v3767, 4
      %v3770 = vshll.u32 %v3479, 16
      %v3772 = vrot.slane %v3770, 5
      %v3773 = vsel %vm1841, %v3768, %v3772
      %v3774 = vshrl.u32 %v3479, 16
      %v3776 = vrot.slane %v3774, 4
      %v3777 = vor.u32 %v3776, %v3772
      %v3778 = vrot.slane %v3777, 4
      %v3780 = vshll.u32 %v3480, 16
      %v3782 = vrot.slane %v3780, 5
      %v3783 = vsel %vm1841, %v3778, %v3782
      %v3784 = vshrl.u32 %v3480, 16
      %v3786 = vrot.slane %v3784, 4
      %v3787 = vor.u32 %v3786, %v3782
      %v3788 = vrot.slane %v3787, 4
      %v3790 = vshll.u32 %v3481, 16
      %v3792 = vrot.slane %v3790, 5
      %v3793 = vsel %vm1841, %v3788, %v3792
      %v3794 = vshrl.u32 %v3481, 16
      %v3796 = vrot.slane %v3794, 4
      %v3797 = vor.u32 %v3796, %v3792
      %v3798 = vrot.slane %v3797, 4
      %v3800 = vshll.u32 %v3482, 16
      %v3802 = vrot.slane %v3800, 5
      %v3803 = vsel %vm1841, %v3798, %v3802
      %v3804 = vshrl.u32 %v3482, 16
      %v3806 = vrot.slane %v3804, 4
      %v3807 = vor.u32 %v3806, %v3802
      %v3808 = vrot.slane %v3807, 4
      %v3810 = vshll.u32 %v3483, 16
      %v3812 = vrot.slane %v3810, 5
      %v3813 = vsel %vm1841, %v3808, %v3812
      %v3814 = vshrl.u32 %v3483, 16
      %v3816 = vrot.slane %v3814, 4
      %v3817 = vor.u32 %v3816, %v3812
      %v3818 = vrot.slane %v3817, 4
      %v3820 = vshll.u32 %v3484, 16
      %v3822 = vrot.slane %v3820, 5
      %v3823 = vsel %vm1841, %v3818, %v3822
      %v3824 = vshrl.u32 %v3484, 16
      %v3826 = vrot.slane %v3824, 4
      %v3827 = vor.u32 %v3826, %v3822
      %v3828 = vrot.slane %v3827, 4
      %v3830 = vshll.u32 %v3485, 16
      %v3832 = vrot.slane %v3830, 5
      %v3833 = vsel %vm1841, %v3828, %v3832
      %v3834 = vshrl.u32 %v3485, 16
      %v3836 = vrot.slane %v3834, 4
      %v3837 = vor.u32 %v3836, %v3832
      %v3838 = vrot.slane %v3837, 4
      %v3840 = vshll.u32 %v3486, 16
      %v3842 = vrot.slane %v3840, 5
      %v3843 = vsel %vm1841, %v3838, %v3842
      %v3844 = vshrl.u32 %v3486, 16
      %v3846 = vrot.slane %v3844, 4
      %v3847 = vor.u32 %v3846, %v3842
      %v3848 = vrot.slane %v3847, 4
      %v3850 = vshll.u32 %v3487, 16
      %v3852 = vrot.slane %v3850, 5
      %v3853 = vsel %vm1841, %v3848, %v3852
      %v3854 = vshrl.u32 %v3487, 16
      %v3856 = vrot.slane %v3854, 4
      %v3857 = vor.u32 %v3856, %v3852
      %v3858 = vrot.slane %v3857, 4
      %v3860 = vshll.u32 %v3488, 16
      %v3862 = vrot.slane %v3860, 5
      %v3863 = vsel %vm1841, %v3858, %v3862
      %v3864 = vshrl.u32 %v3488, 16
      %v3866 = vrot.slane %v3864, 4
      %v3867 = vor.u32 %v3866, %v3862
      %v3868 = vrot.slane %v3867, 4
      %v3870 = vshll.u32 %v3489, 16
      %v3872 = vrot.slane %v3870, 5
      %v3873 = vsel %vm1841, %v3868, %v3872
      %v3874 = vshrl.u32 %v3489, 16
      %v3876 = vrot.slane %v3874, 4
      %v3877 = vor.u32 %v3876, %v3872
      %v3878 = vrot.slane %v3877, 4
      %v3880 = vshll.u32 %v3490, 16
      %v3882 = vrot.slane %v3880, 5
      %v3883 = vsel %vm1841, %v3878, %v3882
      %v3884 = vshrl.u32 %v3490, 16
      %v3886 = vrot.slane %v3884, 4
      %v3887 = vor.u32 %v3886, %v3882
      %v3888 = vrot.slane %v3887, 4
      %v3890 = vshll.u32 %v3491, 16
      %v3892 = vrot.slane %v3890, 5
      %v3893 = vsel %vm1841, %v3888, %v3892
      %v3894 = vshrl.u32 %v3491, 16
      %v3896 = vrot.slane %v3894, 4
      %v3897 = vor.u32 %v3896, %v3892
      %v3898 = vrot.slane %v3897, 4
      %v3900 = vshll.u32 %v3492, 16
      %v3902 = vrot.slane %v3900, 5
      %v3903 = vsel %vm1841, %v3898, %v3902
      %v3904 = vshrl.u32 %v3492, 16
      %v3906 = vrot.slane %v3904, 4
      %v3907 = vor.u32 %v3906, %v3902
      %v3908 = vrot.slane %v3907, 4
      %v3910 = vshll.u32 %v3493, 16
      %v3912 = vrot.slane %v3910, 5
      %v3913 = vsel %vm1841, %v3908, %v3912
      %v3914 = vshrl.u32 %v3493, 16
      %v3916 = vrot.slane %v3914, 4
      %v3917 = vor.u32 %v3916, %v3912
      %v3918 = vrot.slane %v3917, 4
      %v3920 = vshll.u32 %v3494, 16
      %v3922 = vrot.slane %v3920, 5
      %v3923 = vsel %vm1841, %v3918, %v3922
      %v3924 = vshrl.u32 %v3494, 16
      %v3926 = vrot.slane %v3924, 4
      %v3927 = vor.u32 %v3926, %v3922
      %v3928 = vrot.slane %v3927, 4
      %v3930 = vshll.u32 %v3495, 16
      %v3932 = vrot.slane %v3930, 5
      %v3933 = vsel %vm1841, %v3928, %v3932
      %v3934 = vshrl.u32 %v3495, 16
      %v3936 = vrot.slane %v3934, 4
      %v3937 = vor.u32 %v3936, %v3932
      %v3938 = vrot.slane %v3937, 4
      %v3940 = vshll.u32 %v3496, 16
      %v3942 = vrot.slane %v3940, 5
      %v3943 = vsel %vm1841, %v3938, %v3942
      %v3944 = vshrl.u32 %v3496, 16
      %v3946 = vrot.slane %v3944, 4
      %v3947 = vor.u32 %v3946, %v3942
      %v3948 = vrot.slane %v3947, 4
      %v3950 = vshll.u32 %v3497, 16
      %v3952 = vrot.slane %v3950, 5
      %v3953 = vsel %vm1841, %v3948, %v3952
      %v3954 = vshrl.u32 %v3497, 16
      %v3956 = vrot.slane %v3954, 4
      %v3957 = vor.u32 %v3956, %v3952
      %v3958 = vrot.slane %v3957, 4
      %v3960 = vshll.u32 %v3498, 16
      %v3962 = vrot.slane %v3960, 5
      %v3963 = vsel %vm1841, %v3958, %v3962
      %v3964 = vshrl.u32 %v3498, 16
      %v3966 = vrot.slane %v3964, 4
      %v3967 = vor.u32 %v3966, %v3962
      %v3968 = vrot.slane %v3967, 4
      %v3970 = vshll.u32 %v3499, 16
      %v3972 = vrot.slane %v3970, 5
      %v3973 = vsel %vm1841, %v3968, %v3972
      %3974 = vrot.lane.b32.xlu0 %v3513, 80
      %v3975 = vpop.permute.xlu0 %3974
      %3976 = vrot.lane.b32.xlu0 %v3523, 80
      %v3977 = vpop.permute.xlu0 %3976
      %3978 = vrot.lane.b32.xlu0 %v3533, 80
      %v3979 = vpop.permute.xlu0 %3978
      %3980 = vrot.lane.b32.xlu0 %v3543, 80
      %v3981 = vpop.permute.xlu0 %3980
      %3982 = vrot.lane.b32.xlu0 %v3553, 80
      %v3983 = vpop.permute.xlu0 %3982
      %3984 = vrot.lane.b32.xlu0 %v3563, 80
      %v3985 = vpop.permute.xlu0 %3984
      %3986 = vrot.lane.b32.xlu0 %v3573, 80
      %v3987 = vpop.permute.xlu0 %3986
      %3988 = vrot.lane.b32.xlu0 %v3583, 80
      %v3989 = vpop.permute.xlu0 %3988
      %3990 = vrot.lane.b32.xlu0 %v3593, 80
      %v3991 = vpop.permute.xlu0 %3990
      %3992 = vrot.lane.b32.xlu0 %v3603, 80
      %v3993 = vpop.permute.xlu0 %3992
      %3994 = vrot.lane.b32.xlu0 %v3613, 80
      %v3995 = vpop.permute.xlu0 %3994
      %3996 = vrot.lane.b32.xlu0 %v3623, 80
      %v3997 = vpop.permute.xlu0 %3996
      %3998 = vrot.lane.b32.xlu0 %v3633, 80
      %v3999 = vpop.permute.xlu0 %3998
      %4000 = vrot.lane.b32.xlu0 %v3643, 80
      %v4001 = vpop.permute.xlu0 %4000
      %4002 = vrot.lane.b32.xlu0 %v3653, 80
      %v4003 = vpop.permute.xlu0 %4002
      %4004 = vrot.lane.b32.xlu0 %v3663, 80
      %v4005 = vpop.permute.xlu0 %4004
      %4006 = vrot.lane.b32.xlu0 %v3673, 80
      %v4007 = vpop.permute.xlu0 %4006
      %4008 = vrot.lane.b32.xlu0 %v3683, 80
      %v4009 = vpop.permute.xlu0 %4008
      %4010 = vrot.lane.b32.xlu0 %v3693, 80
      %v4011 = vpop.permute.xlu0 %4010
      %4012 = vrot.lane.b32.xlu0 %v3703, 80
      %v4013 = vpop.permute.xlu0 %4012
      %4014 = vrot.lane.b32.xlu0 %v3713, 80
      %v4015 = vpop.permute.xlu0 %4014
      %4016 = vrot.lane.b32.xlu0 %v3723, 80
      %v4017 = vpop.permute.xlu0 %4016
      %4018 = vrot.lane.b32.xlu0 %v3733, 80
      %v4019 = vpop.permute.xlu0 %4018
      %4020 = vrot.lane.b32.xlu0 %v3743, 80
      %v4021 = vpop.permute.xlu0 %4020
      %4022 = vrot.lane.b32.xlu0 %v3753, 80
      %v4023 = vpop.permute.xlu0 %4022
      %4024 = vrot.lane.b32.xlu0 %v3763, 80
      %v4025 = vpop.permute.xlu0 %4024
      %4026 = vrot.lane.b32.xlu0 %v3773, 80
      %v4027 = vpop.permute.xlu0 %4026
      %4028 = vrot.lane.b32.xlu0 %v3783, 80
      %v4029 = vpop.permute.xlu0 %4028
      %4030 = vrot.lane.b32.xlu0 %v3793, 80
      %v4031 = vpop.permute.xlu0 %4030
      %4032 = vrot.lane.b32.xlu0 %v3803, 80
      %v4033 = vpop.permute.xlu0 %4032
      %4034 = vrot.lane.b32.xlu0 %v3813, 80
      %v4035 = vpop.permute.xlu0 %4034
      %4036 = vrot.lane.b32.xlu0 %v3823, 80
      %v4037 = vpop.permute.xlu0 %4036
      %4038 = vrot.lane.b32.xlu0 %v3833, 80
      %v4039 = vpop.permute.xlu0 %4038
      %4040 = vrot.lane.b32.xlu0 %v3843, 80
      %v4041 = vpop.permute.xlu0 %4040
      %4042 = vrot.lane.b32.xlu0 %v3853, 80
      %v4043 = vpop.permute.xlu0 %4042
      %4044 = vrot.lane.b32.xlu0 %v3863, 80
      %v4045 = vpop.permute.xlu0 %4044
      %4046 = vrot.lane.b32.xlu0 %v3873, 80
      %v4047 = vpop.permute.xlu0 %4046
      %4048 = vrot.lane.b32.xlu0 %v3883, 80
      %v4049 = vpop.permute.xlu0 %4048
      %4050 = vrot.lane.b32.xlu0 %v3893, 80
      %v4051 = vpop.permute.xlu0 %4050
      %4052 = vrot.lane.b32.xlu0 %v3903, 80
      %v4053 = vpop.permute.xlu0 %4052
      %4054 = vrot.lane.b32.xlu0 %v3913, 80
      %v4055 = vpop.permute.xlu0 %4054
      %4056 = vrot.lane.b32.xlu0 %v3923, 80
      %v4057 = vpop.permute.xlu0 %4056
      %4058 = vrot.lane.b32.xlu0 %v3933, 80
      %v4059 = vpop.permute.xlu0 %4058
      %4060 = vrot.lane.b32.xlu0 %v3943, 80
      %v4061 = vpop.permute.xlu0 %4060
      %4062 = vrot.lane.b32.xlu0 %v3953, 80
      %v4063 = vpop.permute.xlu0 %4062
      %4064 = vrot.lane.b32.xlu0 %v3963, 80
      %v4065 = vpop.permute.xlu0 %4064
      %4066 = vrot.lane.b32.xlu0 %v3973, 80
      %v4067 = vpop.permute.xlu0 %4066
      %vm4115 = vcmask 781952
      %4116 = vst.msk [vmem:[#allocation3] sm:$0xf] %vm4115, %v3975
      %4117 = vst.msk [vmem:[#allocation3 + $0x8] sm:$0xf] %vm4115, %v3977
      %4118 = vst.msk [vmem:[#allocation3 + $0x10] sm:$0xf] %vm4115, %v3979
      %4119 = vst.msk [vmem:[#allocation3 + $0x18] sm:$0xf] %vm4115, %v3981
      %4120 = vst.msk [vmem:[#allocation3 + $0x20] sm:$0xf] %vm4115, %v3983
      %4121 = vst.msk [vmem:[#allocation3 + $0x28] sm:$0xf] %vm4115, %v3985
      %4122 = vst.msk [vmem:[#allocation3 + $0x30] sm:$0xf] %vm4115, %v3987
      %4123 = vst.msk [vmem:[#allocation3 + $0x38] sm:$0xf] %vm4115, %v3989
      %4124 = vst.msk [vmem:[#allocation3 + $0x40] sm:$0xf] %vm4115, %v3991
      %4125 = vst.msk [vmem:[#allocation3 + $0x48] sm:$0xf] %vm4115, %v3993
      %4126 = vst.msk [vmem:[#allocation3 + $0x50] sm:$0xf] %vm4115, %v3995
      %4127 = vst.msk [vmem:[#allocation3 + $0x58] sm:$0xf] %vm4115, %v3997
      %4128 = vst.msk [vmem:[#allocation3 + $0x60] sm:$0xf] %vm4115, %v3999
      %4129 = vst.msk [vmem:[#allocation3 + $0x68] sm:$0xf] %vm4115, %v4001
      %4130 = vst.msk [vmem:[#allocation3 + $0x70] sm:$0xf] %vm4115, %v4003
      %4131 = vst.msk [vmem:[#allocation3 + $0x78] sm:$0xf] %vm4115, %v4005
      %4132 = vst.msk [vmem:[#allocation3 + $0x80] sm:$0xf] %vm4115, %v4007
      %4133 = vst.msk [vmem:[#allocation3 + $0x88] sm:$0xf] %vm4115, %v4009
      %4134 = vst.msk [vmem:[#allocation3 + $0x90] sm:$0xf] %vm4115, %v4011
      %4135 = vst.msk [vmem:[#allocation3 + $0x98] sm:$0xf] %vm4115, %v4013
      %4136 = vst.msk [vmem:[#allocation3 + $0xa0] sm:$0xf] %vm4115, %v4015
      %4137 = vst.msk [vmem:[#allocation3 + $0xa8] sm:$0xf] %vm4115, %v4017
      %4138 = vst.msk [vmem:[#allocation3 + $0xb0] sm:$0xf] %vm4115, %v4019
      %4139 = vst.msk [vmem:[#allocation3 + $0xb8] sm:$0xf] %vm4115, %v4021
      %4140 = vst.msk [vmem:[#allocation3 + $0xc0] sm:$0xf] %vm4115, %v4023
      %4141 = vst.msk [vmem:[#allocation3 + $0xc8] sm:$0xf] %vm4115, %v4025
      %4142 = vst.msk [vmem:[#allocation3 + $0xd0] sm:$0xf] %vm4115, %v4027
      %4143 = vst.msk [vmem:[#allocation3 + $0xd8] sm:$0xf] %vm4115, %v4029
      %4144 = vst.msk [vmem:[#allocation3 + $0xe0] sm:$0xf] %vm4115, %v4031
      %4145 = vst.msk [vmem:[#allocation3 + $0xe8] sm:$0xf] %vm4115, %v4033
      %4146 = vst.msk [vmem:[#allocation3 + $0xf0] sm:$0xf] %vm4115, %v4035
      %4147 = vst.msk [vmem:[#allocation3 + $0xf8] sm:$0xf] %vm4115, %v4037
      %4148 = vst.msk [vmem:[#allocation3 + $0x100] sm:$0xf] %vm4115, %v4039
      %4149 = vst.msk [vmem:[#allocation3 + $0x108] sm:$0xf] %vm4115, %v4041
      %4150 = vst.msk [vmem:[#allocation3 + $0x110] sm:$0xf] %vm4115, %v4043
      %4151 = vst.msk [vmem:[#allocation3 + $0x118] sm:$0xf] %vm4115, %v4045
      %4152 = vst.msk [vmem:[#allocation3 + $0x120] sm:$0xf] %vm4115, %v4047
      %4153 = vst.msk [vmem:[#allocation3 + $0x128] sm:$0xf] %vm4115, %v4049
      %4154 = vst.msk [vmem:[#allocation3 + $0x130] sm:$0xf] %vm4115, %v4051
      %4155 = vst.msk [vmem:[#allocation3 + $0x138] sm:$0xf] %vm4115, %v4053
      %4156 = vst.msk [vmem:[#allocation3 + $0x140] sm:$0xf] %vm4115, %v4055
      %4157 = vst.msk [vmem:[#allocation3 + $0x148] sm:$0xf] %vm4115, %v4057
      %4158 = vst.msk [vmem:[#allocation3 + $0x150] sm:$0xf] %vm4115, %v4059
      %4159 = vst.msk [vmem:[#allocation3 + $0x158] sm:$0xf] %vm4115, %v4061
      %4160 = vst.msk [vmem:[#allocation3 + $0x160] sm:$0xf] %vm4115, %v4063
      %4161 = vst.msk [vmem:[#allocation3 + $0x168] sm:$0xf] %vm4115, %v4065
      %4162 = vst.msk [vmem:[#allocation3 + $0x170] sm:$0xf] %vm4115, %v4067
      %v4163 = vld [vmem:[#allocation2 + $0x18] sm:$0x8]
      %v4164 = vld [vmem:[#allocation2 + $0x1c] sm:$0xf]
      %v4165 = vld [vmem:[#allocation2 + $0x20] sm:$0xf]
      %v4166 = vld [vmem:[#allocation2 + $0x24] sm:$0xf]
      %v4167 = vld [vmem:[#allocation2 + $0x28] sm:$0xf]
      %v4168 = vld [vmem:[#allocation2 + $0x2c] sm:$0xf]
      %v4169 = vld [vmem:[#allocation2 + $0x30] sm:$0xf]
      %v4170 = vld [vmem:[#allocation2 + $0x34] sm:$0xf]
      %v4171 = vld [vmem:[#allocation2 + $0x38] sm:$0xf]
      %v4172 = vld [vmem:[#allocation2 + $0x3c] sm:$0xf]
      %v4173 = vld [vmem:[#allocation2 + $0x40] sm:$0xf]
      %v4174 = vld [vmem:[#allocation2 + $0x44] sm:$0xf]
      %v4175 = vld [vmem:[#allocation2 + $0x48] sm:$0xf]
      %v4176 = vld [vmem:[#allocation2 + $0x4c] sm:$0xf]
      %v4177 = vld [vmem:[#allocation2 + $0x50] sm:$0xf]
      %v4178 = vld [vmem:[#allocation2 + $0x54] sm:$0xf]
      %v4179 = vld [vmem:[#allocation2 + $0x58] sm:$0xf]
      %v4180 = vld [vmem:[#allocation2 + $0x5c] sm:$0xf]
      %v4181 = vld [vmem:[#allocation2 + $0x60] sm:$0xf]
      %v4182 = vld [vmem:[#allocation2 + $0x64] sm:$0xf]
      %v4183 = vld [vmem:[#allocation2 + $0x68] sm:$0xf]
      %v4184 = vld [vmem:[#allocation2 + $0x6c] sm:$0xf]
      %v4185 = vld [vmem:[#allocation2 + $0x70] sm:$0xf]
      %v4186 = vld [vmem:[#allocation2 + $0x74] sm:$0xf]
      %v4187 = vld [vmem:[#allocation2 + $0x78] sm:$0xf]
      %v4188 = vld [vmem:[#allocation2 + $0x7c] sm:$0xf]
      %v4189 = vld [vmem:[#allocation2 + $0x80] sm:$0xf]
      %v4190 = vld [vmem:[#allocation2 + $0x84] sm:$0xf]
      %v4191 = vld [vmem:[#allocation2 + $0x88] sm:$0xf]
      %v4192 = vld [vmem:[#allocation2 + $0x8c] sm:$0xf]
      %v4193 = vld [vmem:[#allocation2 + $0x90] sm:$0xf]
      %v4194 = vld [vmem:[#allocation2 + $0x94] sm:$0xf]
      %v4195 = vld [vmem:[#allocation2 + $0x98] sm:$0xf]
      %v4196 = vld [vmem:[#allocation2 + $0x9c] sm:$0xf]
      %v4197 = vld [vmem:[#allocation2 + $0xa0] sm:$0xf]
      %v4198 = vld [vmem:[#allocation2 + $0xa4] sm:$0xf]
      %v4199 = vld [vmem:[#allocation2 + $0xa8] sm:$0xf]
      %v4200 = vld [vmem:[#allocation2 + $0xac] sm:$0xf]
      %v4201 = vld [vmem:[#allocation2 + $0xb0] sm:$0xf]
      %v4202 = vld [vmem:[#allocation2 + $0xb4] sm:$0xf]
      %v4203 = vld [vmem:[#allocation2 + $0xb8] sm:$0xf]
      %v4204 = vld [vmem:[#allocation2 + $0xbc] sm:$0xf]
      %v4205 = vld [vmem:[#allocation2 + $0xc0] sm:$0xf]
      %v4206 = vld [vmem:[#allocation2 + $0xc4] sm:$0xf]
      %v4207 = vld [vmem:[#allocation2 + $0xc8] sm:$0xf]
      %v4208 = vld [vmem:[#allocation2 + $0xcc] sm:$0xf]
      %v4209 = vld [vmem:[#allocation2 + $0xd0] sm:$0xf]
      %v4210 = vld [vmem:[#allocation2 + $0xd4] sm:$0xf]
      %v4212 = vshrl.u32 %v4163, 16
      %v4214 = vrot.slane %v4212, 7
      %v4215 = vrot.slane %v4214, 4
      %v4217 = vshrl.u32 %v4164, 16
      %v4219 = vrot.slane %v4217, 7
      %v4220 = vshll.u32 %v4164, 16
      %v4222 = vor.u32 %v4219, %v4220
      %v4223 = vsel %vm986, %v4215, %v4222
      %v4224 = vrot.slane %v4219, 4
      %v4226 = vshrl.u32 %v4165, 16
      %v4228 = vrot.slane %v4226, 7
      %v4229 = vshll.u32 %v4165, 16
      %v4231 = vor.u32 %v4228, %v4229
      %v4232 = vsel %vm986, %v4224, %v4231
      %v4233 = vrot.slane %v4228, 4
      %v4235 = vshrl.u32 %v4166, 16
      %v4237 = vrot.slane %v4235, 7
      %v4238 = vshll.u32 %v4166, 16
      %v4240 = vor.u32 %v4237, %v4238
      %v4241 = vsel %vm986, %v4233, %v4240
      %v4242 = vrot.slane %v4237, 4
      %v4244 = vshrl.u32 %v4167, 16
      %v4246 = vrot.slane %v4244, 7
      %v4247 = vshll.u32 %v4167, 16
      %v4249 = vor.u32 %v4246, %v4247
      %v4250 = vsel %vm986, %v4242, %v4249
      %v4251 = vrot.slane %v4246, 4
      %v4253 = vshrl.u32 %v4168, 16
      %v4255 = vrot.slane %v4253, 7
      %v4256 = vshll.u32 %v4168, 16
      %v4258 = vor.u32 %v4255, %v4256
      %v4259 = vsel %vm986, %v4251, %v4258
      %v4260 = vrot.slane %v4255, 4
      %v4262 = vshrl.u32 %v4169, 16
      %v4264 = vrot.slane %v4262, 7
      %v4265 = vshll.u32 %v4169, 16
      %v4267 = vor.u32 %v4264, %v4265
      %v4268 = vsel %vm986, %v4260, %v4267
      %v4269 = vrot.slane %v4264, 4
      %v4271 = vshrl.u32 %v4170, 16
      %v4273 = vrot.slane %v4271, 7
      %v4274 = vshll.u32 %v4170, 16
      %v4276 = vor.u32 %v4273, %v4274
      %v4277 = vsel %vm986, %v4269, %v4276
      %v4278 = vrot.slane %v4273, 4
      %v4280 = vshrl.u32 %v4171, 16
      %v4282 = vrot.slane %v4280, 7
      %v4283 = vshll.u32 %v4171, 16
      %v4285 = vor.u32 %v4282, %v4283
      %v4286 = vsel %vm986, %v4278, %v4285
      %v4287 = vrot.slane %v4282, 4
      %v4289 = vshrl.u32 %v4172, 16
      %v4291 = vrot.slane %v4289, 7
      %v4292 = vshll.u32 %v4172, 16
      %v4294 = vor.u32 %v4291, %v4292
      %v4295 = vsel %vm986, %v4287, %v4294
      %v4296 = vrot.slane %v4291, 4
      %v4298 = vshrl.u32 %v4173, 16
      %v4300 = vrot.slane %v4298, 7
      %v4301 = vshll.u32 %v4173, 16
      %v4303 = vor.u32 %v4300, %v4301
      %v4304 = vsel %vm986, %v4296, %v4303
      %v4305 = vrot.slane %v4300, 4
      %v4307 = vshrl.u32 %v4174, 16
      %v4309 = vrot.slane %v4307, 7
      %v4310 = vshll.u32 %v4174, 16
      %v4312 = vor.u32 %v4309, %v4310
      %v4313 = vsel %vm986, %v4305, %v4312
      %v4314 = vrot.slane %v4309, 4
      %v4316 = vshrl.u32 %v4175, 16
      %v4318 = vrot.slane %v4316, 7
      %v4319 = vshll.u32 %v4175, 16
      %v4321 = vor.u32 %v4318, %v4319
      %v4322 = vsel %vm986, %v4314, %v4321
      %v4323 = vrot.slane %v4318, 4
      %v4325 = vshrl.u32 %v4176, 16
      %v4327 = vrot.slane %v4325, 7
      %v4328 = vshll.u32 %v4176, 16
      %v4330 = vor.u32 %v4327, %v4328
      %v4331 = vsel %vm986, %v4323, %v4330
      %v4332 = vrot.slane %v4327, 4
      %v4334 = vshrl.u32 %v4177, 16
      %v4336 = vrot.slane %v4334, 7
      %v4337 = vshll.u32 %v4177, 16
      %v4339 = vor.u32 %v4336, %v4337
      %v4340 = vsel %vm986, %v4332, %v4339
      %v4341 = vrot.slane %v4336, 4
      %v4343 = vshrl.u32 %v4178, 16
      %v4345 = vrot.slane %v4343, 7
      %v4346 = vshll.u32 %v4178, 16
      %v4348 = vor.u32 %v4345, %v4346
      %v4349 = vsel %vm986, %v4341, %v4348
      %v4350 = vrot.slane %v4345, 4
      %v4352 = vshrl.u32 %v4179, 16
      %v4354 = vrot.slane %v4352, 7
      %v4355 = vshll.u32 %v4179, 16
      %v4357 = vor.u32 %v4354, %v4355
      %v4358 = vsel %vm986, %v4350, %v4357
      %v4359 = vrot.slane %v4354, 4
      %v4361 = vshrl.u32 %v4180, 16
      %v4363 = vrot.slane %v4361, 7
      %v4364 = vshll.u32 %v4180, 16
      %v4366 = vor.u32 %v4363, %v4364
      %v4367 = vsel %vm986, %v4359, %v4366
      %v4368 = vrot.slane %v4363, 4
      %v4370 = vshrl.u32 %v4181, 16
      %v4372 = vrot.slane %v4370, 7
      %v4373 = vshll.u32 %v4181, 16
      %v4375 = vor.u32 %v4372, %v4373
      %v4376 = vsel %vm986, %v4368, %v4375
      %v4377 = vrot.slane %v4372, 4
      %v4379 = vshrl.u32 %v4182, 16
      %v4381 = vrot.slane %v4379, 7
      %v4382 = vshll.u32 %v4182, 16
      %v4384 = vor.u32 %v4381, %v4382
      %v4385 = vsel %vm986, %v4377, %v4384
      %v4386 = vrot.slane %v4381, 4
      %v4388 = vshrl.u32 %v4183, 16
      %v4390 = vrot.slane %v4388, 7
      %v4391 = vshll.u32 %v4183, 16
      %v4393 = vor.u32 %v4390, %v4391
      %v4394 = vsel %vm986, %v4386, %v4393
      %v4395 = vrot.slane %v4390, 4
      %v4397 = vshrl.u32 %v4184, 16
      %v4399 = vrot.slane %v4397, 7
      %v4400 = vshll.u32 %v4184, 16
      %v4402 = vor.u32 %v4399, %v4400
      %v4403 = vsel %vm986, %v4395, %v4402
      %v4404 = vrot.slane %v4399, 4
      %v4406 = vshrl.u32 %v4185, 16
      %v4408 = vrot.slane %v4406, 7
      %v4409 = vshll.u32 %v4185, 16
      %v4411 = vor.u32 %v4408, %v4409
      %v4412 = vsel %vm986, %v4404, %v4411
      %v4413 = vrot.slane %v4408, 4
      %v4415 = vshrl.u32 %v4186, 16
      %v4417 = vrot.slane %v4415, 7
      %v4418 = vshll.u32 %v4186, 16
      %v4420 = vor.u32 %v4417, %v4418
      %v4421 = vsel %vm986, %v4413, %v4420
      %v4422 = vrot.slane %v4417, 4
      %v4424 = vshrl.u32 %v4187, 16
      %v4426 = vrot.slane %v4424, 7
      %v4427 = vshll.u32 %v4187, 16
      %v4429 = vor.u32 %v4426, %v4427
      %v4430 = vsel %vm986, %v4422, %v4429
      %v4431 = vrot.slane %v4426, 4
      %v4433 = vshrl.u32 %v4188, 16
      %v4435 = vrot.slane %v4433, 7
      %v4436 = vshll.u32 %v4188, 16
      %v4438 = vor.u32 %v4435, %v4436
      %v4439 = vsel %vm986, %v4431, %v4438
      %v4440 = vrot.slane %v4435, 4
      %v4442 = vshrl.u32 %v4189, 16
      %v4444 = vrot.slane %v4442, 7
      %v4445 = vshll.u32 %v4189, 16
      %v4447 = vor.u32 %v4444, %v4445
      %v4448 = vsel %vm986, %v4440, %v4447
      %v4449 = vrot.slane %v4444, 4
      %v4451 = vshrl.u32 %v4190, 16
      %v4453 = vrot.slane %v4451, 7
      %v4454 = vshll.u32 %v4190, 16
      %v4456 = vor.u32 %v4453, %v4454
      %v4457 = vsel %vm986, %v4449, %v4456
      %v4458 = vrot.slane %v4453, 4
      %v4460 = vshrl.u32 %v4191, 16
      %v4462 = vrot.slane %v4460, 7
      %v4463 = vshll.u32 %v4191, 16
      %v4465 = vor.u32 %v4462, %v4463
      %v4466 = vsel %vm986, %v4458, %v4465
      %v4467 = vrot.slane %v4462, 4
      %v4469 = vshrl.u32 %v4192, 16
      %v4471 = vrot.slane %v4469, 7
      %v4472 = vshll.u32 %v4192, 16
      %v4474 = vor.u32 %v4471, %v4472
      %v4475 = vsel %vm986, %v4467, %v4474
      %v4476 = vrot.slane %v4471, 4
      %v4478 = vshrl.u32 %v4193, 16
      %v4480 = vrot.slane %v4478, 7
      %v4481 = vshll.u32 %v4193, 16
      %v4483 = vor.u32 %v4480, %v4481
      %v4484 = vsel %vm986, %v4476, %v4483
      %v4485 = vrot.slane %v4480, 4
      %v4487 = vshrl.u32 %v4194, 16
      %v4489 = vrot.slane %v4487, 7
      %v4490 = vshll.u32 %v4194, 16
      %v4492 = vor.u32 %v4489, %v4490
      %v4493 = vsel %vm986, %v4485, %v4492
      %v4494 = vrot.slane %v4489, 4
      %v4496 = vshrl.u32 %v4195, 16
      %v4498 = vrot.slane %v4496, 7
      %v4499 = vshll.u32 %v4195, 16
      %v4501 = vor.u32 %v4498, %v4499
      %v4502 = vsel %vm986, %v4494, %v4501
      %v4503 = vrot.slane %v4498, 4
      %v4505 = vshrl.u32 %v4196, 16
      %v4507 = vrot.slane %v4505, 7
      %v4508 = vshll.u32 %v4196, 16
      %v4510 = vor.u32 %v4507, %v4508
      %v4511 = vsel %vm986, %v4503, %v4510
      %v4512 = vrot.slane %v4507, 4
      %v4514 = vshrl.u32 %v4197, 16
      %v4516 = vrot.slane %v4514, 7
      %v4517 = vshll.u32 %v4197, 16
      %v4519 = vor.u32 %v4516, %v4517
      %v4520 = vsel %vm986, %v4512, %v4519
      %v4521 = vrot.slane %v4516, 4
      %v4523 = vshrl.u32 %v4198, 16
      %v4525 = vrot.slane %v4523, 7
      %v4526 = vshll.u32 %v4198, 16
      %v4528 = vor.u32 %v4525, %v4526
      %v4529 = vsel %vm986, %v4521, %v4528
      %v4530 = vrot.slane %v4525, 4
      %v4532 = vshrl.u32 %v4199, 16
      %v4534 = vrot.slane %v4532, 7
      %v4535 = vshll.u32 %v4199, 16
      %v4537 = vor.u32 %v4534, %v4535
      %v4538 = vsel %vm986, %v4530, %v4537
      %v4539 = vrot.slane %v4534, 4
      %v4541 = vshrl.u32 %v4200, 16
      %v4543 = vrot.slane %v4541, 7
      %v4544 = vshll.u32 %v4200, 16
      %v4546 = vor.u32 %v4543, %v4544
      %v4547 = vsel %vm986, %v4539, %v4546
      %v4548 = vrot.slane %v4543, 4
      %v4550 = vshrl.u32 %v4201, 16
      %v4552 = vrot.slane %v4550, 7
      %v4553 = vshll.u32 %v4201, 16
      %v4555 = vor.u32 %v4552, %v4553
      %v4556 = vsel %vm986, %v4548, %v4555
      %v4557 = vrot.slane %v4552, 4
      %v4559 = vshrl.u32 %v4202, 16
      %v4561 = vrot.slane %v4559, 7
      %v4562 = vshll.u32 %v4202, 16
      %v4564 = vor.u32 %v4561, %v4562
      %v4565 = vsel %vm986, %v4557, %v4564
      %v4566 = vrot.slane %v4561, 4
      %v4568 = vshrl.u32 %v4203, 16
      %v4570 = vrot.slane %v4568, 7
      %v4571 = vshll.u32 %v4203, 16
      %v4573 = vor.u32 %v4570, %v4571
      %v4574 = vsel %vm986, %v4566, %v4573
      %v4575 = vrot.slane %v4570, 4
      %v4577 = vshrl.u32 %v4204, 16
      %v4579 = vrot.slane %v4577, 7
      %v4580 = vshll.u32 %v4204, 16
      %v4582 = vor.u32 %v4579, %v4580
      %v4583 = vsel %vm986, %v4575, %v4582
      %v4584 = vrot.slane %v4579, 4
      %v4586 = vshrl.u32 %v4205, 16
      %v4588 = vrot.slane %v4586, 7
      %v4589 = vshll.u32 %v4205, 16
      %v4591 = vor.u32 %v4588, %v4589
      %v4592 = vsel %vm986, %v4584, %v4591
      %v4593 = vrot.slane %v4588, 4
      %v4595 = vshrl.u32 %v4206, 16
      %v4597 = vrot.slane %v4595, 7
      %v4598 = vshll.u32 %v4206, 16
      %v4600 = vor.u32 %v4597, %v4598
      %v4601 = vsel %vm986, %v4593, %v4600
      %v4602 = vrot.slane %v4597, 4
      %v4604 = vshrl.u32 %v4207, 16
      %v4606 = vrot.slane %v4604, 7
      %v4607 = vshll.u32 %v4207, 16
      %v4609 = vor.u32 %v4606, %v4607
      %v4610 = vsel %vm986, %v4602, %v4609
      %v4611 = vrot.slane %v4606, 4
      %v4613 = vshrl.u32 %v4208, 16
      %v4615 = vrot.slane %v4613, 7
      %v4616 = vshll.u32 %v4208, 16
      %v4618 = vor.u32 %v4615, %v4616
      %v4619 = vsel %vm986, %v4611, %v4618
      %v4620 = vrot.slane %v4615, 4
      %v4622 = vshrl.u32 %v4209, 16
      %v4624 = vrot.slane %v4622, 7
      %v4625 = vshll.u32 %v4209, 16
      %v4627 = vor.u32 %v4624, %v4625
      %v4628 = vsel %vm986, %v4620, %v4627
      %v4629 = vrot.slane %v4624, 4
      %v4631 = vshrl.u32 %v4210, 16
      %v4633 = vrot.slane %v4631, 7
      %v4634 = vshll.u32 %v4210, 16
      %v4636 = vor.u32 %v4633, %v4634
      %v4637 = vsel %vm986, %v4629, %v4636
      %4638 = vrot.lane.b32.xlu0 %v4223, 96
      %v4639 = vpop.permute.xlu0 %4638
      %4640 = vrot.lane.b32.xlu0 %v4232, 96
      %v4641 = vpop.permute.xlu0 %4640
      %4642 = vrot.lane.b32.xlu0 %v4241, 96
      %v4643 = vpop.permute.xlu0 %4642
      %4644 = vrot.lane.b32.xlu0 %v4250, 96
      %v4645 = vpop.permute.xlu0 %4644
      %4646 = vrot.lane.b32.xlu0 %v4259, 96
      %v4647 = vpop.permute.xlu0 %4646
      %4648 = vrot.lane.b32.xlu0 %v4268, 96
      %v4649 = vpop.permute.xlu0 %4648
      %4650 = vrot.lane.b32.xlu0 %v4277, 96
      %v4651 = vpop.permute.xlu0 %4650
      %4652 = vrot.lane.b32.xlu0 %v4286, 96
      %v4653 = vpop.permute.xlu0 %4652
      %4654 = vrot.lane.b32.xlu0 %v4295, 96
      %v4655 = vpop.permute.xlu0 %4654
      %4656 = vrot.lane.b32.xlu0 %v4304, 96
      %v4657 = vpop.permute.xlu0 %4656
      %4658 = vrot.lane.b32.xlu0 %v4313, 96
      %v4659 = vpop.permute.xlu0 %4658
      %4660 = vrot.lane.b32.xlu0 %v4322, 96
      %v4661 = vpop.permute.xlu0 %4660
      %4662 = vrot.lane.b32.xlu0 %v4331, 96
      %v4663 = vpop.permute.xlu0 %4662
      %4664 = vrot.lane.b32.xlu0 %v4340, 96
      %v4665 = vpop.permute.xlu0 %4664
      %4666 = vrot.lane.b32.xlu0 %v4349, 96
      %v4667 = vpop.permute.xlu0 %4666
      %4668 = vrot.lane.b32.xlu0 %v4358, 96
      %v4669 = vpop.permute.xlu0 %4668
      %4670 = vrot.lane.b32.xlu0 %v4367, 96
      %v4671 = vpop.permute.xlu0 %4670
      %4672 = vrot.lane.b32.xlu0 %v4376, 96
      %v4673 = vpop.permute.xlu0 %4672
      %4674 = vrot.lane.b32.xlu0 %v4385, 96
      %v4675 = vpop.permute.xlu0 %4674
      %4676 = vrot.lane.b32.xlu0 %v4394, 96
      %v4677 = vpop.permute.xlu0 %4676
      %4678 = vrot.lane.b32.xlu0 %v4403, 96
      %v4679 = vpop.permute.xlu0 %4678
      %4680 = vrot.lane.b32.xlu0 %v4412, 96
      %v4681 = vpop.permute.xlu0 %4680
      %4682 = vrot.lane.b32.xlu0 %v4421, 96
      %v4683 = vpop.permute.xlu0 %4682
      %4684 = vrot.lane.b32.xlu0 %v4430, 96
      %v4685 = vpop.permute.xlu0 %4684
      %4686 = vrot.lane.b32.xlu0 %v4439, 96
      %v4687 = vpop.permute.xlu0 %4686
      %4688 = vrot.lane.b32.xlu0 %v4448, 96
      %v4689 = vpop.permute.xlu0 %4688
      %4690 = vrot.lane.b32.xlu0 %v4457, 96
      %v4691 = vpop.permute.xlu0 %4690
      %4692 = vrot.lane.b32.xlu0 %v4466, 96
      %v4693 = vpop.permute.xlu0 %4692
      %4694 = vrot.lane.b32.xlu0 %v4475, 96
      %v4695 = vpop.permute.xlu0 %4694
      %4696 = vrot.lane.b32.xlu0 %v4484, 96
      %v4697 = vpop.permute.xlu0 %4696
      %4698 = vrot.lane.b32.xlu0 %v4493, 96
      %v4699 = vpop.permute.xlu0 %4698
      %4700 = vrot.lane.b32.xlu0 %v4502, 96
      %v4701 = vpop.permute.xlu0 %4700
      %4702 = vrot.lane.b32.xlu0 %v4511, 96
      %v4703 = vpop.permute.xlu0 %4702
      %4704 = vrot.lane.b32.xlu0 %v4520, 96
      %v4705 = vpop.permute.xlu0 %4704
      %4706 = vrot.lane.b32.xlu0 %v4529, 96
      %v4707 = vpop.permute.xlu0 %4706
      %4708 = vrot.lane.b32.xlu0 %v4538, 96
      %v4709 = vpop.permute.xlu0 %4708
      %4710 = vrot.lane.b32.xlu0 %v4547, 96
      %v4711 = vpop.permute.xlu0 %4710
      %4712 = vrot.lane.b32.xlu0 %v4556, 96
      %v4713 = vpop.permute.xlu0 %4712
      %4714 = vrot.lane.b32.xlu0 %v4565, 96
      %v4715 = vpop.permute.xlu0 %4714
      %4716 = vrot.lane.b32.xlu0 %v4574, 96
      %v4717 = vpop.permute.xlu0 %4716
      %4718 = vrot.lane.b32.xlu0 %v4583, 96
      %v4719 = vpop.permute.xlu0 %4718
      %4720 = vrot.lane.b32.xlu0 %v4592, 96
      %v4721 = vpop.permute.xlu0 %4720
      %4722 = vrot.lane.b32.xlu0 %v4601, 96
      %v4723 = vpop.permute.xlu0 %4722
      %4724 = vrot.lane.b32.xlu0 %v4610, 96
      %v4725 = vpop.permute.xlu0 %4724
      %4726 = vrot.lane.b32.xlu0 %v4619, 96
      %v4727 = vpop.permute.xlu0 %4726
      %4728 = vrot.lane.b32.xlu0 %v4628, 96
      %v4729 = vpop.permute.xlu0 %4728
      %4730 = vrot.lane.b32.xlu0 %v4637, 96
      %v4731 = vpop.permute.xlu0 %4730
      %vm4779 = vcmask 913152
      %4780 = vst.msk [vmem:[#allocation3] sm:$0xf] %vm4779, %v4639
      %4781 = vst.msk [vmem:[#allocation3 + $0x8] sm:$0xf] %vm4779, %v4641
      %4782 = vst.msk [vmem:[#allocation3 + $0x10] sm:$0xf] %vm4779, %v4643
      %4783 = vst.msk [vmem:[#allocation3 + $0x18] sm:$0xf] %vm4779, %v4645
      %4784 = vst.msk [vmem:[#allocation3 + $0x20] sm:$0xf] %vm4779, %v4647
      %4785 = vst.msk [vmem:[#allocation3 + $0x28] sm:$0xf] %vm4779, %v4649
      %4786 = vst.msk [vmem:[#allocation3 + $0x30] sm:$0xf] %vm4779, %v4651
      %4787 = vst.msk [vmem:[#allocation3 + $0x38] sm:$0xf] %vm4779, %v4653
      %4788 = vst.msk [vmem:[#allocation3 + $0x40] sm:$0xf] %vm4779, %v4655
      %4789 = vst.msk [vmem:[#allocation3 + $0x48] sm:$0xf] %vm4779, %v4657
      %4790 = vst.msk [vmem:[#allocation3 + $0x50] sm:$0xf] %vm4779, %v4659
      %4791 = vst.msk [vmem:[#allocation3 + $0x58] sm:$0xf] %vm4779, %v4661
      %4792 = vst.msk [vmem:[#allocation3 + $0x60] sm:$0xf] %vm4779, %v4663
      %4793 = vst.msk [vmem:[#allocation3 + $0x68] sm:$0xf] %vm4779, %v4665
      %4794 = vst.msk [vmem:[#allocation3 + $0x70] sm:$0xf] %vm4779, %v4667
      %4795 = vst.msk [vmem:[#allocation3 + $0x78] sm:$0xf] %vm4779, %v4669
      %4796 = vst.msk [vmem:[#allocation3 + $0x80] sm:$0xf] %vm4779, %v4671
      %4797 = vst.msk [vmem:[#allocation3 + $0x88] sm:$0xf] %vm4779, %v4673
      %4798 = vst.msk [vmem:[#allocation3 + $0x90] sm:$0xf] %vm4779, %v4675
      %4799 = vst.msk [vmem:[#allocation3 + $0x98] sm:$0xf] %vm4779, %v4677
      %4800 = vst.msk [vmem:[#allocation3 + $0xa0] sm:$0xf] %vm4779, %v4679
      %4801 = vst.msk [vmem:[#allocation3 + $0xa8] sm:$0xf] %vm4779, %v4681
      %4802 = vst.msk [vmem:[#allocation3 + $0xb0] sm:$0xf] %vm4779, %v4683
      %4803 = vst.msk [vmem:[#allocation3 + $0xb8] sm:$0xf] %vm4779, %v4685
      %4804 = vst.msk [vmem:[#allocation3 + $0xc0] sm:$0xf] %vm4779, %v4687
      %4805 = vst.msk [vmem:[#allocation3 + $0xc8] sm:$0xf] %vm4779, %v4689
      %4806 = vst.msk [vmem:[#allocation3 + $0xd0] sm:$0xf] %vm4779, %v4691
      %4807 = vst.msk [vmem:[#allocation3 + $0xd8] sm:$0xf] %vm4779, %v4693
      %4808 = vst.msk [vmem:[#allocation3 + $0xe0] sm:$0xf] %vm4779, %v4695
      %4809 = vst.msk [vmem:[#allocation3 + $0xe8] sm:$0xf] %vm4779, %v4697
      %4810 = vst.msk [vmem:[#allocation3 + $0xf0] sm:$0xf] %vm4779, %v4699
      %4811 = vst.msk [vmem:[#allocation3 + $0xf8] sm:$0xf] %vm4779, %v4701
      %4812 = vst.msk [vmem:[#allocation3 + $0x100] sm:$0xf] %vm4779, %v4703
      %4813 = vst.msk [vmem:[#allocation3 + $0x108] sm:$0xf] %vm4779, %v4705
      %4814 = vst.msk [vmem:[#allocation3 + $0x110] sm:$0xf] %vm4779, %v4707
      %4815 = vst.msk [vmem:[#allocation3 + $0x118] sm:$0xf] %vm4779, %v4709
      %4816 = vst.msk [vmem:[#allocation3 + $0x120] sm:$0xf] %vm4779, %v4711
      %4817 = vst.msk [vmem:[#allocation3 + $0x128] sm:$0xf] %vm4779, %v4713
      %4818 = vst.msk [vmem:[#allocation3 + $0x130] sm:$0xf] %vm4779, %v4715
      %4819 = vst.msk [vmem:[#allocation3 + $0x138] sm:$0xf] %vm4779, %v4717
      %4820 = vst.msk [vmem:[#allocation3 + $0x140] sm:$0xf] %vm4779, %v4719
      %4821 = vst.msk [vmem:[#allocation3 + $0x148] sm:$0xf] %vm4779, %v4721
      %4822 = vst.msk [vmem:[#allocation3 + $0x150] sm:$0xf] %vm4779, %v4723
      %4823 = vst.msk [vmem:[#allocation3 + $0x158] sm:$0xf] %vm4779, %v4725
      %4824 = vst.msk [vmem:[#allocation3 + $0x160] sm:$0xf] %vm4779, %v4727
      %4825 = vst.msk [vmem:[#allocation3 + $0x168] sm:$0xf] %vm4779, %v4729
      %4826 = vst.msk [vmem:[#allocation3 + $0x170] sm:$0xf] %vm4779, %v4731
      %v4827 = vld [vmem:[#allocation2 + $0x1c] sm:$0xf]
      %v4828 = vld [vmem:[#allocation2 + $0x20] sm:$0xf]
      %v4829 = vld [vmem:[#allocation2 + $0x24] sm:$0xf]
      %v4830 = vld [vmem:[#allocation2 + $0x28] sm:$0xf]
      %v4831 = vld [vmem:[#allocation2 + $0x2c] sm:$0xf]
      %v4832 = vld [vmem:[#allocation2 + $0x30] sm:$0xf]
      %v4833 = vld [vmem:[#allocation2 + $0x34] sm:$0xf]
      %v4834 = vld [vmem:[#allocation2 + $0x38] sm:$0xf]
      %v4835 = vld [vmem:[#allocation2 + $0x3c] sm:$0xf]
      %v4836 = vld [vmem:[#allocation2 + $0x40] sm:$0xf]
      %v4837 = vld [vmem:[#allocation2 + $0x44] sm:$0xf]
      %v4838 = vld [vmem:[#allocation2 + $0x48] sm:$0xf]
      %v4839 = vld [vmem:[#allocation2 + $0x4c] sm:$0xf]
      %v4840 = vld [vmem:[#allocation2 + $0x50] sm:$0xf]
      %v4841 = vld [vmem:[#allocation2 + $0x54] sm:$0xf]
      %v4842 = vld [vmem:[#allocation2 + $0x58] sm:$0xf]
      %v4843 = vld [vmem:[#allocation2 + $0x5c] sm:$0xf]
      %v4844 = vld [vmem:[#allocation2 + $0x60] sm:$0xf]
      %v4845 = vld [vmem:[#allocation2 + $0x64] sm:$0xf]
      %v4846 = vld [vmem:[#allocation2 + $0x68] sm:$0xf]
      %v4847 = vld [vmem:[#allocation2 + $0x6c] sm:$0xf]
      %v4848 = vld [vmem:[#allocation2 + $0x70] sm:$0xf]
      %v4849 = vld [vmem:[#allocation2 + $0x74] sm:$0xf]
      %v4850 = vld [vmem:[#allocation2 + $0x78] sm:$0xf]
      %v4851 = vld [vmem:[#allocation2 + $0x7c] sm:$0xf]
      %v4852 = vld [vmem:[#allocation2 + $0x80] sm:$0xf]
      %v4853 = vld [vmem:[#allocation2 + $0x84] sm:$0xf]
      %v4854 = vld [vmem:[#allocation2 + $0x88] sm:$0xf]
      %v4855 = vld [vmem:[#allocation2 + $0x8c] sm:$0xf]
      %v4856 = vld [vmem:[#allocation2 + $0x90] sm:$0xf]
      %v4857 = vld [vmem:[#allocation2 + $0x94] sm:$0xf]
      %v4858 = vld [vmem:[#allocation2 + $0x98] sm:$0xf]
      %v4859 = vld [vmem:[#allocation2 + $0x9c] sm:$0xf]
      %v4860 = vld [vmem:[#allocation2 + $0xa0] sm:$0xf]
      %v4861 = vld [vmem:[#allocation2 + $0xa4] sm:$0xf]
      %v4862 = vld [vmem:[#allocation2 + $0xa8] sm:$0xf]
      %v4863 = vld [vmem:[#allocation2 + $0xac] sm:$0xf]
      %v4864 = vld [vmem:[#allocation2 + $0xb0] sm:$0xf]
      %v4865 = vld [vmem:[#allocation2 + $0xb4] sm:$0xf]
      %v4866 = vld [vmem:[#allocation2 + $0xb8] sm:$0xf]
      %v4867 = vld [vmem:[#allocation2 + $0xbc] sm:$0xf]
      %v4868 = vld [vmem:[#allocation2 + $0xc0] sm:$0xf]
      %v4869 = vld [vmem:[#allocation2 + $0xc4] sm:$0xf]
      %v4870 = vld [vmem:[#allocation2 + $0xc8] sm:$0xf]
      %v4871 = vld [vmem:[#allocation2 + $0xcc] sm:$0xf]
      %v4872 = vld [vmem:[#allocation2 + $0xd0] sm:$0xf]
      %v4873 = vld [vmem:[#allocation2 + $0xd4] sm:$0xf]
      %4921 = vrot.lane.b32.xlu0 %v4827, 112
      %v4922 = vpop.permute.xlu0 %4921
      %4923 = vrot.lane.b32.xlu0 %v4828, 112
      %v4924 = vpop.permute.xlu0 %4923
      %4925 = vrot.lane.b32.xlu0 %v4829, 112
      %v4926 = vpop.permute.xlu0 %4925
      %4927 = vrot.lane.b32.xlu0 %v4830, 112
      %v4928 = vpop.permute.xlu0 %4927
      %4929 = vrot.lane.b32.xlu0 %v4831, 112
      %v4930 = vpop.permute.xlu0 %4929
      %4931 = vrot.lane.b32.xlu0 %v4832, 112
      %v4932 = vpop.permute.xlu0 %4931
      %4933 = vrot.lane.b32.xlu0 %v4833, 112
      %v4934 = vpop.permute.xlu0 %4933
      %4935 = vrot.lane.b32.xlu0 %v4834, 112
      %v4936 = vpop.permute.xlu0 %4935
      %4937 = vrot.lane.b32.xlu0 %v4835, 112
      %v4938 = vpop.permute.xlu0 %4937
      %4939 = vrot.lane.b32.xlu0 %v4836, 112
      %v4940 = vpop.permute.xlu0 %4939
      %4941 = vrot.lane.b32.xlu0 %v4837, 112
      %v4942 = vpop.permute.xlu0 %4941
      %4943 = vrot.lane.b32.xlu0 %v4838, 112
      %v4944 = vpop.permute.xlu0 %4943
      %4945 = vrot.lane.b32.xlu0 %v4839, 112
      %v4946 = vpop.permute.xlu0 %4945
      %4947 = vrot.lane.b32.xlu0 %v4840, 112
      %v4948 = vpop.permute.xlu0 %4947
      %4949 = vrot.lane.b32.xlu0 %v4841, 112
      %v4950 = vpop.permute.xlu0 %4949
      %4951 = vrot.lane.b32.xlu0 %v4842, 112
      %v4952 = vpop.permute.xlu0 %4951
      %4953 = vrot.lane.b32.xlu0 %v4843, 112
      %v4954 = vpop.permute.xlu0 %4953
      %4955 = vrot.lane.b32.xlu0 %v4844, 112
      %v4956 = vpop.permute.xlu0 %4955
      %4957 = vrot.lane.b32.xlu0 %v4845, 112
      %v4958 = vpop.permute.xlu0 %4957
      %4959 = vrot.lane.b32.xlu0 %v4846, 112
      %v4960 = vpop.permute.xlu0 %4959
      %4961 = vrot.lane.b32.xlu0 %v4847, 112
      %v4962 = vpop.permute.xlu0 %4961
      %4963 = vrot.lane.b32.xlu0 %v4848, 112
      %v4964 = vpop.permute.xlu0 %4963
      %4965 = vrot.lane.b32.xlu0 %v4849, 112
      %v4966 = vpop.permute.xlu0 %4965
      %4967 = vrot.lane.b32.xlu0 %v4850, 112
      %v4968 = vpop.permute.xlu0 %4967
      %4969 = vrot.lane.b32.xlu0 %v4851, 112
      %v4970 = vpop.permute.xlu0 %4969
      %4971 = vrot.lane.b32.xlu0 %v4852, 112
      %v4972 = vpop.permute.xlu0 %4971
      %4973 = vrot.lane.b32.xlu0 %v4853, 112
      %v4974 = vpop.permute.xlu0 %4973
      %4975 = vrot.lane.b32.xlu0 %v4854, 112
      %v4976 = vpop.permute.xlu0 %4975
      %4977 = vrot.lane.b32.xlu0 %v4855, 112
      %v4978 = vpop.permute.xlu0 %4977
      %4979 = vrot.lane.b32.xlu0 %v4856, 112
      %v4980 = vpop.permute.xlu0 %4979
      %4981 = vrot.lane.b32.xlu0 %v4857, 112
      %v4982 = vpop.permute.xlu0 %4981
      %4983 = vrot.lane.b32.xlu0 %v4858, 112
      %v4984 = vpop.permute.xlu0 %4983
      %4985 = vrot.lane.b32.xlu0 %v4859, 112
      %v4986 = vpop.permute.xlu0 %4985
      %4987 = vrot.lane.b32.xlu0 %v4860, 112
      %v4988 = vpop.permute.xlu0 %4987
      %4989 = vrot.lane.b32.xlu0 %v4861, 112
      %v4990 = vpop.permute.xlu0 %4989
      %4991 = vrot.lane.b32.xlu0 %v4862, 112
      %v4992 = vpop.permute.xlu0 %4991
      %4993 = vrot.lane.b32.xlu0 %v4863, 112
      %v4994 = vpop.permute.xlu0 %4993
      %4995 = vrot.lane.b32.xlu0 %v4864, 112
      %v4996 = vpop.permute.xlu0 %4995
      %4997 = vrot.lane.b32.xlu0 %v4865, 112
      %v4998 = vpop.permute.xlu0 %4997
      %4999 = vrot.lane.b32.xlu0 %v4866, 112
      %v5000 = vpop.permute.xlu0 %4999
      %5001 = vrot.lane.b32.xlu0 %v4867, 112
      %v5002 = vpop.permute.xlu0 %5001
      %5003 = vrot.lane.b32.xlu0 %v4868, 112
      %v5004 = vpop.permute.xlu0 %5003
      %5005 = vrot.lane.b32.xlu0 %v4869, 112
      %v5006 = vpop.permute.xlu0 %5005
      %5007 = vrot.lane.b32.xlu0 %v4870, 112
      %v5008 = vpop.permute.xlu0 %5007
      %5009 = vrot.lane.b32.xlu0 %v4871, 112
      %v5010 = vpop.permute.xlu0 %5009
      %5011 = vrot.lane.b32.xlu0 %v4872, 112
      %v5012 = vpop.permute.xlu0 %5011
      %5013 = vrot.lane.b32.xlu0 %v4873, 112
      %v5014 = vpop.permute.xlu0 %5013
      %vm5062 = vcmask 1044352
      %5063 = vst.msk [vmem:[#allocation3] sm:$0xf] %vm5062, %v4922
      %5064 = vst.msk [vmem:[#allocation3 + $0x8] sm:$0xf] %vm5062, %v4924
      %5065 = vst.msk [vmem:[#allocation3 + $0x10] sm:$0xf] %vm5062, %v4926
      %5066 = vst.msk [vmem:[#allocation3 + $0x18] sm:$0xf] %vm5062, %v4928
      %5067 = vst.msk [vmem:[#allocation3 + $0x20] sm:$0xf] %vm5062, %v4930
      %5068 = vst.msk [vmem:[#allocation3 + $0x28] sm:$0xf] %vm5062, %v4932
      %5069 = vst.msk [vmem:[#allocation3 + $0x30] sm:$0xf] %vm5062, %v4934
      %5070 = vst.msk [vmem:[#allocation3 + $0x38] sm:$0xf] %vm5062, %v4936
      %5071 = vst.msk [vmem:[#allocation3 + $0x40] sm:$0xf] %vm5062, %v4938
      %5072 = vst.msk [vmem:[#allocation3 + $0x48] sm:$0xf] %vm5062, %v4940
      %5073 = vst.msk [vmem:[#allocation3 + $0x50] sm:$0xf] %vm5062, %v4942
      %5074 = vst.msk [vmem:[#allocation3 + $0x58] sm:$0xf] %vm5062, %v4944
      %5075 = vst.msk [vmem:[#allocation3 + $0x60] sm:$0xf] %vm5062, %v4946
      %5076 = vst.msk [vmem:[#allocation3 + $0x68] sm:$0xf] %vm5062, %v4948
      %5077 = vst.msk [vmem:[#allocation3 + $0x70] sm:$0xf] %vm5062, %v4950
      %5078 = vst.msk [vmem:[#allocation3 + $0x78] sm:$0xf] %vm5062, %v4952
      %5079 = vst.msk [vmem:[#allocation3 + $0x80] sm:$0xf] %vm5062, %v4954
      %5080 = vst.msk [vmem:[#allocation3 + $0x88] sm:$0xf] %vm5062, %v4956
      %5081 = vst.msk [vmem:[#allocation3 + $0x90] sm:$0xf] %vm5062, %v4958
      %5082 = vst.msk [vmem:[#allocation3 + $0x98] sm:$0xf] %vm5062, %v4960
      %5083 = vst.msk [vmem:[#allocation3 + $0xa0] sm:$0xf] %vm5062, %v4962
      %5084 = vst.msk [vmem:[#allocation3 + $0xa8] sm:$0xf] %vm5062, %v4964
      %5085 = vst.msk [vmem:[#allocation3 + $0xb0] sm:$0xf] %vm5062, %v4966
      %5086 = vst.msk [vmem:[#allocation3 + $0xb8] sm:$0xf] %vm5062, %v4968
      %5087 = vst.msk [vmem:[#allocation3 + $0xc0] sm:$0xf] %vm5062, %v4970
      %5088 = vst.msk [vmem:[#allocation3 + $0xc8] sm:$0xf] %vm5062, %v4972
      %5089 = vst.msk [vmem:[#allocation3 + $0xd0] sm:$0xf] %vm5062, %v4974
      %5090 = vst.msk [vmem:[#allocation3 + $0xd8] sm:$0xf] %vm5062, %v4976
      %5091 = vst.msk [vmem:[#allocation3 + $0xe0] sm:$0xf] %vm5062, %v4978
      %5092 = vst.msk [vmem:[#allocation3 + $0xe8] sm:$0xf] %vm5062, %v4980
      %5093 = vst.msk [vmem:[#allocation3 + $0xf0] sm:$0xf] %vm5062, %v4982
      %5094 = vst.msk [vmem:[#allocation3 + $0xf8] sm:$0xf] %vm5062, %v4984
      %5095 = vst.msk [vmem:[#allocation3 + $0x100] sm:$0xf] %vm5062, %v4986
      %5096 = vst.msk [vmem:[#allocation3 + $0x108] sm:$0xf] %vm5062, %v4988
      %5097 = vst.msk [vmem:[#allocation3 + $0x110] sm:$0xf] %vm5062, %v4990
      %5098 = vst.msk [vmem:[#allocation3 + $0x118] sm:$0xf] %vm5062, %v4992
      %5099 = vst.msk [vmem:[#allocation3 + $0x120] sm:$0xf] %vm5062, %v4994
      %5100 = vst.msk [vmem:[#allocation3 + $0x128] sm:$0xf] %vm5062, %v4996
      %5101 = vst.msk [vmem:[#allocation3 + $0x130] sm:$0xf] %vm5062, %v4998
      %5102 = vst.msk [vmem:[#allocation3 + $0x138] sm:$0xf] %vm5062, %v5000
      %5103 = vst.msk [vmem:[#allocation3 + $0x140] sm:$0xf] %vm5062, %v5002
      %5104 = vst.msk [vmem:[#allocation3 + $0x148] sm:$0xf] %vm5062, %v5004
      %5105 = vst.msk [vmem:[#allocation3 + $0x150] sm:$0xf] %vm5062, %v5006
      %5106 = vst.msk [vmem:[#allocation3 + $0x158] sm:$0xf] %vm5062, %v5008
      %5107 = vst.msk [vmem:[#allocation3 + $0x160] sm:$0xf] %vm5062, %v5010
      %5108 = vst.msk [vmem:[#allocation3 + $0x168] sm:$0xf] %vm5062, %v5012
      %5109 = vst.msk [vmem:[#allocation3 + $0x170] sm:$0xf] %vm5062, %v5014
      %v5110 = vld [vmem:[#allocation2 + $0x1c] sm:$0xf]
      %v5111 = vld [vmem:[#allocation2 + $0x20] sm:$0xf]
      %v5112 = vld [vmem:[#allocation2 + $0x24] sm:$0xf]
      %v5113 = vld [vmem:[#allocation2 + $0x28] sm:$0xf]
      %v5114 = vld [vmem:[#allocation2 + $0x2c] sm:$0xf]
      %v5115 = vld [vmem:[#allocation2 + $0x30] sm:$0xf]
      %v5116 = vld [vmem:[#allocation2 + $0x34] sm:$0xf]
      %v5117 = vld [vmem:[#allocation2 + $0x38] sm:$0xf]
      %v5118 = vld [vmem:[#allocation2 + $0x3c] sm:$0xf]
      %v5119 = vld [vmem:[#allocation2 + $0x40] sm:$0xf]
      %v5120 = vld [vmem:[#allocation2 + $0x44] sm:$0xf]
      %v5121 = vld [vmem:[#allocation2 + $0x48] sm:$0xf]
      %v5122 = vld [vmem:[#allocation2 + $0x4c] sm:$0xf]
      %v5123 = vld [vmem:[#allocation2 + $0x50] sm:$0xf]
      %v5124 = vld [vmem:[#allocation2 + $0x54] sm:$0xf]
      %v5125 = vld [vmem:[#allocation2 + $0x58] sm:$0xf]
      %v5126 = vld [vmem:[#allocation2 + $0x5c] sm:$0xf]
      %v5127 = vld [vmem:[#allocation2 + $0x60] sm:$0xf]
      %v5128 = vld [vmem:[#allocation2 + $0x64] sm:$0xf]
      %v5129 = vld [vmem:[#allocation2 + $0x68] sm:$0xf]
      %v5130 = vld [vmem:[#allocation2 + $0x6c] sm:$0xf]
      %v5131 = vld [vmem:[#allocation2 + $0x70] sm:$0xf]
      %v5132 = vld [vmem:[#allocation2 + $0x74] sm:$0xf]
      %v5133 = vld [vmem:[#allocation2 + $0x78] sm:$0xf]
      %v5134 = vld [vmem:[#allocation2 + $0x7c] sm:$0xf]
      %v5135 = vld [vmem:[#allocation2 + $0x80] sm:$0xf]
      %v5136 = vld [vmem:[#allocation2 + $0x84] sm:$0xf]
      %v5137 = vld [vmem:[#allocation2 + $0x88] sm:$0xf]
      %v5138 = vld [vmem:[#allocation2 + $0x8c] sm:$0xf]
      %v5139 = vld [vmem:[#allocation2 + $0x90] sm:$0xf]
      %v5140 = vld [vmem:[#allocation2 + $0x94] sm:$0xf]
      %v5141 = vld [vmem:[#allocation2 + $0x98] sm:$0xf]
      %v5142 = vld [vmem:[#allocation2 + $0x9c] sm:$0xf]
      %v5143 = vld [vmem:[#allocation2 + $0xa0] sm:$0xf]
      %v5144 = vld [vmem:[#allocation2 + $0xa4] sm:$0xf]
      %v5145 = vld [vmem:[#allocation2 + $0xa8] sm:$0xf]
      %v5146 = vld [vmem:[#allocation2 + $0xac] sm:$0xf]
      %v5147 = vld [vmem:[#allocation2 + $0xb0] sm:$0xf]
      %v5148 = vld [vmem:[#allocation2 + $0xb4] sm:$0xf]
      %v5149 = vld [vmem:[#allocation2 + $0xb8] sm:$0xf]
      %v5150 = vld [vmem:[#allocation2 + $0xbc] sm:$0xf]
      %v5151 = vld [vmem:[#allocation2 + $0xc0] sm:$0xf]
      %v5152 = vld [vmem:[#allocation2 + $0xc4] sm:$0xf]
      %v5153 = vld [vmem:[#allocation2 + $0xc8] sm:$0xf]
      %v5154 = vld [vmem:[#allocation2 + $0xcc] sm:$0xf]
      %v5155 = vld [vmem:[#allocation2 + $0xd0] sm:$0xf]
      %v5156 = vld [vmem:[#allocation2 + $0xd4] sm:$0xf]
      %v5157 = vld [vmem:[#allocation2 + $0xd8] sm:$0x1]
      %v5159 = vshrl.u32 %v5110, 16
      %v5161 = vrot.slane %v5159, 4
      %v5162 = vshll.u32 %v5110, 16
      %v5164 = vrot.slane %v5162, 5
      %v5165 = vor.u32 %v5161, %v5164
      %v5166 = vrot.slane %v5165, 4
      %v5168 = vshll.u32 %v5111, 16
      %v5170 = vrot.slane %v5168, 5
      %v5171 = vsel %vm1841, %v5166, %v5170
      %v5172 = vshrl.u32 %v5111, 16
      %v5174 = vrot.slane %v5172, 4
      %v5175 = vor.u32 %v5174, %v5170
      %v5176 = vrot.slane %v5175, 4
      %v5178 = vshll.u32 %v5112, 16
      %v5180 = vrot.slane %v5178, 5
      %v5181 = vsel %vm1841, %v5176, %v5180
      %v5182 = vshrl.u32 %v5112, 16
      %v5184 = vrot.slane %v5182, 4
      %v5185 = vor.u32 %v5184, %v5180
      %v5186 = vrot.slane %v5185, 4
      %v5188 = vshll.u32 %v5113, 16
      %v5190 = vrot.slane %v5188, 5
      %v5191 = vsel %vm1841, %v5186, %v5190
      %v5192 = vshrl.u32 %v5113, 16
      %v5194 = vrot.slane %v5192, 4
      %v5195 = vor.u32 %v5194, %v5190
      %v5196 = vrot.slane %v5195, 4
      %v5198 = vshll.u32 %v5114, 16
      %v5200 = vrot.slane %v5198, 5
      %v5201 = vsel %vm1841, %v5196, %v5200
      %v5202 = vshrl.u32 %v5114, 16
      %v5204 = vrot.slane %v5202, 4
      %v5205 = vor.u32 %v5204, %v5200
      %v5206 = vrot.slane %v5205, 4
      %v5208 = vshll.u32 %v5115, 16
      %v5210 = vrot.slane %v5208, 5
      %v5211 = vsel %vm1841, %v5206, %v5210
      %v5212 = vshrl.u32 %v5115, 16
      %v5214 = vrot.slane %v5212, 4
      %v5215 = vor.u32 %v5214, %v5210
      %v5216 = vrot.slane %v5215, 4
      %v5218 = vshll.u32 %v5116, 16
      %v5220 = vrot.slane %v5218, 5
      %v5221 = vsel %vm1841, %v5216, %v5220
      %v5222 = vshrl.u32 %v5116, 16
      %v5224 = vrot.slane %v5222, 4
      %v5225 = vor.u32 %v5224, %v5220
      %v5226 = vrot.slane %v5225, 4
      %v5228 = vshll.u32 %v5117, 16
      %v5230 = vrot.slane %v5228, 5
      %v5231 = vsel %vm1841, %v5226, %v5230
      %v5232 = vshrl.u32 %v5117, 16
      %v5234 = vrot.slane %v5232, 4
      %v5235 = vor.u32 %v5234, %v5230
      %v5236 = vrot.slane %v5235, 4
      %v5238 = vshll.u32 %v5118, 16
      %v5240 = vrot.slane %v5238, 5
      %v5241 = vsel %vm1841, %v5236, %v5240
      %v5242 = vshrl.u32 %v5118, 16
      %v5244 = vrot.slane %v5242, 4
      %v5245 = vor.u32 %v5244, %v5240
      %v5246 = vrot.slane %v5245, 4
      %v5248 = vshll.u32 %v5119, 16
      %v5250 = vrot.slane %v5248, 5
      %v5251 = vsel %vm1841, %v5246, %v5250
      %v5252 = vshrl.u32 %v5119, 16
      %v5254 = vrot.slane %v5252, 4
      %v5255 = vor.u32 %v5254, %v5250
      %v5256 = vrot.slane %v5255, 4
      %v5258 = vshll.u32 %v5120, 16
      %v5260 = vrot.slane %v5258, 5
      %v5261 = vsel %vm1841, %v5256, %v5260
      %v5262 = vshrl.u32 %v5120, 16
      %v5264 = vrot.slane %v5262, 4
      %v5265 = vor.u32 %v5264, %v5260
      %v5266 = vrot.slane %v5265, 4
      %v5268 = vshll.u32 %v5121, 16
      %v5270 = vrot.slane %v5268, 5
      %v5271 = vsel %vm1841, %v5266, %v5270
      %v5272 = vshrl.u32 %v5121, 16
      %v5274 = vrot.slane %v5272, 4
      %v5275 = vor.u32 %v5274, %v5270
      %v5276 = vrot.slane %v5275, 4
      %v5278 = vshll.u32 %v5122, 16
      %v5280 = vrot.slane %v5278, 5
      %v5281 = vsel %vm1841, %v5276, %v5280
      %v5282 = vshrl.u32 %v5122, 16
      %v5284 = vrot.slane %v5282, 4
      %v5285 = vor.u32 %v5284, %v5280
      %v5286 = vrot.slane %v5285, 4
      %v5288 = vshll.u32 %v5123, 16
      %v5290 = vrot.slane %v5288, 5
      %v5291 = vsel %vm1841, %v5286, %v5290
      %v5292 = vshrl.u32 %v5123, 16
      %v5294 = vrot.slane %v5292, 4
      %v5295 = vor.u32 %v5294, %v5290
      %v5296 = vrot.slane %v5295, 4
      %v5298 = vshll.u32 %v5124, 16
      %v5300 = vrot.slane %v5298, 5
      %v5301 = vsel %vm1841, %v5296, %v5300
      %v5302 = vshrl.u32 %v5124, 16
      %v5304 = vrot.slane %v5302, 4
      %v5305 = vor.u32 %v5304, %v5300
      %v5306 = vrot.slane %v5305, 4
      %v5308 = vshll.u32 %v5125, 16
      %v5310 = vrot.slane %v5308, 5
      %v5311 = vsel %vm1841, %v5306, %v5310
      %v5312 = vshrl.u32 %v5125, 16
      %v5314 = vrot.slane %v5312, 4
      %v5315 = vor.u32 %v5314, %v5310
      %v5316 = vrot.slane %v5315, 4
      %v5318 = vshll.u32 %v5126, 16
      %v5320 = vrot.slane %v5318, 5
      %v5321 = vsel %vm1841, %v5316, %v5320
      %v5322 = vshrl.u32 %v5126, 16
      %v5324 = vrot.slane %v5322, 4
      %v5325 = vor.u32 %v5324, %v5320
      %v5326 = vrot.slane %v5325, 4
      %v5328 = vshll.u32 %v5127, 16
      %v5330 = vrot.slane %v5328, 5
      %v5331 = vsel %vm1841, %v5326, %v5330
      %v5332 = vshrl.u32 %v5127, 16
      %v5334 = vrot.slane %v5332, 4
      %v5335 = vor.u32 %v5334, %v5330
      %v5336 = vrot.slane %v5335, 4
      %v5338 = vshll.u32 %v5128, 16
      %v5340 = vrot.slane %v5338, 5
      %v5341 = vsel %vm1841, %v5336, %v5340
      %v5342 = vshrl.u32 %v5128, 16
      %v5344 = vrot.slane %v5342, 4
      %v5345 = vor.u32 %v5344, %v5340
      %v5346 = vrot.slane %v5345, 4
      %v5348 = vshll.u32 %v5129, 16
      %v5350 = vrot.slane %v5348, 5
      %v5351 = vsel %vm1841, %v5346, %v5350
      %v5352 = vshrl.u32 %v5129, 16
      %v5354 = vrot.slane %v5352, 4
      %v5355 = vor.u32 %v5354, %v5350
      %v5356 = vrot.slane %v5355, 4
      %v5358 = vshll.u32 %v5130, 16
      %v5360 = vrot.slane %v5358, 5
      %v5361 = vsel %vm1841, %v5356, %v5360
      %v5362 = vshrl.u32 %v5130, 16
      %v5364 = vrot.slane %v5362, 4
      %v5365 = vor.u32 %v5364, %v5360
      %v5366 = vrot.slane %v5365, 4
      %v5368 = vshll.u32 %v5131, 16
      %v5370 = vrot.slane %v5368, 5
      %v5371 = vsel %vm1841, %v5366, %v5370
      %v5372 = vshrl.u32 %v5131, 16
      %v5374 = vrot.slane %v5372, 4
      %v5375 = vor.u32 %v5374, %v5370
      %v5376 = vrot.slane %v5375, 4
      %v5378 = vshll.u32 %v5132, 16
      %v5380 = vrot.slane %v5378, 5
      %v5381 = vsel %vm1841, %v5376, %v5380
      %v5382 = vshrl.u32 %v5132, 16
      %v5384 = vrot.slane %v5382, 4
      %v5385 = vor.u32 %v5384, %v5380
      %v5386 = vrot.slane %v5385, 4
      %v5388 = vshll.u32 %v5133, 16
      %v5390 = vrot.slane %v5388, 5
      %v5391 = vsel %vm1841, %v5386, %v5390
      %v5392 = vshrl.u32 %v5133, 16
      %v5394 = vrot.slane %v5392, 4
      %v5395 = vor.u32 %v5394, %v5390
      %v5396 = vrot.slane %v5395, 4
      %v5398 = vshll.u32 %v5134, 16
      %v5400 = vrot.slane %v5398, 5
      %v5401 = vsel %vm1841, %v5396, %v5400
      %v5402 = vshrl.u32 %v5134, 16
      %v5404 = vrot.slane %v5402, 4
      %v5405 = vor.u32 %v5404, %v5400
      %v5406 = vrot.slane %v5405, 4
      %v5408 = vshll.u32 %v5135, 16
      %v5410 = vrot.slane %v5408, 5
      %v5411 = vsel %vm1841, %v5406, %v5410
      %v5412 = vshrl.u32 %v5135, 16
      %v5414 = vrot.slane %v5412, 4
      %v5415 = vor.u32 %v5414, %v5410
      %v5416 = vrot.slane %v5415, 4
      %v5418 = vshll.u32 %v5136, 16
      %v5420 = vrot.slane %v5418, 5
      %v5421 = vsel %vm1841, %v5416, %v5420
      %v5422 = vshrl.u32 %v5136, 16
      %v5424 = vrot.slane %v5422, 4
      %v5425 = vor.u32 %v5424, %v5420
      %v5426 = vrot.slane %v5425, 4
      %v5428 = vshll.u32 %v5137, 16
      %v5430 = vrot.slane %v5428, 5
      %v5431 = vsel %vm1841, %v5426, %v5430
      %v5432 = vshrl.u32 %v5137, 16
      %v5434 = vrot.slane %v5432, 4
      %v5435 = vor.u32 %v5434, %v5430
      %v5436 = vrot.slane %v5435, 4
      %v5438 = vshll.u32 %v5138, 16
      %v5440 = vrot.slane %v5438, 5
      %v5441 = vsel %vm1841, %v5436, %v5440
      %v5442 = vshrl.u32 %v5138, 16
      %v5444 = vrot.slane %v5442, 4
      %v5445 = vor.u32 %v5444, %v5440
      %v5446 = vrot.slane %v5445, 4
      %v5448 = vshll.u32 %v5139, 16
      %v5450 = vrot.slane %v5448, 5
      %v5451 = vsel %vm1841, %v5446, %v5450
      %v5452 = vshrl.u32 %v5139, 16
      %v5454 = vrot.slane %v5452, 4
      %v5455 = vor.u32 %v5454, %v5450
      %v5456 = vrot.slane %v5455, 4
      %v5458 = vshll.u32 %v5140, 16
      %v5460 = vrot.slane %v5458, 5
      %v5461 = vsel %vm1841, %v5456, %v5460
      %v5462 = vshrl.u32 %v5140, 16
      %v5464 = vrot.slane %v5462, 4
      %v5465 = vor.u32 %v5464, %v5460
      %v5466 = vrot.slane %v5465, 4
      %v5468 = vshll.u32 %v5141, 16
      %v5470 = vrot.slane %v5468, 5
      %v5471 = vsel %vm1841, %v5466, %v5470
      %v5472 = vshrl.u32 %v5141, 16
      %v5474 = vrot.slane %v5472, 4
      %v5475 = vor.u32 %v5474, %v5470
      %v5476 = vrot.slane %v5475, 4
      %v5478 = vshll.u32 %v5142, 16
      %v5480 = vrot.slane %v5478, 5
      %v5481 = vsel %vm1841, %v5476, %v5480
      %v5482 = vshrl.u32 %v5142, 16
      %v5484 = vrot.slane %v5482, 4
      %v5485 = vor.u32 %v5484, %v5480
      %v5486 = vrot.slane %v5485, 4
      %v5488 = vshll.u32 %v5143, 16
      %v5490 = vrot.slane %v5488, 5
      %v5491 = vsel %vm1841, %v5486, %v5490
      %v5492 = vshrl.u32 %v5143, 16
      %v5494 = vrot.slane %v5492, 4
      %v5495 = vor.u32 %v5494, %v5490
      %v5496 = vrot.slane %v5495, 4
      %v5498 = vshll.u32 %v5144, 16
      %v5500 = vrot.slane %v5498, 5
      %v5501 = vsel %vm1841, %v5496, %v5500
      %v5502 = vshrl.u32 %v5144, 16
      %v5504 = vrot.slane %v5502, 4
      %v5505 = vor.u32 %v5504, %v5500
      %v5506 = vrot.slane %v5505, 4
      %v5508 = vshll.u32 %v5145, 16
      %v5510 = vrot.slane %v5508, 5
      %v5511 = vsel %vm1841, %v5506, %v5510
      %v5512 = vshrl.u32 %v5145, 16
      %v5514 = vrot.slane %v5512, 4
      %v5515 = vor.u32 %v5514, %v5510
      %v5516 = vrot.slane %v5515, 4
      %v5518 = vshll.u32 %v5146, 16
      %v5520 = vrot.slane %v5518, 5
      %v5521 = vsel %vm1841, %v5516, %v5520
      %v5522 = vshrl.u32 %v5146, 16
      %v5524 = vrot.slane %v5522, 4
      %v5525 = vor.u32 %v5524, %v5520
      %v5526 = vrot.slane %v5525, 4
      %v5528 = vshll.u32 %v5147, 16
      %v5530 = vrot.slane %v5528, 5
      %v5531 = vsel %vm1841, %v5526, %v5530
      %v5532 = vshrl.u32 %v5147, 16
      %v5534 = vrot.slane %v5532, 4
      %v5535 = vor.u32 %v5534, %v5530
      %v5536 = vrot.slane %v5535, 4
      %v5538 = vshll.u32 %v5148, 16
      %v5540 = vrot.slane %v5538, 5
      %v5541 = vsel %vm1841, %v5536, %v5540
      %v5542 = vshrl.u32 %v5148, 16
      %v5544 = vrot.slane %v5542, 4
      %v5545 = vor.u32 %v5544, %v5540
      %v5546 = vrot.slane %v5545, 4
      %v5548 = vshll.u32 %v5149, 16
      %v5550 = vrot.slane %v5548, 5
      %v5551 = vsel %vm1841, %v5546, %v5550
      %v5552 = vshrl.u32 %v5149, 16
      %v5554 = vrot.slane %v5552, 4
      %v5555 = vor.u32 %v5554, %v5550
      %v5556 = vrot.slane %v5555, 4
      %v5558 = vshll.u32 %v5150, 16
      %v5560 = vrot.slane %v5558, 5
      %v5561 = vsel %vm1841, %v5556, %v5560
      %v5562 = vshrl.u32 %v5150, 16
      %v5564 = vrot.slane %v5562, 4
      %v5565 = vor.u32 %v5564, %v5560
      %v5566 = vrot.slane %v5565, 4
      %v5568 = vshll.u32 %v5151, 16
      %v5570 = vrot.slane %v5568, 5
      %v5571 = vsel %vm1841, %v5566, %v5570
      %v5572 = vshrl.u32 %v5151, 16
      %v5574 = vrot.slane %v5572, 4
      %v5575 = vor.u32 %v5574, %v5570
      %v5576 = vrot.slane %v5575, 4
      %v5578 = vshll.u32 %v5152, 16
      %v5580 = vrot.slane %v5578, 5
      %v5581 = vsel %vm1841, %v5576, %v5580
      %v5582 = vshrl.u32 %v5152, 16
      %v5584 = vrot.slane %v5582, 4
      %v5585 = vor.u32 %v5584, %v5580
      %v5586 = vrot.slane %v5585, 4
      %v5588 = vshll.u32 %v5153, 16
      %v5590 = vrot.slane %v5588, 5
      %v5591 = vsel %vm1841, %v5586, %v5590
      %v5592 = vshrl.u32 %v5153, 16
      %v5594 = vrot.slane %v5592, 4
      %v5595 = vor.u32 %v5594, %v5590
      %v5596 = vrot.slane %v5595, 4
      %v5598 = vshll.u32 %v5154, 16
      %v5600 = vrot.slane %v5598, 5
      %v5601 = vsel %vm1841, %v5596, %v5600
      %v5602 = vshrl.u32 %v5154, 16
      %v5604 = vrot.slane %v5602, 4
      %v5605 = vor.u32 %v5604, %v5600
      %v5606 = vrot.slane %v5605, 4
      %v5608 = vshll.u32 %v5155, 16
      %v5610 = vrot.slane %v5608, 5
      %v5611 = vsel %vm1841, %v5606, %v5610
      %v5612 = vshrl.u32 %v5155, 16
      %v5614 = vrot.slane %v5612, 4
      %v5615 = vor.u32 %v5614, %v5610
      %v5616 = vrot.slane %v5615, 4
      %v5618 = vshll.u32 %v5156, 16
      %v5620 = vrot.slane %v5618, 5
      %v5621 = vsel %vm1841, %v5616, %v5620
      %v5622 = vshrl.u32 %v5156, 16
      %v5624 = vrot.slane %v5622, 4
      %v5625 = vor.u32 %v5624, %v5620
      %v5626 = vrot.slane %v5625, 4
      %v5628 = vshll.u32 %v5157, 16
      %v5630 = vrot.slane %v5628, 5
      %v5631 = vsel %vm1841, %v5626, %v5630
      %5679 = vst.msk [vmem:[#allocation3 + $0x4] sm:$0xf] %vm736, %v5171
      %5680 = vst.msk [vmem:[#allocation3 + $0xc] sm:$0xf] %vm736, %v5181
      %5681 = vst.msk [vmem:[#allocation3 + $0x14] sm:$0xf] %vm736, %v5191
      %5682 = vst.msk [vmem:[#allocation3 + $0x1c] sm:$0xf] %vm736, %v5201
      %5683 = vst.msk [vmem:[#allocation3 + $0x24] sm:$0xf] %vm736, %v5211
      %5684 = vst.msk [vmem:[#allocation3 + $0x2c] sm:$0xf] %vm736, %v5221
      %5685 = vst.msk [vmem:[#allocation3 + $0x34] sm:$0xf] %vm736, %v5231
      %5686 = vst.msk [vmem:[#allocation3 + $0x3c] sm:$0xf] %vm736, %v5241
      %5687 = vst.msk [vmem:[#allocation3 + $0x44] sm:$0xf] %vm736, %v5251
      %5688 = vst.msk [vmem:[#allocation3 + $0x4c] sm:$0xf] %vm736, %v5261
      %5689 = vst.msk [vmem:[#allocation3 + $0x54] sm:$0xf] %vm736, %v5271
      %5690 = vst.msk [vmem:[#allocation3 + $0x5c] sm:$0xf] %vm736, %v5281
      %5691 = vst.msk [vmem:[#allocation3 + $0x64] sm:$0xf] %vm736, %v5291
      %5692 = vst.msk [vmem:[#allocation3 + $0x6c] sm:$0xf] %vm736, %v5301
      %5693 = vst.msk [vmem:[#allocation3 + $0x74] sm:$0xf] %vm736, %v5311
      %5694 = vst.msk [vmem:[#allocation3 + $0x7c] sm:$0xf] %vm736, %v5321
      %5695 = vst.msk [vmem:[#allocation3 + $0x84] sm:$0xf] %vm736, %v5331
      %5696 = vst.msk [vmem:[#allocation3 + $0x8c] sm:$0xf] %vm736, %v5341
      %5697 = vst.msk [vmem:[#allocation3 + $0x94] sm:$0xf] %vm736, %v5351
      %5698 = vst.msk [vmem:[#allocation3 + $0x9c] sm:$0xf] %vm736, %v5361
      %5699 = vst.msk [vmem:[#allocation3 + $0xa4] sm:$0xf] %vm736, %v5371
      %5700 = vst.msk [vmem:[#allocation3 + $0xac] sm:$0xf] %vm736, %v5381
      %5701 = vst.msk [vmem:[#allocation3 + $0xb4] sm:$0xf] %vm736, %v5391
      %5702 = vst.msk [vmem:[#allocation3 + $0xbc] sm:$0xf] %vm736, %v5401
      %5703 = vst.msk [vmem:[#allocation3 + $0xc4] sm:$0xf] %vm736, %v5411
      %5704 = vst.msk [vmem:[#allocation3 + $0xcc] sm:$0xf] %vm736, %v5421
      %5705 = vst.msk [vmem:[#allocation3 + $0xd4] sm:$0xf] %vm736, %v5431
      %5706 = vst.msk [vmem:[#allocation3 + $0xdc] sm:$0xf] %vm736, %v5441
      %5707 = vst.msk [vmem:[#allocation3 + $0xe4] sm:$0xf] %vm736, %v5451
      %5708 = vst.msk [vmem:[#allocation3 + $0xec] sm:$0xf] %vm736, %v5461
      %5709 = vst.msk [vmem:[#allocation3 + $0xf4] sm:$0xf] %vm736, %v5471
      %5710 = vst.msk [vmem:[#allocation3 + $0xfc] sm:$0xf] %vm736, %v5481
      %5711 = vst.msk [vmem:[#allocation3 + $0x104] sm:$0xf] %vm736, %v5491
      %5712 = vst.msk [vmem:[#allocation3 + $0x10c] sm:$0xf] %vm736, %v5501
      %5713 = vst.msk [vmem:[#allocation3 + $0x114] sm:$0xf] %vm736, %v5511
      %5714 = vst.msk [vmem:[#allocation3 + $0x11c] sm:$0xf] %vm736, %v5521
      %5715 = vst.msk [vmem:[#allocation3 + $0x124] sm:$0xf] %vm736, %v5531
      %5716 = vst.msk [vmem:[#allocation3 + $0x12c] sm:$0xf] %vm736, %v5541
      %5717 = vst.msk [vmem:[#allocation3 + $0x134] sm:$0xf] %vm736, %v5551
      %5718 = vst.msk [vmem:[#allocation3 + $0x13c] sm:$0xf] %vm736, %v5561
      %5719 = vst.msk [vmem:[#allocation3 + $0x144] sm:$0xf] %vm736, %v5571
      %5720 = vst.msk [vmem:[#allocation3 + $0x14c] sm:$0xf] %vm736, %v5581
      %5721 = vst.msk [vmem:[#allocation3 + $0x154] sm:$0xf] %vm736, %v5591
      %5722 = vst.msk [vmem:[#allocation3 + $0x15c] sm:$0xf] %vm736, %v5601
      %5723 = vst.msk [vmem:[#allocation3 + $0x164] sm:$0xf] %vm736, %v5611
      %5724 = vst.msk [vmem:[#allocation3 + $0x16c] sm:$0xf] %vm736, %v5621
      %5725 = vst.msk [vmem:[#allocation3 + $0x174] sm:$0xf] %vm736, %v5631
      %v5726 = vld [vmem:[#allocation3] sm:$0xff]
      %v5727 = vld [vmem:[#allocation3 + $0x8] sm:$0xff]
      %v5728 = vld [vmem:[#allocation3 + $0x10] sm:$0xff]
      %v5729 = vld [vmem:[#allocation3 + $0x18] sm:$0xff]
      %v5730 = vld [vmem:[#allocation3 + $0x20] sm:$0xff]
      %v5731 = vld [vmem:[#allocation3 + $0x28] sm:$0xff]
      %v5732 = vld [vmem:[#allocation3 + $0x30] sm:$0xff]
      %v5733 = vld [vmem:[#allocation3 + $0x38] sm:$0xff]
      %v5734 = vld [vmem:[#allocation3 + $0x40] sm:$0xff]
      %v5735 = vld [vmem:[#allocation3 + $0x48] sm:$0xff]
      %v5736 = vld [vmem:[#allocation3 + $0x50] sm:$0xff]
      %v5737 = vld [vmem:[#allocation3 + $0x58] sm:$0xff]
      %v5738 = vld [vmem:[#allocation3 + $0x60] sm:$0xff]
      %v5739 = vld [vmem:[#allocation3 + $0x68] sm:$0xff]
      %v5740 = vld [vmem:[#allocation3 + $0x70] sm:$0xff]
      %v5741 = vld [vmem:[#allocation3 + $0x78] sm:$0xff]
      %v5742 = vld [vmem:[#allocation3 + $0x80] sm:$0xff]
      %v5743 = vld [vmem:[#allocation3 + $0x88] sm:$0xff]
      %v5744 = vld [vmem:[#allocation3 + $0x90] sm:$0xff]
      %v5745 = vld [vmem:[#allocation3 + $0x98] sm:$0xff]
      %v5746 = vld [vmem:[#allocation3 + $0xa0] sm:$0xff]
      %v5747 = vld [vmem:[#allocation3 + $0xa8] sm:$0xff]
      %v5748 = vld [vmem:[#allocation3 + $0xb0] sm:$0xff]
      %v5749 = vld [vmem:[#allocation3 + $0xb8] sm:$0xff]
      %v5750 = vld [vmem:[#allocation3 + $0xc0] sm:$0xff]
      %v5751 = vld [vmem:[#allocation3 + $0xc8] sm:$0xff]
      %v5752 = vld [vmem:[#allocation3 + $0xd0] sm:$0xff]
      %v5753 = vld [vmem:[#allocation3 + $0xd8] sm:$0xff]
      %v5754 = vld [vmem:[#allocation3 + $0xe0] sm:$0xff]
      %v5755 = vld [vmem:[#allocation3 + $0xe8] sm:$0xff]
      %v5756 = vld [vmem:[#allocation3 + $0xf0] sm:$0xff]
      %v5757 = vld [vmem:[#allocation3 + $0xf8] sm:$0xff]
      %v5758 = vld [vmem:[#allocation3 + $0x100] sm:$0xff]
      %v5759 = vld [vmem:[#allocation3 + $0x108] sm:$0xff]
      %v5760 = vld [vmem:[#allocation3 + $0x110] sm:$0xff]
      %v5761 = vld [vmem:[#allocation3 + $0x118] sm:$0xff]
      %v5762 = vld [vmem:[#allocation3 + $0x120] sm:$0xff]
      %v5763 = vld [vmem:[#allocation3 + $0x128] sm:$0xff]
      %v5764 = vld [vmem:[#allocation3 + $0x130] sm:$0xff]
      %v5765 = vld [vmem:[#allocation3 + $0x138] sm:$0xff]
      %v5766 = vld [vmem:[#allocation3 + $0x140] sm:$0xff]
      %v5767 = vld [vmem:[#allocation3 + $0x148] sm:$0xff]
      %v5768 = vld [vmem:[#allocation3 + $0x150] sm:$0xff]
      %v5769 = vld [vmem:[#allocation3 + $0x158] sm:$0xff]
      %v5770 = vld [vmem:[#allocation3 + $0x160] sm:$0xff]
      %v5771 = vld [vmem:[#allocation3 + $0x168] sm:$0xff]
      %v5772 = vld [vmem:[#allocation3 + $0x170] sm:$0xff]
      %v5773 = vld [vmem:[%s4] sm:$0xf]
      %v5774 = vld [vmem:[%s4 + $0x4] sm:$0xf]
      %v5775 = vld [vmem:[%s4 + $0x8] sm:$0xf]
      %v5776 = vld [vmem:[%s4 + $0xc] sm:$0xf]
      %v5777 = vld [vmem:[%s4 + $0x10] sm:$0xf]
      %v5778 = vld [vmem:[%s4 + $0x14] sm:$0xf]
      %v5779 = vld [vmem:[%s4 + $0x18] sm:$0xf]
      %v5780 = vld [vmem:[%s4 + $0x1c] sm:$0xf]
      %v5781 = vld [vmem:[%s4 + $0x20] sm:$0xf]
      %v5782 = vld [vmem:[%s4 + $0x24] sm:$0xf]
      %v5783 = vld [vmem:[%s4 + $0x28] sm:$0xf]
      %v5784 = vld [vmem:[%s4 + $0x2c] sm:$0xf]
      %v5785 = vld [vmem:[%s4 + $0x30] sm:$0xf]
      %v5786 = vld [vmem:[%s4 + $0x34] sm:$0xf]
      %v5787 = vld [vmem:[%s4 + $0x38] sm:$0xf]
      %v5788 = vld [vmem:[%s4 + $0x3c] sm:$0xf]
      %v5789 = vld [vmem:[%s4 + $0x40] sm:$0xf]
      %v5790 = vld [vmem:[%s4 + $0x44] sm:$0xf]
      %v5791 = vld [vmem:[%s5] sm:$0x1]
      %v5793 = vlaneseq
      %v5794 = vshrl.u32 %v5793, 7
      %v5795 = vsub.s32 0, %v5794
      %v5796 = vrot.slane %v5791, %v5795
      %v5845 = vunpack.c.l.b16 %v5726
      %v5846 = vunpack.c.h.b16 %v5726
      %v5847 = vunpack.c.l.b16 %v5727
      %v5848 = vunpack.c.h.b16 %v5727
      %v5849 = vunpack.c.l.b16 %v5728
      %v5850 = vunpack.c.h.b16 %v5728
      %v5851 = vunpack.c.l.b16 %v5729
      %v5852 = vunpack.c.h.b16 %v5729
      %v5853 = vunpack.c.l.b16 %v5730
      %v5854 = vunpack.c.h.b16 %v5730
      %v5855 = vunpack.c.l.b16 %v5731
      %v5856 = vunpack.c.h.b16 %v5731
      %v5857 = vunpack.c.l.b16 %v5732
      %v5858 = vunpack.c.h.b16 %v5732
      %v5859 = vunpack.c.l.b16 %v5733
      %v5860 = vunpack.c.h.b16 %v5733
      %v5861 = vunpack.c.l.b16 %v5734
      %v5862 = vunpack.c.h.b16 %v5734
      %v5863 = vunpack.c.l.b16 %v5735
      %v5864 = vunpack.c.h.b16 %v5735
      %v5865 = vunpack.c.l.b16 %v5736
      %v5866 = vunpack.c.h.b16 %v5736
      %v5867 = vunpack.c.l.b16 %v5737
      %v5868 = vunpack.c.h.b16 %v5737
      %v5869 = vunpack.c.l.b16 %v5738
      %v5870 = vunpack.c.h.b16 %v5738
      %v5871 = vunpack.c.l.b16 %v5739
      %v5872 = vunpack.c.h.b16 %v5739
      %v5873 = vunpack.c.l.b16 %v5740
      %v5874 = vunpack.c.h.b16 %v5740
      %v5875 = vunpack.c.l.b16 %v5741
      %v5876 = vunpack.c.h.b16 %v5741
      %v5877 = vunpack.c.l.b16 %v5742
      %v5878 = vunpack.c.h.b16 %v5742
      %v5879 = vunpack.c.l.b16 %v5743
      %v5880 = vunpack.c.h.b16 %v5743
      %v5881 = vunpack.c.l.b16 %v5744
      %v5882 = vunpack.c.h.b16 %v5744
      %v5883 = vunpack.c.l.b16 %v5745
      %v5884 = vunpack.c.h.b16 %v5745
      %v5885 = vunpack.c.l.b16 %v5746
      %v5886 = vunpack.c.h.b16 %v5746
      %v5887 = vunpack.c.l.b16 %v5747
      %v5888 = vunpack.c.h.b16 %v5747
      %v5889 = vunpack.c.l.b16 %v5748
      %v5890 = vunpack.c.h.b16 %v5748
      %v5891 = vunpack.c.l.b16 %v5749
      %v5892 = vunpack.c.h.b16 %v5749
      %v5893 = vunpack.c.l.b16 %v5750
      %v5894 = vunpack.c.h.b16 %v5750
      %v5895 = vunpack.c.l.b16 %v5751
      %v5896 = vunpack.c.h.b16 %v5751
      %v5897 = vunpack.c.l.b16 %v5752
      %v5898 = vunpack.c.h.b16 %v5752
      %v5899 = vunpack.c.l.b16 %v5753
      %v5900 = vunpack.c.h.b16 %v5753
      %v5901 = vunpack.c.l.b16 %v5754
      %v5902 = vunpack.c.h.b16 %v5754
      %v5903 = vunpack.c.l.b16 %v5755
      %v5904 = vunpack.c.h.b16 %v5755
      %v5905 = vunpack.c.l.b16 %v5756
      %v5906 = vunpack.c.h.b16 %v5756
      %v5907 = vunpack.c.l.b16 %v5757
      %v5908 = vunpack.c.h.b16 %v5757
      %v5909 = vunpack.c.l.b16 %v5758
      %v5910 = vunpack.c.h.b16 %v5758
      %v5911 = vunpack.c.l.b16 %v5759
      %v5912 = vunpack.c.h.b16 %v5759
      %v5913 = vunpack.c.l.b16 %v5760
      %v5914 = vunpack.c.h.b16 %v5760
      %v5915 = vunpack.c.l.b16 %v5761
      %v5916 = vunpack.c.h.b16 %v5761
      %v5917 = vunpack.c.l.b16 %v5762
      %v5918 = vunpack.c.h.b16 %v5762
      %v5919 = vunpack.c.l.b16 %v5763
      %v5920 = vunpack.c.h.b16 %v5763
      %v5921 = vunpack.c.l.b16 %v5764
      %v5922 = vunpack.c.h.b16 %v5764
      %v5923 = vunpack.c.l.b16 %v5765
      %v5924 = vunpack.c.h.b16 %v5765
      %v5925 = vunpack.c.l.b16 %v5766
      %v5926 = vunpack.c.h.b16 %v5766
      %v5927 = vunpack.c.l.b16 %v5767
      %v5928 = vunpack.c.h.b16 %v5767
      %v5929 = vunpack.c.l.b16 %v5768
      %v5930 = vunpack.c.h.b16 %v5768
      %v5931 = vunpack.c.l.b16 %v5769
      %v5932 = vunpack.c.h.b16 %v5769
      %v5933 = vunpack.c.l.b16 %v5770
      %v5934 = vunpack.c.h.b16 %v5770
      %v5935 = vunpack.c.l.b16 %v5771
      %v5936 = vunpack.c.h.b16 %v5771
      %v5937 = vunpack.c.l.b16 %v5772
      %v5938 = vunpack.c.h.b16 %v5772
      %v5939 = vpack.c.b16 %v5847, %v5845
      %v5940 = vpack.c.b16 %v5848, %v5846
      %v5941 = vpack.c.b16 %v5851, %v5849
      %v5942 = vpack.c.b16 %v5852, %v5850
      %v5943 = vpack.c.b16 %v5855, %v5853
      %v5944 = vpack.c.b16 %v5856, %v5854
      %v5945 = vpack.c.b16 %v5859, %v5857
      %v5946 = vpack.c.b16 %v5860, %v5858
      %v5947 = vpack.c.b16 %v5863, %v5861
      %v5948 = vpack.c.b16 %v5864, %v5862
      %v5949 = vpack.c.b16 %v5867, %v5865
      %v5950 = vpack.c.b16 %v5868, %v5866
      %v5951 = vpack.c.b16 %v5871, %v5869
      %v5952 = vpack.c.b16 %v5872, %v5870
      %v5953 = vpack.c.b16 %v5875, %v5873
      %v5954 = vpack.c.b16 %v5876, %v5874
      %v5955 = vpack.c.b16 %v5879, %v5877
      %v5956 = vpack.c.b16 %v5880, %v5878
      %v5957 = vpack.c.b16 %v5883, %v5881
      %v5958 = vpack.c.b16 %v5884, %v5882
      %v5959 = vpack.c.b16 %v5887, %v5885
      %v5960 = vpack.c.b16 %v5888, %v5886
      %v5961 = vpack.c.b16 %v5891, %v5889
      %v5962 = vpack.c.b16 %v5892, %v5890
      %v5963 = vpack.c.b16 %v5895, %v5893
      %v5964 = vpack.c.b16 %v5896, %v5894
      %v5965 = vpack.c.b16 %v5899, %v5897
      %v5966 = vpack.c.b16 %v5900, %v5898
      %v5967 = vpack.c.b16 %v5903, %v5901
      %v5968 = vpack.c.b16 %v5904, %v5902
      %v5969 = vpack.c.b16 %v5907, %v5905
      %v5970 = vpack.c.b16 %v5908, %v5906
      %v5971 = vpack.c.b16 %v5911, %v5909
      %v5972 = vpack.c.b16 %v5912, %v5910
      %v5973 = vpack.c.b16 %v5915, %v5913
      %v5974 = vpack.c.b16 %v5916, %v5914
      %v5975 = vpack.c.b16 %v5919, %v5917
      %v5976 = vpack.c.b16 %v5920, %v5918
      %v5977 = vpack.c.b16 %v5923, %v5921
      %v5978 = vpack.c.b16 %v5924, %v5922
      %v5979 = vpack.c.b16 %v5927, %v5925
      %v5980 = vpack.c.b16 %v5928, %v5926
      %v5981 = vpack.c.b16 %v5931, %v5929
      %v5982 = vpack.c.b16 %v5932, %v5930
      %v5983 = vpack.c.b16 %v5935, %v5933
      %v5984 = vpack.c.b16 %v5936, %v5934
      %v5985 = vpack.c.b16 %v5937, %v5937
      %v5986 = vpack.c.b16 %v5938, %v5938
      %v6029 = vunpack.c.l.b16 %v5773
      %v6030 = vunpack.c.l.b16 %v5774
      %v6031 = vunpack.c.l.b16 %v5775
      %v6032 = vunpack.c.l.b16 %v5776
      %v6033 = vunpack.c.l.b16 %v5777
      %v6034 = vunpack.c.l.b16 %v5778
      %v6035 = vunpack.c.l.b16 %v5779
      %v6036 = vunpack.c.l.b16 %v5780
      %v6037 = vunpack.c.l.b16 %v5781
      %v6038 = vunpack.c.l.b16 %v5782
      %v6039 = vunpack.c.l.b16 %v5783
      %v6040 = vunpack.c.l.b16 %v5784
      %v6041 = vunpack.c.l.b16 %v5785
      %v6042 = vunpack.c.l.b16 %v5786
      %v6043 = vunpack.c.l.b16 %v5787
      %v6044 = vunpack.c.l.b16 %v5788
      %v6045 = vunpack.c.l.b16 %v5789
      %v6046 = vunpack.c.l.b16 %v5790
      %v6047 = vpack.c.b16 %v6030, %v6029
      %v6048 = vpack.c.b16 %v6032, %v6031
      %v6049 = vpack.c.b16 %v6034, %v6033
      %v6050 = vpack.c.b16 %v6036, %v6035
      %v6051 = vpack.c.b16 %v6038, %v6037
      %v6052 = vpack.c.b16 %v6040, %v6039
      %v6053 = vpack.c.b16 %v6042, %v6041
      %v6054 = vpack.c.b16 %v6044, %v6043
      %v6055 = vpack.c.b16 %v6046, %v6045
      %vm6065 = vcmask 130048
      %v6067 = vsel %vm6065, %v5940, 0
      %v6070 = vsel %vm6065, %v5942, 0
      %v6073 = vsel %vm6065, %v5944, 0
      %v6076 = vsel %vm6065, %v5946, 0
      %v6079 = vsel %vm6065, %v5948, 0
      %v6082 = vsel %vm6065, %v5950, 0
      %v6085 = vsel %vm6065, %v5952, 0
      %v6088 = vsel %vm6065, %v5954, 0
      %v6091 = vsel %vm6065, %v5956, 0
      %v6094 = vsel %vm6065, %v5958, 0
      %v6097 = vsel %vm6065, %v5960, 0
      %v6100 = vsel %vm6065, %v5962, 0
      %v6103 = vsel %vm6065, %v5964, 0
      %v6106 = vsel %vm6065, %v5966, 0
      %v6109 = vsel %vm6065, %v5968, 0
      %v6112 = vsel %vm6065, %v5970, 0
      %v6115 = vsel %vm6065, %v5972, 0
      %v6118 = vsel %vm6065, %v5974, 0
      %v6121 = vsel %vm6065, %v5976, 0
      %v6124 = vsel %vm6065, %v5978, 0
      %v6127 = vsel %vm6065, %v5980, 0
      %v6130 = vsel %vm6065, %v5982, 0
      %v6133 = vsel %vm6065, %v5984, 0
      %v6136 = vsel %vm6065, %v5986, 0
      %6138 = vmatprep.subr.bf16.mxu0 0
      %6139 = vmatpush1.bf16.msra.mxu0 %v6054
      %6140 = vmatprep.subr.bf16.mxu0 0
      %6141 = vmatpush1.bf16.msra.mxu0 %v6053
      %6142 = vmatprep.subr.bf16.mxu0 0
      %6143 = vmatpush1.bf16.msra.mxu0 %v6052
      %6144 = vmatprep.subr.bf16.mxu0 0
      %6145 = vmatpush1.bf16.msra.mxu0 %v6051
      %6146 = vmatprep.subr.bf16.mxu0 0
      %6147 = vmatpush1.bf16.msra.mxu0 %v6050
      %6148 = vmatprep.subr.bf16.mxu0 0
      %6149 = vmatpush1.bf16.msra.mxu0 %v6049
      %6150 = vmatprep.subr.bf16.mxu0 0
      %6151 = vmatpush1.bf16.msra.mxu0 %v6048
      %6152 = vmatprep.subr.bf16.mxu0 0
      %6153 = vmatpush1.bf16.msra.mxu0 %v6047
      %6154 = vmatprep.subr.bf16.mxu0 0
      %6155 = vmatpush2.bf16.msra.mxu0 0
      %6156 = vmatprep.subr.bf16.mxu0 0
      %6157 = vmatpush2.bf16.msra.mxu0 0
      %6158 = vmatprep.subr.bf16.mxu0 0
      %6159 = vmatpush2.bf16.msra.mxu0 0
      %6160 = vmatprep.subr.bf16.mxu0 0
      %6161 = vmatpush2.bf16.msra.mxu0 0
      %6162 = vmatprep.subr.bf16.mxu0 0
      %6163 = vmatpush2.bf16.msra.mxu0 0
      %6164 = vmatprep.subr.bf16.mxu0 0
      %6165 = vmatpush2.bf16.msra.mxu0 0
      %6166 = vmatprep.subr.bf16.mxu0 0
      %6167 = vmatpush2.bf16.msra.mxu0 0
      %6168 = vmatprep.subr.bf16.mxu0 0
      %6169 = vmatpush2.bf16.msra.mxu0 %v6055
      %6170 = vmatprep.mubr.bf16.mxu0 %v6067
      %6171 = vmatmul.mubr.bf16.gmra.mxu0 %v5939
      %v6172 = vpop.f32.mrf.mxu0
      %v6173 = vadd.f32 %v5796, %v6172
      %v6174 = vpop.f32.mrf.mxu0
      %v6175 = vpop.f32.mrf.mxu0
      %v6176 = vadd.f32 %v5796, %v6175
      %v6177 = vpop.f32.mrf.mxu0
      %6178 = vmatprep.mubr.bf16.mxu0 %v6070
      %6179 = vmatmul.mubr.bf16.gmra.mxu0 %v5941
      %v6180 = vpop.f32.mrf.mxu0
      %v6181 = vadd.f32 %v5796, %v6180
      %v6182 = vpop.f32.mrf.mxu0
      %v6183 = vpop.f32.mrf.mxu0
      %v6184 = vadd.f32 %v5796, %v6183
      %v6185 = vpop.f32.mrf.mxu0
      %6186 = vmatprep.mubr.bf16.mxu0 %v6073
      %6187 = vmatmul.mubr.bf16.gmra.mxu0 %v5943
      %v6188 = vpop.f32.mrf.mxu0
      %v6189 = vadd.f32 %v5796, %v6188
      %v6190 = vpop.f32.mrf.mxu0
      %v6191 = vpop.f32.mrf.mxu0
      %v6192 = vadd.f32 %v5796, %v6191
      %v6193 = vpop.f32.mrf.mxu0
      %6194 = vmatprep.mubr.bf16.mxu0 %v6076
      %6195 = vmatmul.mubr.bf16.gmra.mxu0 %v5945
      %v6196 = vpop.f32.mrf.mxu0
      %v6197 = vadd.f32 %v5796, %v6196
      %v6198 = vpop.f32.mrf.mxu0
      %v6199 = vpop.f32.mrf.mxu0
      %v6200 = vadd.f32 %v5796, %v6199
      %v6201 = vpop.f32.mrf.mxu0
      %6202 = vmatprep.mubr.bf16.mxu0 %v6079
      %6203 = vmatmul.mubr.bf16.gmra.mxu0 %v5947
      %v6204 = vpop.f32.mrf.mxu0
      %v6205 = vadd.f32 %v5796, %v6204
      %v6206 = vpop.f32.mrf.mxu0
      %v6207 = vpop.f32.mrf.mxu0
      %v6208 = vadd.f32 %v5796, %v6207
      %v6209 = vpop.f32.mrf.mxu0
      %6210 = vmatprep.mubr.bf16.mxu0 %v6082
      %6211 = vmatmul.mubr.bf16.gmra.mxu0 %v5949
      %v6212 = vpop.f32.mrf.mxu0
      %v6213 = vadd.f32 %v5796, %v6212
      %v6214 = vpop.f32.mrf.mxu0
      %v6215 = vpop.f32.mrf.mxu0
      %v6216 = vadd.f32 %v5796, %v6215
      %v6217 = vpop.f32.mrf.mxu0
      %6218 = vmatprep.mubr.bf16.mxu0 %v6085
      %6219 = vmatmul.mubr.bf16.gmra.mxu0 %v5951
      %v6220 = vpop.f32.mrf.mxu0
      %v6221 = vadd.f32 %v5796, %v6220
      %v6222 = vpop.f32.mrf.mxu0
      %v6223 = vpop.f32.mrf.mxu0
      %v6224 = vadd.f32 %v5796, %v6223
      %v6225 = vpop.f32.mrf.mxu0
      %6226 = vmatprep.mubr.bf16.mxu0 %v6088
      %6227 = vmatmul.mubr.bf16.gmra.mxu0 %v5953
      %v6228 = vpop.f32.mrf.mxu0
      %v6229 = vadd.f32 %v5796, %v6228
      %v6230 = vpop.f32.mrf.mxu0
      %v6231 = vpop.f32.mrf.mxu0
      %v6232 = vadd.f32 %v5796, %v6231
      %v6233 = vpop.f32.mrf.mxu0
      %6234 = vmatprep.mubr.bf16.mxu0 %v6091
      %6235 = vmatmul.mubr.bf16.gmra.mxu0 %v5955
      %v6236 = vpop.f32.mrf.mxu0
      %v6237 = vadd.f32 %v5796, %v6236
      %v6238 = vpop.f32.mrf.mxu0
      %v6239 = vpop.f32.mrf.mxu0
      %v6240 = vadd.f32 %v5796, %v6239
      %v6241 = vpop.f32.mrf.mxu0
      %6242 = vmatprep.mubr.bf16.mxu0 %v6094
      %6243 = vmatmul.mubr.bf16.gmra.mxu0 %v5957
      %v6244 = vpop.f32.mrf.mxu0
      %v6245 = vadd.f32 %v5796, %v6244
      %v6246 = vpop.f32.mrf.mxu0
      %v6247 = vpop.f32.mrf.mxu0
      %v6248 = vadd.f32 %v5796, %v6247
      %v6249 = vpop.f32.mrf.mxu0
      %6250 = vmatprep.mubr.bf16.mxu0 %v6097
      %6251 = vmatmul.mubr.bf16.gmra.mxu0 %v5959
      %v6252 = vpop.f32.mrf.mxu0
      %v6253 = vadd.f32 %v5796, %v6252
      %v6254 = vpop.f32.mrf.mxu0
      %v6255 = vpop.f32.mrf.mxu0
      %v6256 = vadd.f32 %v5796, %v6255
      %v6257 = vpop.f32.mrf.mxu0
      %6258 = vmatprep.mubr.bf16.mxu0 %v6100
      %6259 = vmatmul.mubr.bf16.gmra.mxu0 %v5961
      %v6260 = vpop.f32.mrf.mxu0
      %v6261 = vadd.f32 %v5796, %v6260
      %v6262 = vpop.f32.mrf.mxu0
      %v6263 = vpop.f32.mrf.mxu0
      %v6264 = vadd.f32 %v5796, %v6263
      %v6265 = vpop.f32.mrf.mxu0
      %6266 = vmatprep.mubr.bf16.mxu0 %v6103
      %6267 = vmatmul.mubr.bf16.gmra.mxu0 %v5963
      %v6268 = vpop.f32.mrf.mxu0
      %v6269 = vadd.f32 %v5796, %v6268
      %v6270 = vpop.f32.mrf.mxu0
      %v6271 = vpop.f32.mrf.mxu0
      %v6272 = vadd.f32 %v5796, %v6271
      %v6273 = vpop.f32.mrf.mxu0
      %6274 = vmatprep.mubr.bf16.mxu0 %v6106
      %6275 = vmatmul.mubr.bf16.gmra.mxu0 %v5965
      %v6276 = vpop.f32.mrf.mxu0
      %v6277 = vadd.f32 %v5796, %v6276
      %v6278 = vpop.f32.mrf.mxu0
      %v6279 = vpop.f32.mrf.mxu0
      %v6280 = vadd.f32 %v5796, %v6279
      %v6281 = vpop.f32.mrf.mxu0
      %6282 = vmatprep.mubr.bf16.mxu0 %v6109
      %6283 = vmatmul.mubr.bf16.gmra.mxu0 %v5967
      %v6284 = vpop.f32.mrf.mxu0
      %v6285 = vadd.f32 %v5796, %v6284
      %v6286 = vpop.f32.mrf.mxu0
      %v6287 = vpop.f32.mrf.mxu0
      %v6288 = vadd.f32 %v5796, %v6287
      %v6289 = vpop.f32.mrf.mxu0
      %6290 = vmatprep.mubr.bf16.mxu0 %v6112
      %6291 = vmatmul.mubr.bf16.gmra.mxu0 %v5969
      %v6292 = vpop.f32.mrf.mxu0
      %v6293 = vadd.f32 %v5796, %v6292
      %v6294 = vpop.f32.mrf.mxu0
      %v6295 = vpop.f32.mrf.mxu0
      %v6296 = vadd.f32 %v5796, %v6295
      %v6297 = vpop.f32.mrf.mxu0
      %6298 = vmatprep.mubr.bf16.mxu0 %v6115
      %6299 = vmatmul.mubr.bf16.gmra.mxu0 %v5971
      %v6300 = vpop.f32.mrf.mxu0
      %v6301 = vadd.f32 %v5796, %v6300
      %v6302 = vpop.f32.mrf.mxu0
      %v6303 = vpop.f32.mrf.mxu0
      %v6304 = vadd.f32 %v5796, %v6303
      %v6305 = vpop.f32.mrf.mxu0
      %6306 = vmatprep.mubr.bf16.mxu0 %v6118
      %6307 = vmatmul.mubr.bf16.gmra.mxu0 %v5973
      %v6308 = vpop.f32.mrf.mxu0
      %v6309 = vadd.f32 %v5796, %v6308
      %v6310 = vpop.f32.mrf.mxu0
      %v6311 = vpop.f32.mrf.mxu0
      %v6312 = vadd.f32 %v5796, %v6311
      %v6313 = vpop.f32.mrf.mxu0
      %6314 = vmatprep.mubr.bf16.mxu0 %v6121
      %6315 = vmatmul.mubr.bf16.gmra.mxu0 %v5975
      %v6316 = vpop.f32.mrf.mxu0
      %v6317 = vadd.f32 %v5796, %v6316
      %v6318 = vpop.f32.mrf.mxu0
      %v6319 = vpop.f32.mrf.mxu0
      %v6320 = vadd.f32 %v5796, %v6319
      %v6321 = vpop.f32.mrf.mxu0
      %6322 = vmatprep.mubr.bf16.mxu0 %v6124
      %6323 = vmatmul.mubr.bf16.gmra.mxu0 %v5977
      %v6324 = vpop.f32.mrf.mxu0
      %v6325 = vadd.f32 %v5796, %v6324
      %v6326 = vpop.f32.mrf.mxu0
      %v6327 = vpop.f32.mrf.mxu0
      %v6328 = vadd.f32 %v5796, %v6327
      %v6329 = vpop.f32.mrf.mxu0
      %6330 = vmatprep.mubr.bf16.mxu0 %v6127
      %6331 = vmatmul.mubr.bf16.gmra.mxu0 %v5979
      %v6332 = vpop.f32.mrf.mxu0
      %v6333 = vadd.f32 %v5796, %v6332
      %v6334 = vpop.f32.mrf.mxu0
      %v6335 = vpop.f32.mrf.mxu0
      %v6336 = vadd.f32 %v5796, %v6335
      %v6337 = vpop.f32.mrf.mxu0
      %6338 = vmatprep.mubr.bf16.mxu0 %v6130
      %6339 = vmatmul.mubr.bf16.gmra.mxu0 %v5981
      %v6340 = vpop.f32.mrf.mxu0
      %v6341 = vadd.f32 %v5796, %v6340
      %v6342 = vpop.f32.mrf.mxu0
      %v6343 = vpop.f32.mrf.mxu0
      %v6344 = vadd.f32 %v5796, %v6343
      %v6345 = vpop.f32.mrf.mxu0
      %6346 = vmatprep.mubr.bf16.mxu0 %v6133
      %6347 = vmatmul.mubr.bf16.gmra.mxu0 %v5983
      %v6348 = vpop.f32.mrf.mxu0
      %v6349 = vadd.f32 %v5796, %v6348
      %v6350 = vpop.f32.mrf.mxu0
      %v6351 = vpop.f32.mrf.mxu0
      %v6352 = vadd.f32 %v5796, %v6351
      %v6353 = vpop.f32.mrf.mxu0
      %6354 = vmatprep.mubr.bf16.mxu0 %v6136
      %6355 = vmatmul.mubr.bf16.gmra.mxu0 %v5985
      %v6356 = vpop.f32.mrf.mxu0
      %v6357 = vadd.f32 %v5796, %v6356
      %v6358 = vpop.f32.mrf.mxu0
      %v6359 = vpop.f32.mrf.mxu0
      %v6360 = vpop.f32.mrf.mxu0
      %6361 = vdwg.mxu0
      %v6362 = vmax.f32 %v6173, 0.0
      %v6363 = vmax.f32 %v6176, 0.0
      %v6364 = vmax.f32 %v6181, 0.0
      %v6365 = vmax.f32 %v6184, 0.0
      %v6366 = vmax.f32 %v6189, 0.0
      %v6367 = vmax.f32 %v6192, 0.0
      %v6368 = vmax.f32 %v6197, 0.0
      %v6369 = vmax.f32 %v6200, 0.0
      %v6370 = vmax.f32 %v6205, 0.0
      %v6371 = vmax.f32 %v6208, 0.0
      %v6372 = vmax.f32 %v6213, 0.0
      %v6373 = vmax.f32 %v6216, 0.0
      %v6374 = vmax.f32 %v6221, 0.0
      %v6375 = vmax.f32 %v6224, 0.0
      %v6376 = vmax.f32 %v6229, 0.0
      %v6377 = vmax.f32 %v6232, 0.0
      %v6378 = vmax.f32 %v6237, 0.0
      %v6379 = vmax.f32 %v6240, 0.0
      %v6380 = vmax.f32 %v6245, 0.0
      %v6381 = vmax.f32 %v6248, 0.0
      %v6382 = vmax.f32 %v6253, 0.0
      %v6383 = vmax.f32 %v6256, 0.0
      %v6384 = vmax.f32 %v6261, 0.0
      %v6385 = vmax.f32 %v6264, 0.0
      %v6386 = vmax.f32 %v6269, 0.0
      %v6387 = vmax.f32 %v6272, 0.0
      %v6388 = vmax.f32 %v6277, 0.0
      %v6389 = vmax.f32 %v6280, 0.0
      %v6390 = vmax.f32 %v6285, 0.0
      %v6391 = vmax.f32 %v6288, 0.0
      %v6392 = vmax.f32 %v6293, 0.0
      %v6393 = vmax.f32 %v6296, 0.0
      %v6394 = vmax.f32 %v6301, 0.0
      %v6395 = vmax.f32 %v6304, 0.0
      %v6396 = vmax.f32 %v6309, 0.0
      %v6397 = vmax.f32 %v6312, 0.0
      %v6398 = vmax.f32 %v6317, 0.0
      %v6399 = vmax.f32 %v6320, 0.0
      %v6400 = vmax.f32 %v6325, 0.0
      %v6401 = vmax.f32 %v6328, 0.0
      %v6402 = vmax.f32 %v6333, 0.0
      %v6403 = vmax.f32 %v6336, 0.0
      %v6404 = vmax.f32 %v6341, 0.0
      %v6405 = vmax.f32 %v6344, 0.0
      %v6406 = vmax.f32 %v6349, 0.0
      %v6407 = vmax.f32 %v6352, 0.0
      %v6408 = vmax.f32 %v6357, 0.0
      %v6409 = vpack.c.bf16 %v6363, %v6362
      %v6410 = vpack.c.bf16 %v6365, %v6364
      %v6411 = vpack.c.bf16 %v6367, %v6366
      %v6412 = vpack.c.bf16 %v6369, %v6368
      %v6413 = vpack.c.bf16 %v6371, %v6370
      %v6414 = vpack.c.bf16 %v6373, %v6372
      %v6415 = vpack.c.bf16 %v6375, %v6374
      %v6416 = vpack.c.bf16 %v6377, %v6376
      %v6417 = vpack.c.bf16 %v6379, %v6378
      %v6418 = vpack.c.bf16 %v6381, %v6380
      %v6419 = vpack.c.bf16 %v6383, %v6382
      %v6420 = vpack.c.bf16 %v6385, %v6384
      %v6421 = vpack.c.bf16 %v6387, %v6386
      %v6422 = vpack.c.bf16 %v6389, %v6388
      %v6423 = vpack.c.bf16 %v6391, %v6390
      %v6424 = vpack.c.bf16 %v6393, %v6392
      %v6425 = vpack.c.bf16 %v6395, %v6394
      %v6426 = vpack.c.bf16 %v6397, %v6396
      %v6427 = vpack.c.bf16 %v6399, %v6398
      %v6428 = vpack.c.bf16 %v6401, %v6400
      %v6429 = vpack.c.bf16 %v6403, %v6402
      %v6430 = vpack.c.bf16 %v6405, %v6404
      %v6431 = vpack.c.bf16 %v6407, %v6406
      %v6432 = vpack.c.bf16 %v6408, %v6408
      %v6434 = vunpack.c.l.b16 %v6409
      %v6435 = vunpack.c.h.b16 %v6409
      %v6436 = vpack.c.b16 %v6434, %v6434
      %v6437 = vpack.c.b16 %v6435, %v6435
      %6440 = vst.msk [vmem:[#allocation4] sm:$0xf] %vm736, %v6436
      %6441 = vst.msk [vmem:[#allocation4 + $0x4] sm:$0xf] %vm736, %v6437
      %v6444 = vunpack.c.h.b16 %v6410
      %v6445 = vunpack.c.l.b16 %v6411
      %v6446 = vpack.c.b16 %v6444, %v6444
      %v6447 = vpack.c.b16 %v6445, %v6445
      %6450 = vst.msk [vmem:[#allocation4 + $0x8] sm:$0xf] %vm736, %v6446
      %6451 = vst.msk [vmem:[#allocation4 + $0xc] sm:$0xf] %vm736, %v6447
      %v6453 = vunpack.c.l.b16 %v6412
      %v6454 = vunpack.c.h.b16 %v6412
      %v6455 = vpack.c.b16 %v6453, %v6453
      %v6456 = vpack.c.b16 %v6454, %v6454
      %6459 = vst.msk [vmem:[#allocation4 + $0x10] sm:$0xf] %vm736, %v6455
      %6460 = vst.msk [vmem:[#allocation4 + $0x14] sm:$0xf] %vm736, %v6456
      %v6463 = vunpack.c.h.b16 %v6413
      %v6464 = vunpack.c.l.b16 %v6414
      %v6465 = vpack.c.b16 %v6463, %v6463
      %v6466 = vpack.c.b16 %v6464, %v6464
      %6469 = vst.msk [vmem:[#allocation4 + $0x18] sm:$0xf] %vm736, %v6465
      %6470 = vst.msk [vmem:[#allocation4 + $0x1c] sm:$0xf] %vm736, %v6466
      %v6472 = vunpack.c.l.b16 %v6415
      %v6473 = vunpack.c.h.b16 %v6415
      %v6474 = vpack.c.b16 %v6472, %v6472
      %v6475 = vpack.c.b16 %v6473, %v6473
      %6478 = vst.msk [vmem:[#allocation4 + $0x20] sm:$0xf] %vm736, %v6474
      %6479 = vst.msk [vmem:[#allocation4 + $0x24] sm:$0xf] %vm736, %v6475
      %v6482 = vunpack.c.h.b16 %v6416
      %v6483 = vunpack.c.l.b16 %v6417
      %v6484 = vpack.c.b16 %v6482, %v6482
      %v6485 = vpack.c.b16 %v6483, %v6483
      %6488 = vst.msk [vmem:[#allocation4 + $0x28] sm:$0xf] %vm736, %v6484
      %6489 = vst.msk [vmem:[#allocation4 + $0x2c] sm:$0xf] %vm736, %v6485
      %v6491 = vunpack.c.l.b16 %v6418
      %v6492 = vunpack.c.h.b16 %v6418
      %v6493 = vpack.c.b16 %v6491, %v6491
      %v6494 = vpack.c.b16 %v6492, %v6492
      %6497 = vst.msk [vmem:[#allocation4 + $0x30] sm:$0xf] %vm736, %v6493
      %6498 = vst.msk [vmem:[#allocation4 + $0x34] sm:$0xf] %vm736, %v6494
      %v6501 = vunpack.c.h.b16 %v6419
      %v6502 = vunpack.c.l.b16 %v6420
      %v6503 = vpack.c.b16 %v6501, %v6501
      %v6504 = vpack.c.b16 %v6502, %v6502
      %6507 = vst.msk [vmem:[#allocation4 + $0x38] sm:$0xf] %vm736, %v6503
      %6508 = vst.msk [vmem:[#allocation4 + $0x3c] sm:$0xf] %vm736, %v6504
      %v6510 = vunpack.c.l.b16 %v6421
      %v6511 = vunpack.c.h.b16 %v6421
      %v6512 = vpack.c.b16 %v6510, %v6510
      %v6513 = vpack.c.b16 %v6511, %v6511
      %6516 = vst.msk [vmem:[#allocation4 + $0x40] sm:$0xf] %vm736, %v6512
      %6517 = vst.msk [vmem:[#allocation4 + $0x44] sm:$0xf] %vm736, %v6513
      %v6520 = vunpack.c.h.b16 %v6422
      %v6521 = vunpack.c.l.b16 %v6423
      %v6522 = vpack.c.b16 %v6520, %v6520
      %v6523 = vpack.c.b16 %v6521, %v6521
      %6526 = vst.msk [vmem:[#allocation4 + $0x48] sm:$0xf] %vm736, %v6522
      %6527 = vst.msk [vmem:[#allocation4 + $0x4c] sm:$0xf] %vm736, %v6523
      %v6529 = vunpack.c.l.b16 %v6424
      %v6530 = vunpack.c.h.b16 %v6424
      %v6531 = vpack.c.b16 %v6529, %v6529
      %v6532 = vpack.c.b16 %v6530, %v6530
      %6535 = vst.msk [vmem:[#allocation4 + $0x50] sm:$0xf] %vm736, %v6531
      %6536 = vst.msk [vmem:[#allocation4 + $0x54] sm:$0xf] %vm736, %v6532
      %v6539 = vunpack.c.h.b16 %v6425
      %v6540 = vunpack.c.l.b16 %v6426
      %v6541 = vpack.c.b16 %v6539, %v6539
      %v6542 = vpack.c.b16 %v6540, %v6540
      %6545 = vst.msk [vmem:[#allocation4 + $0x58] sm:$0xf] %vm736, %v6541
      %6546 = vst.msk [vmem:[#allocation4 + $0x5c] sm:$0xf] %vm736, %v6542
      %v6548 = vunpack.c.l.b16 %v6427
      %v6549 = vunpack.c.h.b16 %v6427
      %v6550 = vpack.c.b16 %v6548, %v6548
      %v6551 = vpack.c.b16 %v6549, %v6549
      %6554 = vst.msk [vmem:[#allocation4 + $0x60] sm:$0xf] %vm736, %v6550
      %6555 = vst.msk [vmem:[#allocation4 + $0x64] sm:$0xf] %vm736, %v6551
      %v6558 = vunpack.c.h.b16 %v6428
      %v6559 = vunpack.c.l.b16 %v6429
      %v6560 = vpack.c.b16 %v6558, %v6558
      %v6561 = vpack.c.b16 %v6559, %v6559
      %6564 = vst.msk [vmem:[#allocation4 + $0x68] sm:$0xf] %vm736, %v6560
      %6565 = vst.msk [vmem:[#allocation4 + $0x6c] sm:$0xf] %vm736, %v6561
      %v6567 = vunpack.c.l.b16 %v6430
      %v6568 = vunpack.c.h.b16 %v6430
      %v6569 = vpack.c.b16 %v6567, %v6567
      %v6570 = vpack.c.b16 %v6568, %v6568
      %6573 = vst.msk [vmem:[#allocation4 + $0x70] sm:$0xf] %vm736, %v6569
      %6574 = vst.msk [vmem:[#allocation4 + $0x74] sm:$0xf] %vm736, %v6570
      %v6577 = vunpack.c.h.b16 %v6431
      %v6578 = vunpack.c.l.b16 %v6432
      %v6579 = vpack.c.b16 %v6577, %v6577
      %v6580 = vpack.c.b16 %v6578, %v6578
      %6583 = vst.msk [vmem:[#allocation4 + $0x78] sm:$0xf] %vm736, %v6579
      %6584 = vst.msk [vmem:[#allocation4 + $0x7c] sm:$0xf] %vm736, %v6580
      %v6585 = vld [vmem:[%s6] sm:$0xf]
      %v6586 = vld [vmem:[%s6 + $0x4] sm:$0xf]
      %v6587 = vld [vmem:[%s6 + $0x8] sm:$0xf]
      %v6588 = vld [vmem:[%s6 + $0xc] sm:$0xf]
      %v6589 = vld [vmem:[%s6 + $0x10] sm:$0xf]
      %v6590 = vld [vmem:[%s6 + $0x14] sm:$0xf]
      %v6591 = vld [vmem:[%s6 + $0x18] sm:$0xf]
      %v6592 = vld [vmem:[%s6 + $0x1c] sm:$0xf]
      %v6593 = vld [vmem:[#allocation4] sm:$0xf]
      %v6594 = vld [vmem:[#allocation4 + $0x4] sm:$0xf]
      %v6595 = vld [vmem:[#allocation4 + $0x8] sm:$0xf]
      %v6596 = vld [vmem:[#allocation4 + $0xc] sm:$0xf]
      %v6597 = vld [vmem:[#allocation4 + $0x10] sm:$0xf]
      %v6598 = vld [vmem:[#allocation4 + $0x14] sm:$0xf]
      %v6599 = vld [vmem:[#allocation4 + $0x18] sm:$0xf]
      %v6600 = vld [vmem:[#allocation4 + $0x1c] sm:$0xf]
      %v6601 = vld [vmem:[#allocation4 + $0x20] sm:$0xf]
      %v6602 = vld [vmem:[#allocation4 + $0x24] sm:$0xf]
      %v6603 = vld [vmem:[#allocation4 + $0x28] sm:$0xf]
      %v6604 = vld [vmem:[#allocation4 + $0x2c] sm:$0xf]
      %v6605 = vld [vmem:[#allocation4 + $0x30] sm:$0xf]
      %v6606 = vld [vmem:[#allocation4 + $0x34] sm:$0xf]
      %v6607 = vld [vmem:[#allocation4 + $0x38] sm:$0xf]
      %v6608 = vld [vmem:[#allocation4 + $0x3c] sm:$0xf]
      %v6609 = vld [vmem:[#allocation4 + $0x40] sm:$0xf]
      %v6610 = vld [vmem:[#allocation4 + $0x44] sm:$0xf]
      %v6611 = vld [vmem:[#allocation4 + $0x48] sm:$0xf]
      %v6612 = vld [vmem:[#allocation4 + $0x4c] sm:$0xf]
      %v6613 = vld [vmem:[#allocation4 + $0x50] sm:$0xf]
      %v6614 = vld [vmem:[#allocation4 + $0x54] sm:$0xf]
      %v6615 = vld [vmem:[#allocation4 + $0x58] sm:$0xf]
      %v6616 = vld [vmem:[#allocation4 + $0x5c] sm:$0xf]
      %v6617 = vld [vmem:[#allocation4 + $0x60] sm:$0xf]
      %v6618 = vld [vmem:[#allocation4 + $0x64] sm:$0xf]
      %v6619 = vld [vmem:[#allocation4 + $0x68] sm:$0xf]
      %v6620 = vld [vmem:[#allocation4 + $0x6c] sm:$0xf]
      %v6621 = vld [vmem:[#allocation4 + $0x70] sm:$0xf]
      %v6622 = vld [vmem:[#allocation4 + $0x74] sm:$0xf]
      %v6623 = vld [vmem:[#allocation4 + $0x78] sm:$0xf]
      %v6624 = vld [vmem:[#allocation4 + $0x7c] sm:$0xf]
      %v6625 = vld [vmem:[%s7] sm:$0xff]
      %v6626 = vld [vmem:[%s7 + $0x8] sm:$0xff]
      %v6627 = vld [vmem:[%s7 + $0x10] sm:$0xff]
      %v6628 = vld [vmem:[%s7 + $0x18] sm:$0xff]
      %v6629 = vld [vmem:[%s7 + $0x20] sm:$0xff]
      %v6630 = vld [vmem:[%s7 + $0x28] sm:$0xff]
      %v6631 = vld [vmem:[%s7 + $0x30] sm:$0xff]
      %v6632 = vld [vmem:[%s7 + $0x38] sm:$0xff]
      %6634 = vset.pattern.permute.xlu0 0
      %6635 = vperm.xlu0 %6634, %v6625
      %v6636 = vpop.permute.xlu0 %6635
      %6639 = vset.pattern.permute.xlu0 0
      %6640 = vperm.xlu0 %6639, %v6626
      %v6641 = vpop.permute.xlu0 %6640
      %6644 = vset.pattern.permute.xlu0 0
      %6645 = vperm.xlu0 %6644, %v6627
      %v6646 = vpop.permute.xlu0 %6645
      %6649 = vset.pattern.permute.xlu0 0
      %6650 = vperm.xlu0 %6649, %v6628
      %v6651 = vpop.permute.xlu0 %6650
      %6654 = vset.pattern.permute.xlu0 0
      %6655 = vperm.xlu0 %6654, %v6629
      %v6656 = vpop.permute.xlu0 %6655
      %6659 = vset.pattern.permute.xlu0 0
      %6660 = vperm.xlu0 %6659, %v6630
      %v6661 = vpop.permute.xlu0 %6660
      %6664 = vset.pattern.permute.xlu0 0
      %6665 = vperm.xlu0 %6664, %v6631
      %v6666 = vpop.permute.xlu0 %6665
      %6669 = vset.pattern.permute.xlu0 0
      %6670 = vperm.xlu0 %6669, %v6632
      %v6671 = vpop.permute.xlu0 %6670
      %v6681 = vunpack.c.l.b16 %v6585
      %v6682 = vunpack.c.l.b16 %v6586
      %v6683 = vunpack.c.l.b16 %v6587
      %v6684 = vunpack.c.l.b16 %v6588
      %v6685 = vunpack.c.l.b16 %v6589
      %v6686 = vunpack.c.l.b16 %v6590
      %v6687 = vunpack.c.l.b16 %v6591
      %v6688 = vunpack.c.l.b16 %v6592
      %v6689 = vpack.c.b16 %v6682, %v6681
      %v6690 = vpack.c.b16 %v6684, %v6683
      %v6691 = vpack.c.b16 %v6686, %v6685
      %v6692 = vpack.c.b16 %v6688, %v6687
      %v6725 = vunpack.c.l.b16 %v6593
      %v6726 = vunpack.c.l.b16 %v6594
      %v6727 = vunpack.c.l.b16 %v6595
      %v6728 = vunpack.c.l.b16 %v6596
      %v6729 = vunpack.c.l.b16 %v6597
      %v6730 = vunpack.c.l.b16 %v6598
      %v6731 = vunpack.c.l.b16 %v6599
      %v6732 = vunpack.c.l.b16 %v6600
      %v6733 = vunpack.c.l.b16 %v6601
      %v6734 = vunpack.c.l.b16 %v6602
      %v6735 = vunpack.c.l.b16 %v6603
      %v6736 = vunpack.c.l.b16 %v6604
      %v6737 = vunpack.c.l.b16 %v6605
      %v6738 = vunpack.c.l.b16 %v6606
      %v6739 = vunpack.c.l.b16 %v6607
      %v6740 = vunpack.c.l.b16 %v6608
      %v6741 = vunpack.c.l.b16 %v6609
      %v6742 = vunpack.c.l.b16 %v6610
      %v6743 = vunpack.c.l.b16 %v6611
      %v6744 = vunpack.c.l.b16 %v6612
      %v6745 = vunpack.c.l.b16 %v6613
      %v6746 = vunpack.c.l.b16 %v6614
      %v6747 = vunpack.c.l.b16 %v6615
      %v6748 = vunpack.c.l.b16 %v6616
      %v6749 = vunpack.c.l.b16 %v6617
      %v6750 = vunpack.c.l.b16 %v6618
      %v6751 = vunpack.c.l.b16 %v6619
      %v6752 = vunpack.c.l.b16 %v6620
      %v6753 = vunpack.c.l.b16 %v6621
      %v6754 = vunpack.c.l.b16 %v6622
      %v6755 = vunpack.c.l.b16 %v6623
      %v6756 = vunpack.c.l.b16 %v6624
      %v6757 = vpack.c.b16 %v6726, %v6725
      %v6758 = vpack.c.b16 %v6728, %v6727
      %v6759 = vpack.c.b16 %v6730, %v6729
      %v6760 = vpack.c.b16 %v6732, %v6731
      %v6761 = vpack.c.b16 %v6734, %v6733
      %v6762 = vpack.c.b16 %v6736, %v6735
      %v6763 = vpack.c.b16 %v6738, %v6737
      %v6764 = vpack.c.b16 %v6740, %v6739
      %v6765 = vpack.c.b16 %v6742, %v6741
      %v6766 = vpack.c.b16 %v6744, %v6743
      %v6767 = vpack.c.b16 %v6746, %v6745
      %v6768 = vpack.c.b16 %v6748, %v6747
      %v6769 = vpack.c.b16 %v6750, %v6749
      %v6770 = vpack.c.b16 %v6752, %v6751
      %v6771 = vpack.c.b16 %v6754, %v6753
      %v6772 = vpack.c.b16 %v6756, %v6755
      %v6774 = vsel %vm6065, %v6689, 0
      %v6777 = vsel %vm6065, %v6690, 0
      %v6780 = vsel %vm6065, %v6691, 0
      %v6783 = vsel %vm6065, %v6692, 0
      %v6786 = vsel %vm6065, %v6757, 0
      %v6789 = vsel %vm6065, %v6758, 0
      %v6792 = vsel %vm6065, %v6759, 0
      %v6795 = vsel %vm6065, %v6760, 0
      %v6798 = vsel %vm6065, %v6761, 0
      %v6801 = vsel %vm6065, %v6762, 0
      %v6804 = vsel %vm6065, %v6763, 0
      %v6807 = vsel %vm6065, %v6764, 0
      %v6810 = vsel %vm6065, %v6765, 0
      %v6813 = vsel %vm6065, %v6766, 0
      %v6816 = vsel %vm6065, %v6767, 0
      %v6819 = vsel %vm6065, %v6768, 0
      %v6822 = vsel %vm6065, %v6769, 0
      %v6825 = vsel %vm6065, %v6770, 0
      %v6828 = vsel %vm6065, %v6771, 0
      %v6831 = vsel %vm6065, %v6772, 0
      %6833 = vmatprep.subr.bf16.mxu0 0
      %6834 = vmatpush1.bf16.xpose.msra.mxu0 %v6807
      %6835 = vmatprep.subr.bf16.mxu0 0
      %6836 = vmatpush1.bf16.xpose.msra.mxu0 %v6804
      %6837 = vmatprep.subr.bf16.mxu0 0
      %6838 = vmatpush1.bf16.xpose.msra.mxu0 %v6801
      %6839 = vmatprep.subr.bf16.mxu0 0
      %6840 = vmatpush1.bf16.xpose.msra.mxu0 %v6798
      %6841 = vmatprep.subr.bf16.mxu0 0
      %6842 = vmatpush1.bf16.xpose.msra.mxu0 %v6795
      %6843 = vmatprep.subr.bf16.mxu0 0
      %6844 = vmatpush1.bf16.xpose.msra.mxu0 %v6792
      %6845 = vmatprep.subr.bf16.mxu0 0
      %6846 = vmatpush1.bf16.xpose.msra.mxu0 %v6789
      %6847 = vmatprep.subr.bf16.mxu0 0
      %6848 = vmatpush1.bf16.xpose.msra.mxu0 %v6786
      %6849 = vmatprep.subr.bf16.mxu0 0
      %6850 = vmatpush2.bf16.xpose.msra.mxu0 %v6831
      %6851 = vmatprep.subr.bf16.mxu0 0
      %6852 = vmatpush2.bf16.xpose.msra.mxu0 %v6828
      %6853 = vmatprep.subr.bf16.mxu0 0
      %6854 = vmatpush2.bf16.xpose.msra.mxu0 %v6825
      %6855 = vmatprep.subr.bf16.mxu0 0
      %6856 = vmatpush2.bf16.xpose.msra.mxu0 %v6822
      %6857 = vmatprep.subr.bf16.mxu0 0
      %6858 = vmatpush2.bf16.xpose.msra.mxu0 %v6819
      %6859 = vmatprep.subr.bf16.mxu0 0
      %6860 = vmatpush2.bf16.xpose.msra.mxu0 %v6816
      %6861 = vmatprep.subr.bf16.mxu0 0
      %6862 = vmatpush2.bf16.xpose.msra.mxu0 %v6813
      %6863 = vmatprep.subr.bf16.mxu0 0
      %6864 = vmatpush2.bf16.xpose.msra.mxu0 %v6810
      %6865 = vmatprep.mubr.bf16.mxu0 0
      %6866 = vmatmul.mubr.bf16.gmra.mxu0 %v6774
      %v6867 = vpop.f32.mrf.mxu0
      %v6868 = vadd.f32 %v6636, %v6867
      %v6869 = vpop.f32.mrf.mxu0
      %v6870 = vadd.f32 %v6636, %v6869
      %v6871 = vpop.f32.mrf.mxu0
      %v6872 = vadd.f32 %v6641, %v6871
      %v6873 = vpop.f32.mrf.mxu0
      %v6874 = vadd.f32 %v6641, %v6873
      %6875 = vmatprep.mubr.bf16.mxu0 0
      %6876 = vmatmul.mubr.bf16.gmra.mxu0 %v6777
      %v6877 = vpop.f32.mrf.mxu0
      %v6878 = vadd.f32 %v6646, %v6877
      %v6879 = vpop.f32.mrf.mxu0
      %v6880 = vadd.f32 %v6646, %v6879
      %v6881 = vpop.f32.mrf.mxu0
      %v6882 = vadd.f32 %v6651, %v6881
      %v6883 = vpop.f32.mrf.mxu0
      %v6884 = vadd.f32 %v6651, %v6883
      %6885 = vmatprep.mubr.bf16.mxu0 0
      %6886 = vmatmul.mubr.bf16.gmra.mxu0 %v6780
      %v6887 = vpop.f32.mrf.mxu0
      %v6888 = vadd.f32 %v6656, %v6887
      %v6889 = vpop.f32.mrf.mxu0
      %v6890 = vadd.f32 %v6656, %v6889
      %v6891 = vpop.f32.mrf.mxu0
      %v6892 = vadd.f32 %v6661, %v6891
      %v6893 = vpop.f32.mrf.mxu0
      %v6894 = vadd.f32 %v6661, %v6893
      %6895 = vmatprep.mubr.bf16.mxu0 0
      %6896 = vmatmul.mubr.bf16.gmra.mxu0 %v6783
      %v6897 = vpop.f32.mrf.mxu0
      %v6898 = vadd.f32 %v6666, %v6897
      %v6899 = vpop.f32.mrf.mxu0
      %v6900 = vadd.f32 %v6666, %v6899
      %v6901 = vpop.f32.mrf.mxu0
      %v6902 = vadd.f32 %v6671, %v6901
      %v6903 = vpop.f32.mrf.mxu0
      %v6904 = vadd.f32 %v6671, %v6903
      %6905 = vdwg.mxu0
      %v6906 = vld [vmem:[%s320] sm:$0xff]
      %v6907 = vld [vmem:[%s320 + $0x8] sm:$0xff]
      %v6908 = vld [vmem:[%s320 + $0x10] sm:$0xff]
      %v6909 = vld [vmem:[%s320 + $0x18] sm:$0xff]
      %v6910 = vld [vmem:[%s320 + $0x20] sm:$0xff]
      %v6911 = vld [vmem:[%s320 + $0x28] sm:$0xff]
      %v6912 = vld [vmem:[%s320 + $0x30] sm:$0xff]
      %v6913 = vld [vmem:[%s320 + $0x38] sm:$0xff]
      %v6914 = vld [vmem:[%s320 + $0x40] sm:$0xff]
      %v6915 = vld [vmem:[%s320 + $0x48] sm:$0xff]
      %v6916 = vld [vmem:[%s320 + $0x50] sm:$0xff]
      %v6917 = vld [vmem:[%s320 + $0x58] sm:$0xff]
      %v6918 = vld [vmem:[%s320 + $0x60] sm:$0xff]
      %v6919 = vld [vmem:[%s320 + $0x68] sm:$0xff]
      %v6920 = vld [vmem:[%s320 + $0x70] sm:$0xff]
      %v6921 = vld [vmem:[%s320 + $0x78] sm:$0xff]
      %v6922 = vadd.f32 %v6868, %v6906
      %v6923 = vadd.f32 %v6870, %v6907
      %v6924 = vadd.f32 %v6872, %v6908
      %v6925 = vadd.f32 %v6874, %v6909
      %v6926 = vadd.f32 %v6878, %v6910
      %v6927 = vadd.f32 %v6880, %v6911
      %v6928 = vadd.f32 %v6882, %v6912
      %v6929 = vadd.f32 %v6884, %v6913
      %v6930 = vadd.f32 %v6888, %v6914
      %v6931 = vadd.f32 %v6890, %v6915
      %v6932 = vadd.f32 %v6892, %v6916
      %v6933 = vadd.f32 %v6894, %v6917
      %v6934 = vadd.f32 %v6898, %v6918
      %v6935 = vadd.f32 %v6900, %v6919
      %v6936 = vadd.f32 %v6902, %v6920
      %v6937 = vadd.f32 %v6904, %v6921
      %v6938 = vmax.f32 %v6922, 0.0
      %v6939 = vmax.f32 %v6923, 0.0
      %v6940 = vmax.f32 %v6924, 0.0
      %v6941 = vmax.f32 %v6925, 0.0
      %v6942 = vmax.f32 %v6926, 0.0
      %v6943 = vmax.f32 %v6927, 0.0
      %v6944 = vmax.f32 %v6928, 0.0
      %v6945 = vmax.f32 %v6929, 0.0
      %v6946 = vmax.f32 %v6930, 0.0
      %v6947 = vmax.f32 %v6931, 0.0
      %v6948 = vmax.f32 %v6932, 0.0
      %v6949 = vmax.f32 %v6933, 0.0
      %v6950 = vmax.f32 %v6934, 0.0
      %v6951 = vmax.f32 %v6935, 0.0
      %v6952 = vmax.f32 %v6936, 0.0
      %v6953 = vmax.f32 %v6937, 0.0
      %6954 = vst [vmem:[%s325] sm:$0xff] %v6938
      %6955 = vst [vmem:[%s325 + $0x8] sm:$0xff] %v6939
      %6956 = vst [vmem:[%s325 + $0x10] sm:$0xff] %v6940
      %6957 = vst [vmem:[%s325 + $0x18] sm:$0xff] %v6941
      %6958 = vst [vmem:[%s325 + $0x20] sm:$0xff] %v6942
      %6959 = vst [vmem:[%s325 + $0x28] sm:$0xff] %v6943
      %6960 = vst [vmem:[%s325 + $0x30] sm:$0xff] %v6944
      %6961 = vst [vmem:[%s325 + $0x38] sm:$0xff] %v6945
      %6962 = vst [vmem:[%s325 + $0x40] sm:$0xff] %v6946
      %6963 = vst [vmem:[%s325 + $0x48] sm:$0xff] %v6947
      %6964 = vst [vmem:[%s325 + $0x50] sm:$0xff] %v6948
      %6965 = vst [vmem:[%s325 + $0x58] sm:$0xff] %v6949
      %6966 = vst [vmem:[%s325 + $0x60] sm:$0xff] %v6950
      %6967 = vst [vmem:[%s325 + $0x68] sm:$0xff] %v6951
      %6968 = vst [vmem:[%s325 + $0x70] sm:$0xff] %v6952
      %6969 = vst [vmem:[%s325 + $0x78] sm:$0xff] %v6953
      %p6970 = scmp.lt.s32.totalorder %s19, 1
      %s6971 = scalar_select %p6970, %s19, 1
      %s6972 = smul.addr %s6971, 16
      %s6973 = smul.addr %s6972, 8
      %s6974 = scalar_lea.vmem %s8, %s6973
      // Predicated region
      $region53: #{bottleneck_forward.1} parent=51 // pred_check
        %p6975 = pneg %p215
      $region54: #{bottleneck_forward.1} parent=51 // pred_check_branch
        %6977 = sbr.rel (%p6975) target = $region56
      $region55: #{bottleneck_forward.1} parent=51 // pred_region
        _
      $region56: #{bottleneck_forward.1} parent=51 // pred_fallthru
        _
    $region52: #{bottleneck_forward.1} parent=5 // pred_fallthru
      _
    %p6978 = scmp.le.s32.totalorder 2, %s14
    // Predicated region
    $region57: #{bottleneck_forward.1} parent=5 // pred_check
      %p6979 = pneg %p6978
    $region58: #{bottleneck_forward.1} parent=5 // pred_check_branch
      %6981 = sbr.rel (%p6979) target = $region60
    $region59: #{bottleneck_forward.1} parent=5 // pred_region
      %s6982 = ssub.s32 %s14, 2
      // Predicated region
      $region61: #{bottleneck_forward.1} parent=59 // pred_check
        %p6983 = pneg %p221
      $region62: #{bottleneck_forward.1} parent=59 // pred_check_branch
        %6985 = sbr.rel (%p6983) target = $region64
      $region63: #{bottleneck_forward.1} parent=59 // pred_region
        %p6986 = scmp.lt.s32.totalorder %s20, 1
        %s6987 = scalar_select %p6986, %s20, 1
        %s6988 = smul.addr %s6987, 16
        %s6989 = smul.addr %s6988, 8
        %s6990 = scalar_lea.vmem %s8, %s6989
      $region64: #{bottleneck_forward.1} parent=59 // pred_fallthru
        _
    $region60: #{bottleneck_forward.1} parent=5 // pred_fallthru
      _
  $region6: #{bottleneck_forward.1} parent=0 // loop_footer
    %s18 = sadd.s32 1, %s14
  $region7: #{bottleneck_forward.1} parent=0 // loop_footer_branch
    %13 = sbr.rel target = $region3
  $region8: #{bottleneck_forward.1} parent=0 // loop_exit
    _

</llo_original>
